<compile_context>
chip_gen: v7x
topology: tpu7x:2x2x1
jax: 0.10.0
libtpu: 0.0.40
codegen_flags: <defaults>
</compile_context>

<pallas_src>
import functools
import math

import jax
import jax.numpy as jnp
import numpy as np
from jax.experimental import pallas as pl
from jax.experimental.pallas import tpu as pltpu

MIN_NORM = 1e-15
EPS_F32 = 4e-3                 # PoincareBall eps for float32
_ARTANH_LIM = 1.0 - 1e-7       # float32-representable clamp (1-1e-15 == 1.0 in f32)


# ----------------------------------------------------------------------------
# Shared math helpers (used by the pure-JAX reference and the wrapper's
# grid-invariant bias precompute; the kernel inlines optimized equivalents).
# ----------------------------------------------------------------------------
def _artanh(y):
    y = jnp.clip(y, -_ARTANH_LIM, _ARTANH_LIM)
    return 0.5 * (jnp.log1p(y) - jnp.log1p(-y))


def _row_norm(p):
    return jnp.maximum(jnp.sqrt(jnp.sum(p * p, axis=-1, keepdims=True)), MIN_NORM)


def _proj(p, sqrt_c):
    norm = _row_norm(p)
    maxnorm = (1.0 - EPS_F32) / sqrt_c
    projected = p / norm * maxnorm
    return jnp.where(norm > maxnorm, projected, p)


def _expmap0(u, sqrt_c):
    u_norm = _row_norm(u)
    return jnp.tanh(sqrt_c * u_norm) * u / (sqrt_c * u_norm)


def _logmap0(p, sqrt_c):
    p_norm = _row_norm(p)
    scale = (1.0 / sqrt_c) * _artanh(sqrt_c * p_norm) / p_norm
    return scale * p


def _mobius_add(x, y, c):
    x2 = jnp.sum(x * x, axis=-1, keepdims=True)
    y2 = jnp.sum(y * y, axis=-1, keepdims=True)
    xy = jnp.sum(x * y, axis=-1, keepdims=True)
    num = (1.0 + 2.0 * c * xy + c * y2) * x + (1.0 - c * x2) * y
    denom = 1.0 + 2.0 * c * xy + c * c * x2 * y2
    return num / jnp.maximum(denom, MIN_NORM)


# ----------------------------------------------------------------------------
# Pallas kernel
# ----------------------------------------------------------------------------
def hnn_kernel(x_ref, wt_ref, hb_ref, o_ref, *, c):
    sqrt_c = math.sqrt(c)
    inv_sqrt_c = 1.0 / sqrt_c
    maxnorm = (1.0 - EPS_F32) / sqrt_c
    tiny = MIN_NORM * MIN_NORM

    x = x_ref[...].astype(jnp.float32)      # (tm, d_in)
    wt = wt_ref[...].astype(jnp.float32)    # (d_in, d_out_p)
    hb = hb_ref[...].astype(jnp.float32)    # (1, d_out_p) = proj(expmap0(bias))

    # ---- HypLinear: mobius_matvec(W, x, c) --------------------------------
    x2 = jnp.maximum(jnp.sum(x * x, axis=-1, keepdims=True), tiny)      # R1
    inv_x_norm = jax.lax.rsqrt(x2)
    x_norm = x2 * inv_x_norm

    mx = jnp.dot(x, wt, preferred_element_type=jnp.float32)             # MXU
    mx2 = jnp.sum(mx * mx, axis=-1, keepdims=True)                      # R2
    mx2s = jnp.maximum(mx2, tiny)
    inv_mx_norm = jax.lax.rsqrt(mx2s)
    mx_norm = mx2s * inv_mx_norm

    t = jnp.tanh(mx_norm * inv_x_norm * _artanh(sqrt_c * x_norm))       # (tm,1)
    nonzero = mx2 > 0.0                       # == "not all(mx == 0)" (cheaper)
    res_norm = jnp.where(nonzero, t * inv_sqrt_c, 0.0)  # ||res|| pre-proj (analytic)

    # proj(res): fold min(1, maxnorm/||res||) into one per-row scale on mx.
    inv_res_norm = pl.reciprocal(jnp.maximum(res_norm, MIN_NORM), approx=True)
    proj_fac = jnp.minimum(1.0, maxnorm * inv_res_norm)
    s1 = jnp.where(nonzero, t * inv_sqrt_c, 0.0) * inv_mx_norm * proj_fac
    res = mx * s1                                           # (tm, d_out_p)
    res_norm = jnp.minimum(res_norm, maxnorm)               # ||res|| post-proj

    # ---- bias: mobius_add(res, hyp_bias, c) then proj ----------------------
    hb2 = jnp.sum(hb * hb, axis=-1, keepdims=True)          # (1,1), 1-row reduce
    xy = jnp.sum(res * hb, axis=-1, keepdims=True)          # R3 (tm,1)
    x2r = res_norm * res_norm
    two_cxy = 2.0 * c * xy
    num_x = 1.0 + two_cxy + c * hb2
    num_y = 1.0 - c * x2r
    denom = 1.0 + two_cxy + (c * c) * x2r * hb2
    inv_den = 1.0 / jnp.maximum(denom, MIN_NORM)            # (tm,1) exact
    add = (num_x * inv_den) * res + (num_y * inv_den) * hb  # (tm, d_out_p)

    a2 = jnp.maximum(jnp.sum(add * add, axis=-1, keepdims=True), tiny)  # R4
    inv_a = jax.lax.rsqrt(a2)
    a_norm = a2 * inv_a
    fac2 = jnp.minimum(1.0, maxnorm * inv_a)                # proj factor
    h = add * fac2
    h_norm = jnp.minimum(a_norm, maxnorm)                   # ||h|| post-proj

    # ---- HypAct: relu(logmap0(h)) -> proj_tan0 (id) -> proj(expmap0(.)) ----
    pn = jnp.maximum(h_norm, MIN_NORM)
    log_scale = _artanh(sqrt_c * pn) / (sqrt_c * pn)        # (tm,1)
    xt = jnp.maximum(h * log_scale, 0.0)                    # tangent space + ReLU

    u2 = jnp.maximum(jnp.sum(xt * xt, axis=-1, keepdims=True), tiny)    # R5
    inv_u = jax.lax.rsqrt(u2)
    u_norm = u2 * inv_u
    t2 = jnp.tanh(sqrt_c * u_norm)
    out_norm = t2 * inv_sqrt_c                              # ||expmap0(xt)|| analytic
    fac3 = jnp.minimum(
        1.0,
        maxnorm * pl.reciprocal(jnp.maximum(out_norm, MIN_NORM), approx=True))
    out = xt * (t2 * inv_sqrt_c * inv_u * fac3)

    o_ref[...] = out.astype(o_ref.dtype)


# ----------------------------------------------------------------------------
# Wrapper
# ----------------------------------------------------------------------------
def _round_up(a, b):
    return ((a + b - 1) // b) * b


def _choose_tm(n_rows, d_in, d_out_p, vmem_budget_bytes=24 * 1024 * 1024):
    """Row tile: big enough to amortize the ~0.35us/step pipeline overhead,
    small enough that double-buffered x/out + the resident weight fit a VMEM
    budget that is safe on v7x (64 MiB) as well as v5e/v6e, and still giving
    >= 2 grid steps so v7x's two TensorCores both get work."""
    per_row = 2 * 4 * (d_in + d_out_p)              # double-buffered x + out (f32)
    fixed = 2 * 4 * (d_in * d_out_p + d_out_p)      # weight + bias (double-buffered)
    cap = (vmem_budget_bytes - fixed) // per_row
    cap = max(8, (cap // 8) * 8)
    if n_rows >= 512:
        target = 256
    else:
        target = _round_up(max(8, -(-n_rows // 2)), 8)   # ~N/2 -> two grid steps
    return int(max(8, min(target, cap)))


def hnn_layer(x, weight, bias, c, *, tm=None):
    """x: (N, d_in) f32, weight: (d_out, d_in), bias: (d_out,), c: curvature."""
    N, d_in = x.shape
    d_out = weight.shape[0]
    d_out_p = _round_up(d_out, 128)    # lane-dense output (unmasked vst)
    sqrt_c = math.sqrt(float(c))

    # Zero-pad output features: zero columns are invariant under every op in
    # the chain (norms, mobius ops, relu), so they can be sliced off at the end.
    wt_p = jnp.zeros((d_in, d_out_p), jnp.float32).at[:, :d_out].set(
        weight.astype(jnp.float32).T)

    # Grid-invariant bias path hoisted out of the kernel
    # (proj_tan0 is the identity on the PoincareBall).
    b_pad = jnp.zeros((1, d_out_p), jnp.float32).at[:, :d_out].set(
        bias.astype(jnp.float32).reshape(1, -1))
    hyp_bias = _proj(_expmap0(b_pad, sqrt_c), sqrt_c)

    if tm is None:
        tm = _choose_tm(N, d_in, d_out_p)
    grid = (pl.cdiv(N, tm),)           # N need not be divisible by tm

    est_vmem = 4 * (2 * tm * (d_in + d_out_p) + 2 * (d_in * d_out_p + d_out_p))
    vmem_limit = int(min(max(int(1.5 * est_vmem), 32 * 1024 * 1024),
                         48 * 1024 * 1024))

    out_p = pl.pallas_call(
        functools.partial(hnn_kernel, c=float(c)),
        out_shape=jax.ShapeDtypeStruct((N, d_out_p), x.dtype),
        grid_spec=pltpu.PrefetchScalarGridSpec(
            num_scalar_prefetch=0,
            grid=grid,
            in_specs=[
                pl.BlockSpec((tm, d_in), lambda i: (i, 0)),
                # weight / bias have constant index_maps: DMA'd once, resident.
                pl.BlockSpec((d_in, d_out_p), lambda i: (0, 0)),
                pl.BlockSpec((1, d_out_p), lambda i: (0, 0)),
            ],
            out_specs=pl.BlockSpec((tm, d_out_p), lambda i: (i, 0)),
        ),
        compiler_params=pltpu.CompilerParams(
            dimension_semantics=("parallel",),
            vmem_limit_bytes=vmem_limit),
    )(x, wt_p, hyp_bias)
    return out_p[:, :d_out]


# ----------------------------------------------------------------------------
# Pure-JAX reference (faithful to the PyTorch module's math)
# ----------------------------------------------------------------------------
def hnn_layer_ref(x, weight, bias, c):
    sqrt_c = math.sqrt(float(c))
    x_norm = _row_norm(x)
    mx = jnp.dot(x, weight.T, precision=jax.lax.Precision.HIGHEST)
    mx_norm = _row_norm(mx)
    res_c = jnp.tanh(mx_norm / x_norm * _artanh(sqrt_c * x_norm)) * mx / (
        mx_norm * sqrt_c)
    res = jnp.where(jnp.all(mx == 0.0, axis=-1, keepdims=True), 0.0, res_c)
    res = _proj(res, sqrt_c)
    hyp_bias = _proj(_expmap0(bias.reshape(1, -1), sqrt_c), sqrt_c)
    res = _proj(_mobius_add(res, hyp_bias, float(c)), sqrt_c)
    xt = jnp.maximum(_logmap0(res, sqrt_c), 0.0)
    return _proj(_expmap0(xt, sqrt_c), sqrt_c)


if __name__ == "__main__":
    key = jax.random.PRNGKey(0)
    kx, kw, kx2, kw2, kb2 = jax.random.split(key, 5)
    gain = math.sqrt(2.0)

    # --- Test 1: module-default init (bias = 0), N // tm == 0 remainder ----
    N, in_features, out_features = 512, 32, 32
    c = 1.0
    x = 0.1 * jax.random.normal(kx, (N, in_features), dtype=jnp.float32)
    bound = gain * math.sqrt(6.0 / (in_features + out_features))
    weight = jax.random.uniform(kw, (out_features, in_features),
                                dtype=jnp.float32, minval=-bound, maxval=bound)
    bias = jnp.zeros((out_features,), dtype=jnp.float32)

    out = jax.block_until_ready(hnn_layer(x, weight, bias, c))
    ref = hnn_layer_ref(x, weight, bias, c)
    np.testing.assert_allclose(np.asarray(out), np.asarray(ref),
                               rtol=1e-3, atol=1e-3)

    # --- Test 2: ragged N (cdiv grid), non-zero bias (mobius_add path),
    #             d_out not a multiple of 128, non-unit curvature ------------
    N2, d_in2, d_out2 = 200, 48, 40
    c2 = 0.7
    x2 = 0.1 * jax.random.normal(kx2, (N2, d_in2), dtype=jnp.float32)
    bound2 = gain * math.sqrt(6.0 / (d_in2 + d_out2))
    w2 = jax.random.uniform(kw2, (d_out2, d_in2), dtype=jnp.float32,
                            minval=-bound2, maxval=bound2)
    b2 = 0.05 * jax.random.normal(kb2, (d_out2,), dtype=jnp.float32)

    out2 = jax.block_until_ready(hnn_layer(x2, w2, b2, c2))
    ref2 = hnn_layer_ref(x2, w2, b2, c2)
    np.testing.assert_allclose(np.asarray(out2), np.asarray(ref2),
                               rtol=1e-3, atol=1e-3)

    print("KERNEL_OK")
</pallas_src>

<mosaic_0001>
module attributes {stable_mosaic.version = 11 : i64} {
  func.func @hnn_kernel(%arg0: i32, %arg1: memref<256x32xf32, #tpu.memory_space<vmem>>, %arg2: memref<32x128xf32, #tpu.memory_space<vmem>>, %arg3: memref<1x128xf32, #tpu.memory_space<vmem>>, %arg4: memref<256x128xf32, #tpu.memory_space<vmem>>) attributes {dimension_semantics = [#tpu.dimension_semantics<parallel>], iteration_bounds = array<i64: 2>, scalar_prefetch = 0 : i64, scratch_operands = 0 : i64, tpu.core_type = #tpu.core_type<tc>, window_params = [{transform_indices = @transform_0, window_bounds = array<i64: 256, 32>}, {pipeline_mode = #tpu.pipeline_mode<synchronous>, transform_indices = @transform_1, window_bounds = array<i64: 32, 128>}, {pipeline_mode = #tpu.pipeline_mode<synchronous>, transform_indices = @transform_2, window_bounds = array<i64: 1, 128>}, {transform_indices = @transform_3, window_bounds = array<i64: 256, 128>}]} {
    %c0 = arith.constant 0 : index
    %c0_0 = arith.constant 0 : index
    %0 = vector.load %arg1[%c0, %c0_0] : memref<256x32xf32, #tpu.memory_space<vmem>>, vector<256x32xf32>
    %c0_1 = arith.constant 0 : index
    %c0_2 = arith.constant 0 : index
    %1 = vector.load %arg2[%c0_1, %c0_2] : memref<32x128xf32, #tpu.memory_space<vmem>>, vector<32x128xf32>
    %c0_3 = arith.constant 0 : index
    %c0_4 = arith.constant 0 : index
    %2 = vector.load %arg3[%c0_3, %c0_4] : memref<1x128xf32, #tpu.memory_space<vmem>>, vector<1x128xf32>
    %3 = arith.mulf %0, %0 : vector<256x32xf32>
    %cst = arith.constant dense<0.000000e+00> : vector<256xf32>
    %4 = vector.multi_reduction <add>, %3, %cst [1] : vector<256x32xf32> to vector<256xf32>
    %5 = vector.shape_cast %4 : vector<256xf32> to vector<256x1xf32>
    %cst_5 = arith.constant 1.000000e-30 : f32
    %6 = vector.broadcast %cst_5 : f32 to vector<256x1xf32>
    %7 = arith.maximumf %5, %6 : vector<256x1xf32>
    %8 = math.rsqrt %7 : vector<256x1xf32>
    %9 = arith.mulf %7, %8 : vector<256x1xf32>
    %cst_6 = arith.constant dense<0.000000e+00> : vector<256x128xf32>
    %10 = tpu.matmul %0, %1, %cst_6 {dimension_numbers = #tpu.dot_dimension_numbers<[1], [0], [0], [1], [0, 0, 1, 1], [], []>} : vector<256x32xf32>, vector<32x128xf32>, vector<256x128xf32> -> vector<256x128xf32>
    %11 = arith.mulf %10, %10 : vector<256x128xf32>
    %cst_7 = arith.constant dense<0.000000e+00> : vector<256xf32>
    %12 = vector.multi_reduction <add>, %11, %cst_7 [1] : vector<256x128xf32> to vector<256xf32>
    %13 = vector.shape_cast %12 : vector<256xf32> to vector<256x1xf32>
    %cst_8 = arith.constant 1.000000e-30 : f32
    %14 = vector.broadcast %cst_8 : f32 to vector<256x1xf32>
    %15 = arith.maximumf %13, %14 : vector<256x1xf32>
    %16 = math.rsqrt %15 : vector<256x1xf32>
    %17 = arith.mulf %15, %16 : vector<256x1xf32>
    %18 = arith.mulf %17, %8 : vector<256x1xf32>
    %cst_9 = arith.constant 1.000000e+00 : f32
    %19 = vector.broadcast %cst_9 : f32 to vector<256x1xf32>
    %20 = arith.mulf %19, %9 : vector<256x1xf32>
    %cst_10 = arith.constant -0.99999988 : f32
    %cst_11 = arith.constant 0.99999988 : f32
    %21 = vector.broadcast %cst_10 : f32 to vector<256x1xf32>
    %22 = arith.maximumf %21, %20 : vector<256x1xf32>
    %23 = vector.broadcast %cst_11 : f32 to vector<256x1xf32>
    %24 = arith.minimumf %23, %22 : vector<256x1xf32>
    %25 = math.log1p %24 : vector<256x1xf32>
    %cst_12 = arith.constant 0.000000e+00 : f32
    %26 = vector.broadcast %cst_12 : f32 to vector<256x1xf32>
    %27 = arith.subf %26, %24 : vector<256x1xf32>
    %28 = math.log1p %27 : vector<256x1xf32>
    %29 = arith.subf %25, %28 : vector<256x1xf32>
    %cst_13 = arith.constant 5.000000e-01 : f32
    %30 = vector.broadcast %cst_13 : f32 to vector<256x1xf32>
    %31 = arith.mulf %30, %29 : vector<256x1xf32>
    %32 = arith.mulf %18, %31 : vector<256x1xf32>
    %33 = math.tanh %32 : vector<256x1xf32>
    %cst_14 = arith.constant 0.000000e+00 : f32
    %34 = vector.broadcast %cst_14 : f32 to vector<256x1xf32>
    %35 = arith.cmpf ogt, %13, %34 : vector<256x1xf32>
    %cst_15 = arith.constant 1.000000e+00 : f32
    %36 = vector.broadcast %cst_15 : f32 to vector<256x1xf32>
    %37 = arith.mulf %33, %36 : vector<256x1xf32>
    %cst_16 = arith.constant 0.000000e+00 : f32
    %38 = vector.broadcast %cst_16 : f32 to vector<256x1xf32>
    %39 = arith.select %35, %37, %38 : vector<256x1xi1>, vector<256x1xf32>
    %cst_17 = arith.constant 1.000000e-15 : f32
    %40 = vector.broadcast %cst_17 : f32 to vector<256x1xf32>
    %41 = arith.maximumf %39, %40 : vector<256x1xf32>
    %42 = tpu.reciprocal %41 {approx = true} : vector<256x1xf32> -> vector<256x1xf32>
    %cst_18 = arith.constant 0.995999991 : f32
    %43 = vector.broadcast %cst_18 : f32 to vector<256x1xf32>
    %44 = arith.mulf %43, %42 : vector<256x1xf32>
    %cst_19 = arith.constant 1.000000e+00 : f32
    %45 = vector.broadcast %cst_19 : f32 to vector<256x1xf32>
    %46 = arith.minimumf %45, %44 : vector<256x1xf32>
    %cst_20 = arith.constant 1.000000e+00 : f32
    %47 = vector.broadcast %cst_20 : f32 to vector<256x1xf32>
    %48 = arith.mulf %33, %47 : vector<256x1xf32>
    %cst_21 = arith.constant 0.000000e+00 : f32
    %49 = vector.broadcast %cst_21 : f32 to vector<256x1xf32>
    %50 = arith.select %35, %48, %49 : vector<256x1xi1>, vector<256x1xf32>
    %51 = arith.mulf %50, %16 : vector<256x1xf32>
    %52 = arith.mulf %51, %46 : vector<256x1xf32>
    %53 = vector.broadcast %52 : vector<256x1xf32> to vector<256x128xf32>
    %54 = arith.mulf %10, %53 : vector<256x128xf32>
    %cst_22 = arith.constant 0.995999991 : f32
    %55 = vector.broadcast %cst_22 : f32 to vector<256x1xf32>
    %56 = arith.minimumf %39, %55 : vector<256x1xf32>
    %57 = arith.mulf %2, %2 : vector<1x128xf32>
    %cst_23 = arith.constant dense<0.000000e+00> : vector<1xf32>
    %58 = vector.multi_reduction <add>, %57, %cst_23 [1] : vector<1x128xf32> to vector<1xf32>
    %59 = vector.shape_cast %58 : vector<1xf32> to vector<1x1xf32>
    %60 = vector.broadcast %2 : vector<1x128xf32> to vector<256x128xf32>
    %61 = arith.mulf %54, %60 : vector<256x128xf32>
    %cst_24 = arith.constant dense<0.000000e+00> : vector<256xf32>
    %62 = vector.multi_reduction <add>, %61, %cst_24 [1] : vector<256x128xf32> to vector<256xf32>
    %63 = vector.shape_cast %62 : vector<256xf32> to vector<256x1xf32>
    %64 = arith.mulf %56, %56 : vector<256x1xf32>
    %cst_25 = arith.constant 2.000000e+00 : f32
    %65 = vector.broadcast %cst_25 : f32 to vector<256x1xf32>
    %66 = arith.mulf %65, %63 : vector<256x1xf32>
    %cst_26 = arith.constant 1.000000e+00 : f32
    %67 = vector.broadcast %cst_26 : f32 to vector<256x1xf32>
    %68 = arith.addf %67, %66 : vector<256x1xf32>
    %cst_27 = arith.constant 1.000000e+00 : f32
    %69 = vector.broadcast %cst_27 : f32 to vector<1x1xf32>
    %70 = arith.mulf %69, %59 : vector<1x1xf32>
    %71 = vector.broadcast %70 : vector<1x1xf32> to vector<256x1xf32>
    %72 = arith.addf %68, %71 : vector<256x1xf32>
    %cst_28 = arith.constant 1.000000e+00 : f32
    %73 = vector.broadcast %cst_28 : f32 to vector<256x1xf32>
    %74 = arith.mulf %73, %64 : vector<256x1xf32>
    %cst_29 = arith.constant 1.000000e+00 : f32
    %75 = vector.broadcast %cst_29 : f32 to vector<256x1xf32>
    %76 = arith.subf %75, %74 : vector<256x1xf32>
    %cst_30 = arith.constant 1.000000e+00 : f32
    %77 = vector.broadcast %cst_30 : f32 to vector<256x1xf32>
    %78 = arith.addf %77, %66 : vector<256x1xf32>
    %cst_31 = arith.constant 1.000000e+00 : f32
    %79 = vector.broadcast %cst_31 : f32 to vector<256x1xf32>
    %80 = arith.mulf %79, %64 : vector<256x1xf32>
    %81 = vector.broadcast %59 : vector<1x1xf32> to vector<256x1xf32>
    %82 = arith.mulf %80, %81 : vector<256x1xf32>
    %83 = arith.addf %78, %82 : vector<256x1xf32>
    %cst_32 = arith.constant 1.000000e-15 : f32
    %84 = vector.broadcast %cst_32 : f32 to vector<256x1xf32>
    %85 = arith.maximumf %83, %84 : vector<256x1xf32>
    %cst_33 = arith.constant 1.000000e+00 : f32
    %86 = vector.broadcast %cst_33 : f32 to vector<256x1xf32>
    %87 = arith.divf %86, %85 : vector<256x1xf32>
    %88 = arith.mulf %72, %87 : vector<256x1xf32>
    %89 = vector.broadcast %88 : vector<256x1xf32> to vector<256x128xf32>
    %90 = arith.mulf %89, %54 : vector<256x128xf32>
    %91 = arith.mulf %76, %87 : vector<256x1xf32>
    %92 = vector.broadcast %91 : vector<256x1xf32> to vector<256x128xf32>
    %93 = vector.broadcast %2 : vector<1x128xf32> to vector<256x128xf32>
    %94 = arith.mulf %92, %93 : vector<256x128xf32>
    %95 = arith.addf %90, %94 : vector<256x128xf32>
    %96 = arith.mulf %95, %95 : vector<256x128xf32>
    %cst_34 = arith.constant dense<0.000000e+00> : vector<256xf32>
    %97 = vector.multi_reduction <add>, %96, %cst_34 [1] : vector<256x128xf32> to vector<256xf32>
    %98 = vector.shape_cast %97 : vector<256xf32> to vector<256x1xf32>
    %cst_35 = arith.constant 1.000000e-30 : f32
    %99 = vector.broadcast %cst_35 : f32 to vector<256x1xf32>
    %100 = arith.maximumf %98, %99 : vector<256x1xf32>
    %101 = math.rsqrt %100 : vector<256x1xf32>
    %102 = arith.mulf %100, %101 : vector<256x1xf32>
    %cst_36 = arith.constant 0.995999991 : f32
    %103 = vector.broadcast %cst_36 : f32 to vector<256x1xf32>
    %104 = arith.mulf %103, %101 : vector<256x1xf32>
    %cst_37 = arith.constant 1.000000e+00 : f32
    %105 = vector.broadcast %cst_37 : f32 to vector<256x1xf32>
    %106 = arith.minimumf %105, %104 : vector<256x1xf32>
    %107 = vector.broadcast %106 : vector<256x1xf32> to vector<256x128xf32>
    %108 = arith.mulf %95, %107 : vector<256x128xf32>
    %cst_38 = arith.constant 0.995999991 : f32
    %109 = vector.broadcast %cst_38 : f32 to vector<256x1xf32>
    %110 = arith.minimumf %102, %109 : vector<256x1xf32>
    %cst_39 = arith.constant 1.000000e-15 : f32
    %111 = vector.broadcast %cst_39 : f32 to vector<256x1xf32>
    %112 = arith.maximumf %110, %111 : vector<256x1xf32>
    %cst_40 = arith.constant 1.000000e+00 : f32
    %113 = vector.broadcast %cst_40 : f32 to vector<256x1xf32>
    %114 = arith.mulf %113, %112 : vector<256x1xf32>
    %cst_41 = arith.constant -0.99999988 : f32
    %cst_42 = arith.constant 0.99999988 : f32
    %115 = vector.broadcast %cst_41 : f32 to vector<256x1xf32>
    %116 = arith.maximumf %115, %114 : vector<256x1xf32>
    %117 = vector.broadcast %cst_42 : f32 to vector<256x1xf32>
    %118 = arith.minimumf %117, %116 : vector<256x1xf32>
    %119 = math.log1p %118 : vector<256x1xf32>
    %cst_43 = arith.constant 0.000000e+00 : f32
    %120 = vector.broadcast %cst_43 : f32 to vector<256x1xf32>
    %121 = arith.subf %120, %118 : vector<256x1xf32>
    %122 = math.log1p %121 : vector<256x1xf32>
    %123 = arith.subf %119, %122 : vector<256x1xf32>
    %cst_44 = arith.constant 5.000000e-01 : f32
    %124 = vector.broadcast %cst_44 : f32 to vector<256x1xf32>
    %125 = arith.mulf %124, %123 : vector<256x1xf32>
    %cst_45 = arith.constant 1.000000e+00 : f32
    %126 = vector.broadcast %cst_45 : f32 to vector<256x1xf32>
    %127 = arith.mulf %126, %112 : vector<256x1xf32>
    %128 = arith.divf %125, %127 : vector<256x1xf32>
    %129 = vector.broadcast %128 : vector<256x1xf32> to vector<256x128xf32>
    %130 = arith.mulf %108, %129 : vector<256x128xf32>
    %cst_46 = arith.constant 0.000000e+00 : f32
    %131 = vector.broadcast %cst_46 : f32 to vector<256x128xf32>
    %132 = arith.maximumf %130, %131 : vector<256x128xf32>
    %133 = arith.mulf %132, %132 : vector<256x128xf32>
    %cst_47 = arith.constant dense<0.000000e+00> : vector<256xf32>
    %134 = vector.multi_reduction <add>, %133, %cst_47 [1] : vector<256x128xf32> to vector<256xf32>
    %135 = vector.shape_cast %134 : vector<256xf32> to vector<256x1xf32>
    %cst_48 = arith.constant 1.000000e-30 : f32
    %136 = vector.broadcast %cst_48 : f32 to vector<256x1xf32>
    %137 = arith.maximumf %135, %136 : vector<256x1xf32>
    %138 = math.rsqrt %137 : vector<256x1xf32>
    %139 = arith.mulf %137, %138 : vector<256x1xf32>
    %cst_49 = arith.constant 1.000000e+00 : f32
    %140 = vector.broadcast %cst_49 : f32 to vector<256x1xf32>
    %141 = arith.mulf %140, %139 : vector<256x1xf32>
    %142 = math.tanh %141 : vector<256x1xf32>
    %cst_50 = arith.constant 1.000000e+00 : f32
    %143 = vector.broadcast %cst_50 : f32 to vector<256x1xf32>
    %144 = arith.mulf %142, %143 : vector<256x1xf32>
    %cst_51 = arith.constant 1.000000e-15 : f32
    %145 = vector.broadcast %cst_51 : f32 to vector<256x1xf32>
    %146 = arith.maximumf %144, %145 : vector<256x1xf32>
    %147 = tpu.reciprocal %146 {approx = true} : vector<256x1xf32> -> vector<256x1xf32>
    %cst_52 = arith.constant 0.995999991 : f32
    %148 = vector.broadcast %cst_52 : f32 to vector<256x1xf32>
    %149 = arith.mulf %148, %147 : vector<256x1xf32>
    %cst_53 = arith.constant 1.000000e+00 : f32
    %150 = vector.broadcast %cst_53 : f32 to vector<256x1xf32>
    %151 = arith.minimumf %150, %149 : vector<256x1xf32>
    %cst_54 = arith.constant 1.000000e+00 : f32
    %152 = vector.broadcast %cst_54 : f32 to vector<256x1xf32>
    %153 = arith.mulf %142, %152 : vector<256x1xf32>
    %154 = arith.mulf %153, %138 : vector<256x1xf32>
    %155 = arith.mulf %154, %151 : vector<256x1xf32>
    %156 = vector.broadcast %155 : vector<256x1xf32> to vector<256x128xf32>
    %157 = arith.mulf %132, %156 : vector<256x128xf32>
    %c0_55 = arith.constant 0 : index
    %c0_56 = arith.constant 0 : index
    %158 = vector.load %arg4[%c0_55, %c0_56] : memref<256x128xf32, #tpu.memory_space<vmem>>, vector<256x128xf32>
    tpu.vector_store %arg4[%c0_55, %c0_56], %157 {strides = array<i32>} : memref<256x128xf32, #tpu.memory_space<vmem>>, vector<256x128xf32>,
    return
  }
  func.func @transform_0(%arg0: i32) -> (i32, i32) {
    %c0_i32 = arith.constant 0 : i32
    %c0_i32_0 = arith.constant 0 : i32
    return %arg0, %c0_i32 : i32, i32
  }
  func.func @transform_1(%arg0: i32) -> (i32, i32) {
    %c0_i32 = arith.constant 0 : i32
    %c0_i32_0 = arith.constant 0 : i32
    %c0_i32_1 = arith.constant 0 : i32
    return %c0_i32, %c0_i32_0 : i32, i32
  }
  func.func @transform_2(%arg0: i32) -> (i32, i32) {
    %c0_i32 = arith.constant 0 : i32
    %c0_i32_0 = arith.constant 0 : i32
    %c0_i32_1 = arith.constant 0 : i32
    return %c0_i32, %c0_i32_0 : i32, i32
  }
  func.func @transform_3(%arg0: i32) -> (i32, i32) {
    %c0_i32 = arith.constant 0 : i32
    %c0_i32_0 = arith.constant 0 : i32
    return %arg0, %c0_i32 : i32, i32
  }
}

</mosaic_0001>

<llo_original>
// kernel: tpu_custom_call.1
$region0: #{tpu_custom_call.1}
  #allocation0 [shape = 'u32[]', space=smem, size = 0x4, offset = 0x4, fixed_abs, tag = 'smem constant byte address 0x4 - core index']
  #allocation1 [shape = 'u32[144,128]{1,0:T(1,128)}', space=vmem, size = 0x12000, scoped, tag = 'internal scratch']
  %s0 = inlined_call_operand.vmem [shape: f32[512,32], index: 0, kind: input, shape index: {}]
  %s1 = inlined_call_operand.vmem [shape: f32[32,128], index: 1, kind: input, shape index: {}]
  %s2 = inlined_call_operand.vmem [shape: f32[1,128], index: 2, kind: input, shape index: {}]
  %s3 = inlined_call_operand.hbm [shape: f32[512,128], index: 3, kind: output, shape index: {}]
  %s4 = sld [smem:[#allocation0]]
  $region45: #{tpu_custom_call.1} parent=0
    _
  %s6 = ssub.s32 1, %s4
  %s7 = scalar_select 0, %s6, %s4
  $region1: #{tpu_custom_call.1} parent=0
    #allocation2 [shape = 'u8[262144]{0}', space=vmem, size = 0x40000, scoped, tag = 'output window, operand 0']
    #allocation3 [shape = 's32[2]{0}', space=sflag, size = 0x8, scoped, tag = 'scoped memory for tpu_custom_call.1']
    %8 = vsyncpa [#allocation3], 0
    %s9 = scalar_lea.sflag [#allocation3], 1
    %10 = vsyncpa %s9, 0
    loop: start=0, step=1, limit=4
    $region2: #{tpu_custom_call.1} parent=1 // loop_pre_header
      _
    $region3: #{tpu_custom_call.1} parent=1 // loop_header
      %s12 = sphi 0, %s16
      %p13 = scmp.ge.s32.totalorder %s12, 4
      %s22 = sphi 0, %s24
      %s25 = sphi 0, %s22
      %s26 = sphi 0, %s25
      %s42 = sphi 0, %s26
      %s46 = sphi 0, %s46
      %s48 = sphi 0, %s46
      %s49 = sphi 0, %s48
      %s63 = sphi 0, %s49
      %s67 = sphi 0, %s67
      %s69 = sphi 0, %s67
      %s70 = sphi 0, %s69
      %s84 = sphi 0, %s70
      %s90 = sphi 0, %s92
      %s93 = sphi 0, %s90
      %s94 = sphi 0, %s93
      %s110 = sphi 0, %s94
    $region4: #{tpu_custom_call.1} parent=1 // loop_header_branch
      %15 = sbr.rel (%p13) target = $region8
    $region5: #{tpu_custom_call.1} parent=1 // loop_body
      %s17 = ssub.s32 %s12, 1
      %s18 = ssub.s32 %s12, 2
      %s19 = sadd.s32 %s12, 1
      %s20 = ssub.s32 %s12, %s19
      %p21 = scmp.eq.s32.totalorder %s20, 0
      %s23 = sadd.s32 %s22, 1
      %s24 = scalar_select %p21, %s22, %s23
      %p27 = pneg %p21
      %p28 = scmp.eq.s32.totalorder %s12, 1
      %p29 = por %p27, %p28
      %p30 = scmp.ne.s32.totalorder %s22, %s25
      %p31 = scmp.eq.s32.totalorder %s12, 0
      %p32 = por %p30, %p31
      %p33 = scmp.ne.s32.totalorder %s22, %s25
      %p34 = scmp.eq.s32.totalorder %s17, 1
      %p35 = por %p33, %p34
      %p36 = scmp.ne.s32.totalorder %s25, %s26
      %p37 = scmp.eq.s32.totalorder %s17, 0
      %p38 = por %p36, %p37
      %p39 = scmp.ne.s32.totalorder %s25, %s26
      %p40 = scmp.eq.s32.totalorder %s18, 1
      %p41 = por %p39, %p40
      %p43 = scmp.ne.s32.totalorder %s26, %s42
      %p44 = scmp.eq.s32.totalorder %s18, 0
      %p45 = por %p43, %p44
      %s47 = sadd.s32 %s46, 1
      %p50 = scmp.eq.s32.totalorder %s12, 1
      %p51 = scmp.ne.s32.totalorder %s46, %s48
      %p52 = scmp.eq.s32.totalorder %s12, 0
      %p53 = por %p51, %p52
      %p54 = scmp.ne.s32.totalorder %s46, %s48
      %p55 = scmp.eq.s32.totalorder %s17, 1
      %p56 = por %p54, %p55
      %p57 = scmp.ne.s32.totalorder %s48, %s49
      %p58 = scmp.eq.s32.totalorder %s17, 0
      %p59 = por %p57, %p58
      %p60 = scmp.ne.s32.totalorder %s48, %s49
      %p61 = scmp.eq.s32.totalorder %s18, 1
      %p62 = por %p60, %p61
      %p64 = scmp.ne.s32.totalorder %s49, %s63
      %p65 = scmp.eq.s32.totalorder %s18, 0
      %p66 = por %p64, %p65
      %s68 = sadd.s32 %s67, 1
      %p71 = scmp.eq.s32.totalorder %s12, 1
      %p72 = scmp.ne.s32.totalorder %s67, %s69
      %p73 = scmp.eq.s32.totalorder %s12, 0
      %p74 = por %p72, %p73
      %p75 = scmp.ne.s32.totalorder %s67, %s69
      %p76 = scmp.eq.s32.totalorder %s17, 1
      %p77 = por %p75, %p76
      %p78 = scmp.ne.s32.totalorder %s69, %s70
      %p79 = scmp.eq.s32.totalorder %s17, 0
      %p80 = por %p78, %p79
      %p81 = scmp.ne.s32.totalorder %s69, %s70
      %p82 = scmp.eq.s32.totalorder %s18, 1
      %p83 = por %p81, %p82
      %p85 = scmp.ne.s32.totalorder %s70, %s84
      %p86 = scmp.eq.s32.totalorder %s18, 0
      %p87 = por %p85, %p86
      %s88 = ssub.s32 %s12, %s19
      %p89 = scmp.eq.s32.totalorder %s88, 0
      %s91 = sadd.s32 %s90, 1
      %s92 = scalar_select %p89, %s90, %s91
      %p95 = pneg %p89
      %p96 = scmp.eq.s32.totalorder %s12, 1
      %p97 = por %p95, %p96
      %p98 = scmp.ne.s32.totalorder %s90, %s93
      %p99 = scmp.eq.s32.totalorder %s12, 0
      %p100 = por %p98, %p99
      %p101 = scmp.ne.s32.totalorder %s90, %s93
      %p102 = scmp.eq.s32.totalorder %s17, 1
      %p103 = por %p101, %p102
      %p104 = scmp.ne.s32.totalorder %s93, %s94
      %p105 = scmp.eq.s32.totalorder %s17, 0
      %p106 = por %p104, %p105
      %p107 = scmp.ne.s32.totalorder %s93, %s94
      %p108 = scmp.eq.s32.totalorder %s18, 1
      %p109 = por %p107, %p108
      %p111 = scmp.ne.s32.totalorder %s94, %s110
      %p112 = scmp.eq.s32.totalorder %s18, 0
      %p113 = por %p111, %p112
      %p114 = scmp.le.s32.totalorder 1, %s12
      %p115 = scmp.lt.s32.totalorder %s12, 3
      %p116 = pnand %p114, %p115
      %p117 = pneg %p116
      // Predicated region
      $region9: #{tpu_custom_call.1} parent=5 // pred_check
        _
      $region10: #{tpu_custom_call.1} parent=5 // pred_check_branch
        %119 = sbr.rel (%p116) target = $region12
      $region11: #{tpu_custom_call.1} parent=5 // pred_region
        %s120 = ssub.s32 %s12, 1
        // Predicated region
        $region13: #{tpu_custom_call.1} parent=11 // pred_check
          %p121 = pneg %p59
        $region14: #{tpu_custom_call.1} parent=11 // pred_check_branch
          %123 = sbr.rel (%p121) target = $region16
        $region15: #{tpu_custom_call.1} parent=11 // pred_region
          _
        $region16: #{tpu_custom_call.1} parent=11 // pred_fallthru
          _
        // Predicated region
        $region17: #{tpu_custom_call.1} parent=11 // pred_check
          %p124 = pneg %p80
        $region18: #{tpu_custom_call.1} parent=11 // pred_check_branch
          %126 = sbr.rel (%p124) target = $region20
        $region19: #{tpu_custom_call.1} parent=11 // pred_region
          _
        $region20: #{tpu_custom_call.1} parent=11 // pred_fallthru
          _
      $region12: #{tpu_custom_call.1} parent=5 // pred_fallthru
        _
      %p127 = scmp.lt.s32.totalorder %s12, 2
      // Predicated region
      $region21: #{tpu_custom_call.1} parent=5 // pred_check
        %p128 = pneg %p127
      $region22: #{tpu_custom_call.1} parent=5 // pred_check_branch
        %130 = sbr.rel (%p128) target = $region24
      $region23: #{tpu_custom_call.1} parent=5 // pred_region
        // Predicated region
        $region25: #{tpu_custom_call.1} parent=23 // pred_check
          %p131 = pneg %p32
        $region26: #{tpu_custom_call.1} parent=23 // pred_check_branch
          %133 = sbr.rel (%p131) target = $region28
        $region27: #{tpu_custom_call.1} parent=23 // pred_region
          %s134 = smul.u32 32, %s12
          %p135 = scmp.lt.s32.totalorder %s134, 63
          %s136 = scalar_select %p135, %s134, 63
          %s137 = smul.addr %s136, 8
          %s138 = scalar_lea.vmem %s0, %s137
          %s139 = smul.u32 32, %s12
        $region28: #{tpu_custom_call.1} parent=23 // pred_fallthru
          _
      $region24: #{tpu_custom_call.1} parent=5 // pred_fallthru
        _
      %p140 = scmp.le.s32.totalorder 1, %s12
      %p141 = scmp.lt.s32.totalorder %s12, 3
      %p142 = pnand %p140, %p141
      %p143 = pneg %p142
      // Predicated region
      $region29: #{tpu_custom_call.1} parent=5 // pred_check
        _
      $region30: #{tpu_custom_call.1} parent=5 // pred_check_branch
        %145 = sbr.rel (%p142) target = $region32
      $region31: #{tpu_custom_call.1} parent=5 // pred_region
        %s146 = ssub.s32 %s12, 1
        %s147 = smul.u32 32, %s17
        %p148 = scmp.lt.s32.totalorder %s147, 63
        %s149 = scalar_select %p148, %s147, 63
        %s150 = smul.addr %s149, 8
        %s151 = scalar_lea.vmem %s0, %s150
        %p152 = pneg %p38
        %p153 = pneg %p35
        %p154 = pneg %p59
        %p155 = pneg %p56
        %p156 = pneg %p80
        %p157 = pneg %p77
        %p158 = pneg %p106
        %p159 = pneg %p103
        %s160 = sand.u32 %s93, 1
        %s161 = scalar_lea.sflag [#allocation3], %s160
        %s162 = sand.u32 %s93, 1
        %s163 = smul.addr %s162, 256
        %s164 = scalar_lea.vmem [#allocation2], %s163
        %s165 = smul.u32 32, %s17
        %p166 = scmp.lt.s32.totalorder %s165, 63
        %s167 = scalar_select %p166, %s165, 63
        %s168 = smul.addr %s167, 8
        %s169 = scalar_lea.vmem %s0, %s168
        %s170 = smul.u32 32, %s17
        %s171 = smul.u32 32, %s17
        %v172 = vld [vmem:[%s169] sm:$0xff]
        %v173 = vld [vmem:[%s169 + $0x8] sm:$0xff]
        %v174 = vld [vmem:[%s169 + $0x10] sm:$0xff]
        %v175 = vld [vmem:[%s169 + $0x18] sm:$0xff]
        %v176 = vld [vmem:[%s169 + $0x20] sm:$0xff]
        %v177 = vld [vmem:[%s169 + $0x28] sm:$0xff]
        %v178 = vld [vmem:[%s169 + $0x30] sm:$0xff]
        %v179 = vld [vmem:[%s169 + $0x38] sm:$0xff]
        %v180 = vld [vmem:[%s169 + $0x40] sm:$0xff]
        %v181 = vld [vmem:[%s169 + $0x48] sm:$0xff]
        %v182 = vld [vmem:[%s169 + $0x50] sm:$0xff]
        %v183 = vld [vmem:[%s169 + $0x58] sm:$0xff]
        %v184 = vld [vmem:[%s169 + $0x60] sm:$0xff]
        %v185 = vld [vmem:[%s169 + $0x68] sm:$0xff]
        %v186 = vld [vmem:[%s169 + $0x70] sm:$0xff]
        %v187 = vld [vmem:[%s169 + $0x78] sm:$0xff]
        %v188 = vld [vmem:[%s169 + $0x80] sm:$0xff]
        %v189 = vld [vmem:[%s169 + $0x88] sm:$0xff]
        %v190 = vld [vmem:[%s169 + $0x90] sm:$0xff]
        %v191 = vld [vmem:[%s169 + $0x98] sm:$0xff]
        %v192 = vld [vmem:[%s169 + $0xa0] sm:$0xff]
        %v193 = vld [vmem:[%s169 + $0xa8] sm:$0xff]
        %v194 = vld [vmem:[%s169 + $0xb0] sm:$0xff]
        %v195 = vld [vmem:[%s169 + $0xb8] sm:$0xff]
        %v196 = vld [vmem:[%s169 + $0xc0] sm:$0xff]
        %v197 = vld [vmem:[%s169 + $0xc8] sm:$0xff]
        %v198 = vld [vmem:[%s169 + $0xd0] sm:$0xff]
        %v199 = vld [vmem:[%s169 + $0xd8] sm:$0xff]
        %v200 = vld [vmem:[%s169 + $0xe0] sm:$0xff]
        %v201 = vld [vmem:[%s169 + $0xe8] sm:$0xff]
        %v202 = vld [vmem:[%s169 + $0xf0] sm:$0xff]
        %v203 = vld [vmem:[%s169 + $0xf8] sm:$0xff]
        %v204 = vld [vmem:[%s1] sm:$0xff]
        %v205 = vld [vmem:[%s1 + $0x8] sm:$0xff]
        %v206 = vld [vmem:[%s1 + $0x10] sm:$0xff]
        %v207 = vld [vmem:[%s1 + $0x18] sm:$0xff]
        %v208 = vld [vmem:[%s2] sm:$0x1]
        %v209 = vmul.f32 %v172, %v172
        %v210 = vmul.f32 %v173, %v173
        %v211 = vmul.f32 %v174, %v174
        %v212 = vmul.f32 %v175, %v175
        %v213 = vmul.f32 %v176, %v176
        %v214 = vmul.f32 %v177, %v177
        %v215 = vmul.f32 %v178, %v178
        %v216 = vmul.f32 %v179, %v179
        %v217 = vmul.f32 %v180, %v180
        %v218 = vmul.f32 %v181, %v181
        %v219 = vmul.f32 %v182, %v182
        %v220 = vmul.f32 %v183, %v183
        %v221 = vmul.f32 %v184, %v184
        %v222 = vmul.f32 %v185, %v185
        %v223 = vmul.f32 %v186, %v186
        %v224 = vmul.f32 %v187, %v187
        %v225 = vmul.f32 %v188, %v188
        %v226 = vmul.f32 %v189, %v189
        %v227 = vmul.f32 %v190, %v190
        %v228 = vmul.f32 %v191, %v191
        %v229 = vmul.f32 %v192, %v192
        %v230 = vmul.f32 %v193, %v193
        %v231 = vmul.f32 %v194, %v194
        %v232 = vmul.f32 %v195, %v195
        %v233 = vmul.f32 %v196, %v196
        %v234 = vmul.f32 %v197, %v197
        %v235 = vmul.f32 %v198, %v198
        %v236 = vmul.f32 %v199, %v199
        %v237 = vmul.f32 %v200, %v200
        %v238 = vmul.f32 %v201, %v201
        %v239 = vmul.f32 %v202, %v202
        %v240 = vmul.f32 %v203, %v203
        %vm241 = vcmask 261120
        %v242 = vsel %vm241, %v209, 0.0
        %243 = vadd.xlane.f32.xlu0 %v242
        %v244 = vpop.xlane.xlu0 %243
        %v245 = vsel %vm241, %v210, 0.0
        %246 = vadd.xlane.f32.xlu0 %v245
        %v247 = vpop.xlane.xlu0 %246
        %v248 = vsel %vm241, %v211, 0.0
        %249 = vadd.xlane.f32.xlu0 %v248
        %v250 = vpop.xlane.xlu0 %249
        %v251 = vsel %vm241, %v212, 0.0
        %252 = vadd.xlane.f32.xlu0 %v251
        %v253 = vpop.xlane.xlu0 %252
        %v254 = vsel %vm241, %v213, 0.0
        %255 = vadd.xlane.f32.xlu0 %v254
        %v256 = vpop.xlane.xlu0 %255
        %v257 = vsel %vm241, %v214, 0.0
        %258 = vadd.xlane.f32.xlu0 %v257
        %v259 = vpop.xlane.xlu0 %258
        %v260 = vsel %vm241, %v215, 0.0
        %261 = vadd.xlane.f32.xlu0 %v260
        %v262 = vpop.xlane.xlu0 %261
        %v263 = vsel %vm241, %v216, 0.0
        %264 = vadd.xlane.f32.xlu0 %v263
        %v265 = vpop.xlane.xlu0 %264
        %v266 = vsel %vm241, %v217, 0.0
        %267 = vadd.xlane.f32.xlu0 %v266
        %v268 = vpop.xlane.xlu0 %267
        %v269 = vsel %vm241, %v218, 0.0
        %270 = vadd.xlane.f32.xlu0 %v269
        %v271 = vpop.xlane.xlu0 %270
        %v272 = vsel %vm241, %v219, 0.0
        %273 = vadd.xlane.f32.xlu0 %v272
        %v274 = vpop.xlane.xlu0 %273
        %v275 = vsel %vm241, %v220, 0.0
        %276 = vadd.xlane.f32.xlu0 %v275
        %v277 = vpop.xlane.xlu0 %276
        %v278 = vsel %vm241, %v221, 0.0
        %279 = vadd.xlane.f32.xlu0 %v278
        %v280 = vpop.xlane.xlu0 %279
        %v281 = vsel %vm241, %v222, 0.0
        %282 = vadd.xlane.f32.xlu0 %v281
        %v283 = vpop.xlane.xlu0 %282
        %v284 = vsel %vm241, %v223, 0.0
        %285 = vadd.xlane.f32.xlu0 %v284
        %v286 = vpop.xlane.xlu0 %285
        %v287 = vsel %vm241, %v224, 0.0
        %288 = vadd.xlane.f32.xlu0 %v287
        %v289 = vpop.xlane.xlu0 %288
        %v290 = vsel %vm241, %v225, 0.0
        %291 = vadd.xlane.f32.xlu0 %v290
        %v292 = vpop.xlane.xlu0 %291
        %v293 = vsel %vm241, %v226, 0.0
        %294 = vadd.xlane.f32.xlu0 %v293
        %v295 = vpop.xlane.xlu0 %294
        %v296 = vsel %vm241, %v227, 0.0
        %297 = vadd.xlane.f32.xlu0 %v296
        %v298 = vpop.xlane.xlu0 %297
        %v299 = vsel %vm241, %v228, 0.0
        %300 = vadd.xlane.f32.xlu0 %v299
        %v301 = vpop.xlane.xlu0 %300
        %v302 = vsel %vm241, %v229, 0.0
        %303 = vadd.xlane.f32.xlu0 %v302
        %v304 = vpop.xlane.xlu0 %303
        %v305 = vsel %vm241, %v230, 0.0
        %306 = vadd.xlane.f32.xlu0 %v305
        %v307 = vpop.xlane.xlu0 %306
        %v308 = vsel %vm241, %v231, 0.0
        %309 = vadd.xlane.f32.xlu0 %v308
        %v310 = vpop.xlane.xlu0 %309
        %v311 = vsel %vm241, %v232, 0.0
        %312 = vadd.xlane.f32.xlu0 %v311
        %v313 = vpop.xlane.xlu0 %312
        %v314 = vsel %vm241, %v233, 0.0
        %315 = vadd.xlane.f32.xlu0 %v314
        %v316 = vpop.xlane.xlu0 %315
        %v317 = vsel %vm241, %v234, 0.0
        %318 = vadd.xlane.f32.xlu0 %v317
        %v319 = vpop.xlane.xlu0 %318
        %v320 = vsel %vm241, %v235, 0.0
        %321 = vadd.xlane.f32.xlu0 %v320
        %v322 = vpop.xlane.xlu0 %321
        %v323 = vsel %vm241, %v236, 0.0
        %324 = vadd.xlane.f32.xlu0 %v323
        %v325 = vpop.xlane.xlu0 %324
        %v326 = vsel %vm241, %v237, 0.0
        %327 = vadd.xlane.f32.xlu0 %v326
        %v328 = vpop.xlane.xlu0 %327
        %v329 = vsel %vm241, %v238, 0.0
        %330 = vadd.xlane.f32.xlu0 %v329
        %v331 = vpop.xlane.xlu0 %330
        %v332 = vsel %vm241, %v239, 0.0
        %333 = vadd.xlane.f32.xlu0 %v332
        %v334 = vpop.xlane.xlu0 %333
        %v335 = vsel %vm241, %v240, 0.0
        %336 = vadd.xlane.f32.xlu0 %v335
        %v337 = vpop.xlane.xlu0 %336
        %v338 = vmax.f32 %v244, 1e-30
        %v339 = vmax.f32 %v247, 1e-30
        %v340 = vmax.f32 %v250, 1e-30
        %v341 = vmax.f32 %v253, 1e-30
        %v342 = vmax.f32 %v256, 1e-30
        %v343 = vmax.f32 %v259, 1e-30
        %v344 = vmax.f32 %v262, 1e-30
        %v345 = vmax.f32 %v265, 1e-30
        %v346 = vmax.f32 %v268, 1e-30
        %v347 = vmax.f32 %v271, 1e-30
        %v348 = vmax.f32 %v274, 1e-30
        %v349 = vmax.f32 %v277, 1e-30
        %v350 = vmax.f32 %v280, 1e-30
        %v351 = vmax.f32 %v283, 1e-30
        %v352 = vmax.f32 %v286, 1e-30
        %v353 = vmax.f32 %v289, 1e-30
        %v354 = vmax.f32 %v292, 1e-30
        %v355 = vmax.f32 %v295, 1e-30
        %v356 = vmax.f32 %v298, 1e-30
        %v357 = vmax.f32 %v301, 1e-30
        %v358 = vmax.f32 %v304, 1e-30
        %v359 = vmax.f32 %v307, 1e-30
        %v360 = vmax.f32 %v310, 1e-30
        %v361 = vmax.f32 %v313, 1e-30
        %v362 = vmax.f32 %v316, 1e-30
        %v363 = vmax.f32 %v319, 1e-30
        %v364 = vmax.f32 %v322, 1e-30
        %v365 = vmax.f32 %v325, 1e-30
        %v366 = vmax.f32 %v328, 1e-30
        %v367 = vmax.f32 %v331, 1e-30
        %v368 = vmax.f32 %v334, 1e-30
        %v369 = vmax.f32 %v337, 1e-30
        %v370 = vrsqrt.pop %v338
        %v371 = vrsqrt.pop %v339
        %v372 = vrsqrt.pop %v340
        %v373 = vrsqrt.pop %v341
        %v374 = vrsqrt.pop %v342
        %v375 = vrsqrt.pop %v343
        %v376 = vrsqrt.pop %v344
        %v377 = vrsqrt.pop %v345
        %v378 = vrsqrt.pop %v346
        %v379 = vrsqrt.pop %v347
        %v380 = vrsqrt.pop %v348
        %v381 = vrsqrt.pop %v349
        %v382 = vrsqrt.pop %v350
        %v383 = vrsqrt.pop %v351
        %v384 = vrsqrt.pop %v352
        %v385 = vrsqrt.pop %v353
        %v386 = vrsqrt.pop %v354
        %v387 = vrsqrt.pop %v355
        %v388 = vrsqrt.pop %v356
        %v389 = vrsqrt.pop %v357
        %v390 = vrsqrt.pop %v358
        %v391 = vrsqrt.pop %v359
        %v392 = vrsqrt.pop %v360
        %v393 = vrsqrt.pop %v361
        %v394 = vrsqrt.pop %v362
        %v395 = vrsqrt.pop %v363
        %v396 = vrsqrt.pop %v364
        %v397 = vrsqrt.pop %v365
        %v398 = vrsqrt.pop %v366
        %v399 = vrsqrt.pop %v367
        %v400 = vrsqrt.pop %v368
        %v401 = vrsqrt.pop %v369
        %v402 = vmul.f32 %v338, %v370
        %v403 = vmul.f32 %v339, %v371
        %v404 = vmul.f32 %v340, %v372
        %v405 = vmul.f32 %v341, %v373
        %v406 = vmul.f32 %v342, %v374
        %v407 = vmul.f32 %v343, %v375
        %v408 = vmul.f32 %v344, %v376
        %v409 = vmul.f32 %v345, %v377
        %v410 = vmul.f32 %v346, %v378
        %v411 = vmul.f32 %v347, %v379
        %v412 = vmul.f32 %v348, %v380
        %v413 = vmul.f32 %v349, %v381
        %v414 = vmul.f32 %v350, %v382
        %v415 = vmul.f32 %v351, %v383
        %v416 = vmul.f32 %v352, %v384
        %v417 = vmul.f32 %v353, %v385
        %v418 = vmul.f32 %v354, %v386
        %v419 = vmul.f32 %v355, %v387
        %v420 = vmul.f32 %v356, %v388
        %v421 = vmul.f32 %v357, %v389
        %v422 = vmul.f32 %v358, %v390
        %v423 = vmul.f32 %v359, %v391
        %v424 = vmul.f32 %v360, %v392
        %v425 = vmul.f32 %v361, %v393
        %v426 = vmul.f32 %v362, %v394
        %v427 = vmul.f32 %v363, %v395
        %v428 = vmul.f32 %v364, %v396
        %v429 = vmul.f32 %v365, %v397
        %v430 = vmul.f32 %v366, %v398
        %v431 = vmul.f32 %v367, %v399
        %v432 = vmul.f32 %v368, %v400
        %v433 = vmul.f32 %v369, %v401
        %v435 = vsel %vm241, %v172, 0
        %v438 = vsel %vm241, %v173, 0
        %v441 = vsel %vm241, %v174, 0
        %v444 = vsel %vm241, %v175, 0
        %v447 = vsel %vm241, %v176, 0
        %v450 = vsel %vm241, %v177, 0
        %v453 = vsel %vm241, %v178, 0
        %v456 = vsel %vm241, %v179, 0
        %v459 = vsel %vm241, %v180, 0
        %v462 = vsel %vm241, %v181, 0
        %v465 = vsel %vm241, %v182, 0
        %v468 = vsel %vm241, %v183, 0
        %v471 = vsel %vm241, %v184, 0
        %v474 = vsel %vm241, %v185, 0
        %v477 = vsel %vm241, %v186, 0
        %v480 = vsel %vm241, %v187, 0
        %v483 = vsel %vm241, %v188, 0
        %v486 = vsel %vm241, %v189, 0
        %v489 = vsel %vm241, %v190, 0
        %v492 = vsel %vm241, %v191, 0
        %v495 = vsel %vm241, %v192, 0
        %v498 = vsel %vm241, %v193, 0
        %v501 = vsel %vm241, %v194, 0
        %v504 = vsel %vm241, %v195, 0
        %v507 = vsel %vm241, %v196, 0
        %v510 = vsel %vm241, %v197, 0
        %v513 = vsel %vm241, %v198, 0
        %v516 = vsel %vm241, %v199, 0
        %v519 = vsel %vm241, %v200, 0
        %v522 = vsel %vm241, %v201, 0
        %v525 = vsel %vm241, %v202, 0
        %v528 = vsel %vm241, %v203, 0
        %530 = vmatprep.subr.mxu0 0.0
        %531 = vmatpush1.msra.mxu0 %v204
        %532 = vmatprep.subr.mxu0 0.0
        %533 = vmatpush1.msra.mxu0 %v205
        %534 = vmatprep.subr.mxu0 0.0
        %535 = vmatpush1.msra.mxu0 %v206
        %536 = vmatprep.subr.mxu0 0.0
        %537 = vmatpush1.msra.mxu0 %v207
        %538 = vmatprep.subr.mxu0 0.0
        %539 = vmatpush1.msra.mxu0 0.0
        %540 = vmatprep.subr.mxu0 0.0
        %541 = vmatpush1.msra.mxu0 0.0
        %542 = vmatprep.subr.mxu0 0.0
        %543 = vmatpush1.msra.mxu0 0.0
        %544 = vmatprep.subr.mxu0 0.0
        %545 = vmatpush1.msra.mxu0 0.0
        %546 = vmatprep.subr.mxu0 0.0
        %547 = vmatpush1.msra.mxu0 0.0
        %548 = vmatprep.subr.mxu0 0.0
        %549 = vmatpush1.msra.mxu0 0.0
        %550 = vmatprep.subr.mxu0 0.0
        %551 = vmatpush1.msra.mxu0 0.0
        %552 = vmatprep.subr.mxu0 0.0
        %553 = vmatpush1.msra.mxu0 0.0
        %554 = vmatprep.subr.mxu0 0.0
        %555 = vmatpush1.msra.mxu0 0.0
        %556 = vmatprep.subr.mxu0 0.0
        %557 = vmatpush1.msra.mxu0 0.0
        %558 = vmatprep.subr.mxu0 0.0
        %559 = vmatpush1.msra.mxu0 0.0
        %560 = vmatprep.subr.mxu0 0.0
        %561 = vmatpush1.msra.mxu0 0.0
        %562 = vmatprep.subr.mxu0 0.0
        %563 = vmatpush1.msra.mxu0 0.0
        %564 = vmatprep.subr.mxu0 0.0
        %565 = vmatpush1.msra.mxu0 0.0
        %566 = vmatprep.subr.mxu0 0.0
        %567 = vmatpush1.msra.mxu0 0.0
        %568 = vmatprep.subr.mxu0 0.0
        %569 = vmatpush1.msra.mxu0 0.0
        %570 = vmatprep.subr.mxu0 0.0
        %571 = vmatpush1.msra.mxu0 0.0
        %572 = vmatprep.subr.mxu0 0.0
        %573 = vmatpush1.msra.mxu0 0.0
        %574 = vmatprep.subr.mxu0 0.0
        %575 = vmatpush1.msra.mxu0 0.0
        %576 = vmatprep.subr.mxu0 0.0
        %577 = vmatpush1.msra.mxu0 0.0
        %578 = vmatprep.subr.mxu0 0.0
        %579 = vmatpush1.msra.mxu0 0.0
        %580 = vmatprep.subr.mxu0 0.0
        %581 = vmatpush1.msra.mxu0 0.0
        %582 = vmatprep.subr.mxu0 0.0
        %583 = vmatpush1.msra.mxu0 0.0
        %584 = vmatprep.subr.mxu0 0.0
        %585 = vmatpush1.msra.mxu0 0.0
        %586 = vmatprep.subr.mxu0 0.0
        %587 = vmatpush1.msra.mxu0 0.0
        %588 = vmatprep.subr.mxu0 0.0
        %589 = vmatpush1.msra.mxu0 0.0
        %590 = vmatprep.subr.mxu0 0.0
        %591 = vmatpush1.msra.mxu0 0.0
        %592 = vmatprep.subr.mxu0 0.0
        %593 = vmatpush1.msra.mxu0 0.0
        %594 = vmatprep.mubr.f32.mxu0 0.0
        %595 = vmatmul.mubr.f32.gmra.mrb[0].mxu0 %v435
        %v596 = vpop.f32.mrb[0].mxu0
        %v597 = vadd.f32 0.0, %v596
        %v598 = vpop.f32.mrb[0].mxu0
        %599 = vmatprep.mubr.f32.mxu0 0.0
        %600 = vmatmul.mubr.f32.gmra.mrb[0].mxu0 %v438
        %v601 = vpop.f32.mrb[0].mxu0
        %v602 = vadd.f32 0.0, %v601
        %v603 = vpop.f32.mrb[0].mxu0
        %604 = vmatprep.mubr.f32.mxu0 0.0
        %605 = vmatmul.mubr.f32.gmra.mrb[0].mxu0 %v441
        %v606 = vpop.f32.mrb[0].mxu0
        %v607 = vadd.f32 0.0, %v606
        %v608 = vpop.f32.mrb[0].mxu0
        %609 = vmatprep.mubr.f32.mxu0 0.0
        %610 = vmatmul.mubr.f32.gmra.mrb[0].mxu0 %v444
        %v611 = vpop.f32.mrb[0].mxu0
        %v612 = vadd.f32 0.0, %v611
        %v613 = vpop.f32.mrb[0].mxu0
        %614 = vmatprep.mubr.f32.mxu0 0.0
        %615 = vmatmul.mubr.f32.gmra.mrb[0].mxu0 %v447
        %v616 = vpop.f32.mrb[0].mxu0
        %v617 = vadd.f32 0.0, %v616
        %v618 = vpop.f32.mrb[0].mxu0
        %619 = vmatprep.mubr.f32.mxu0 0.0
        %620 = vmatmul.mubr.f32.gmra.mrb[0].mxu0 %v450
        %v621 = vpop.f32.mrb[0].mxu0
        %v622 = vadd.f32 0.0, %v621
        %v623 = vpop.f32.mrb[0].mxu0
        %624 = vmatprep.mubr.f32.mxu0 0.0
        %625 = vmatmul.mubr.f32.gmra.mrb[0].mxu0 %v453
        %v626 = vpop.f32.mrb[0].mxu0
        %v627 = vadd.f32 0.0, %v626
        %v628 = vpop.f32.mrb[0].mxu0
        %629 = vmatprep.mubr.f32.mxu0 0.0
        %630 = vmatmul.mubr.f32.gmra.mrb[0].mxu0 %v456
        %v631 = vpop.f32.mrb[0].mxu0
        %v632 = vadd.f32 0.0, %v631
        %v633 = vpop.f32.mrb[0].mxu0
        %634 = vmatprep.mubr.f32.mxu0 0.0
        %635 = vmatmul.mubr.f32.gmra.mrb[0].mxu0 %v459
        %v636 = vpop.f32.mrb[0].mxu0
        %v637 = vadd.f32 0.0, %v636
        %v638 = vpop.f32.mrb[0].mxu0
        %639 = vmatprep.mubr.f32.mxu0 0.0
        %640 = vmatmul.mubr.f32.gmra.mrb[0].mxu0 %v462
        %v641 = vpop.f32.mrb[0].mxu0
        %v642 = vadd.f32 0.0, %v641
        %v643 = vpop.f32.mrb[0].mxu0
        %644 = vmatprep.mubr.f32.mxu0 0.0
        %645 = vmatmul.mubr.f32.gmra.mrb[0].mxu0 %v465
        %v646 = vpop.f32.mrb[0].mxu0
        %v647 = vadd.f32 0.0, %v646
        %v648 = vpop.f32.mrb[0].mxu0
        %649 = vmatprep.mubr.f32.mxu0 0.0
        %650 = vmatmul.mubr.f32.gmra.mrb[0].mxu0 %v468
        %v651 = vpop.f32.mrb[0].mxu0
        %v652 = vadd.f32 0.0, %v651
        %v653 = vpop.f32.mrb[0].mxu0
        %654 = vmatprep.mubr.f32.mxu0 0.0
        %655 = vmatmul.mubr.f32.gmra.mrb[0].mxu0 %v471
        %v656 = vpop.f32.mrb[0].mxu0
        %v657 = vadd.f32 0.0, %v656
        %v658 = vpop.f32.mrb[0].mxu0
        %659 = vmatprep.mubr.f32.mxu0 0.0
        %660 = vmatmul.mubr.f32.gmra.mrb[0].mxu0 %v474
        %v661 = vpop.f32.mrb[0].mxu0
        %v662 = vadd.f32 0.0, %v661
        %v663 = vpop.f32.mrb[0].mxu0
        %664 = vmatprep.mubr.f32.mxu0 0.0
        %665 = vmatmul.mubr.f32.gmra.mrb[0].mxu0 %v477
        %v666 = vpop.f32.mrb[0].mxu0
        %v667 = vadd.f32 0.0, %v666
        %v668 = vpop.f32.mrb[0].mxu0
        %669 = vmatprep.mubr.f32.mxu0 0.0
        %670 = vmatmul.mubr.f32.gmra.mrb[0].mxu0 %v480
        %v671 = vpop.f32.mrb[0].mxu0
        %v672 = vadd.f32 0.0, %v671
        %v673 = vpop.f32.mrb[0].mxu0
        %674 = vmatprep.mubr.f32.mxu0 0.0
        %675 = vmatmul.mubr.f32.gmra.mrb[0].mxu0 %v483
        %v676 = vpop.f32.mrb[0].mxu0
        %v677 = vadd.f32 0.0, %v676
        %v678 = vpop.f32.mrb[0].mxu0
        %679 = vmatprep.mubr.f32.mxu0 0.0
        %680 = vmatmul.mubr.f32.gmra.mrb[0].mxu0 %v486
        %v681 = vpop.f32.mrb[0].mxu0
        %v682 = vadd.f32 0.0, %v681
        %v683 = vpop.f32.mrb[0].mxu0
        %684 = vmatprep.mubr.f32.mxu0 0.0
        %685 = vmatmul.mubr.f32.gmra.mrb[0].mxu0 %v489
        %v686 = vpop.f32.mrb[0].mxu0
        %v687 = vadd.f32 0.0, %v686
        %v688 = vpop.f32.mrb[0].mxu0
        %689 = vmatprep.mubr.f32.mxu0 0.0
        %690 = vmatmul.mubr.f32.gmra.mrb[0].mxu0 %v492
        %v691 = vpop.f32.mrb[0].mxu0
        %v692 = vadd.f32 0.0, %v691
        %v693 = vpop.f32.mrb[0].mxu0
        %694 = vmatprep.mubr.f32.mxu0 0.0
        %695 = vmatmul.mubr.f32.gmra.mrb[0].mxu0 %v495
        %v696 = vpop.f32.mrb[0].mxu0
        %v697 = vadd.f32 0.0, %v696
        %v698 = vpop.f32.mrb[0].mxu0
        %699 = vmatprep.mubr.f32.mxu0 0.0
        %700 = vmatmul.mubr.f32.gmra.mrb[0].mxu0 %v498
        %v701 = vpop.f32.mrb[0].mxu0
        %v702 = vadd.f32 0.0, %v701
        %v703 = vpop.f32.mrb[0].mxu0
        %704 = vmatprep.mubr.f32.mxu0 0.0
        %705 = vmatmul.mubr.f32.gmra.mrb[0].mxu0 %v501
        %v706 = vpop.f32.mrb[0].mxu0
        %v707 = vadd.f32 0.0, %v706
        %v708 = vpop.f32.mrb[0].mxu0
        %709 = vmatprep.mubr.f32.mxu0 0.0
        %710 = vmatmul.mubr.f32.gmra.mrb[0].mxu0 %v504
        %v711 = vpop.f32.mrb[0].mxu0
        %v712 = vadd.f32 0.0, %v711
        %v713 = vpop.f32.mrb[0].mxu0
        %714 = vmatprep.mubr.f32.mxu0 0.0
        %715 = vmatmul.mubr.f32.gmra.mrb[0].mxu0 %v507
        %v716 = vpop.f32.mrb[0].mxu0
        %v717 = vadd.f32 0.0, %v716
        %v718 = vpop.f32.mrb[0].mxu0
        %719 = vmatprep.mubr.f32.mxu0 0.0
        %720 = vmatmul.mubr.f32.gmra.mrb[0].mxu0 %v510
        %v721 = vpop.f32.mrb[0].mxu0
        %v722 = vadd.f32 0.0, %v721
        %v723 = vpop.f32.mrb[0].mxu0
        %724 = vmatprep.mubr.f32.mxu0 0.0
        %725 = vmatmul.mubr.f32.gmra.mrb[0].mxu0 %v513
        %v726 = vpop.f32.mrb[0].mxu0
        %v727 = vadd.f32 0.0, %v726
        %v728 = vpop.f32.mrb[0].mxu0
        %729 = vmatprep.mubr.f32.mxu0 0.0
        %730 = vmatmul.mubr.f32.gmra.mrb[0].mxu0 %v516
        %v731 = vpop.f32.mrb[0].mxu0
        %v732 = vadd.f32 0.0, %v731
        %v733 = vpop.f32.mrb[0].mxu0
        %734 = vmatprep.mubr.f32.mxu0 0.0
        %735 = vmatmul.mubr.f32.gmra.mrb[0].mxu0 %v519
        %v736 = vpop.f32.mrb[0].mxu0
        %v737 = vadd.f32 0.0, %v736
        %v738 = vpop.f32.mrb[0].mxu0
        %739 = vmatprep.mubr.f32.mxu0 0.0
        %740 = vmatmul.mubr.f32.gmra.mrb[0].mxu0 %v522
        %v741 = vpop.f32.mrb[0].mxu0
        %v742 = vadd.f32 0.0, %v741
        %v743 = vpop.f32.mrb[0].mxu0
        %744 = vmatprep.mubr.f32.mxu0 0.0
        %745 = vmatmul.mubr.f32.gmra.mrb[0].mxu0 %v525
        %v746 = vpop.f32.mrb[0].mxu0
        %v747 = vadd.f32 0.0, %v746
        %v748 = vpop.f32.mrb[0].mxu0
        %749 = vmatprep.mubr.f32.mxu0 0.0
        %750 = vmatmul.mubr.f32.gmra.mrb[0].mxu0 %v528
        %v751 = vpop.f32.mrb[0].mxu0
        %v752 = vadd.f32 0.0, %v751
        %v753 = vpop.f32.mrb[0].mxu0
        %754 = vdwg.mxu0
        %v755 = vmul.f32 %v597, %v597
        %v756 = vmul.f32 %v602, %v602
        %v757 = vmul.f32 %v607, %v607
        %v758 = vmul.f32 %v612, %v612
        %v759 = vmul.f32 %v617, %v617
        %v760 = vmul.f32 %v622, %v622
        %v761 = vmul.f32 %v627, %v627
        %v762 = vmul.f32 %v632, %v632
        %v763 = vmul.f32 %v637, %v637
        %v764 = vmul.f32 %v642, %v642
        %v765 = vmul.f32 %v647, %v647
        %v766 = vmul.f32 %v652, %v652
        %v767 = vmul.f32 %v657, %v657
        %v768 = vmul.f32 %v662, %v662
        %v769 = vmul.f32 %v667, %v667
        %v770 = vmul.f32 %v672, %v672
        %v771 = vmul.f32 %v677, %v677
        %v772 = vmul.f32 %v682, %v682
        %v773 = vmul.f32 %v687, %v687
        %v774 = vmul.f32 %v692, %v692
        %v775 = vmul.f32 %v697, %v697
        %v776 = vmul.f32 %v702, %v702
        %v777 = vmul.f32 %v707, %v707
        %v778 = vmul.f32 %v712, %v712
        %v779 = vmul.f32 %v717, %v717
        %v780 = vmul.f32 %v722, %v722
        %v781 = vmul.f32 %v727, %v727
        %v782 = vmul.f32 %v732, %v732
        %v783 = vmul.f32 %v737, %v737
        %v784 = vmul.f32 %v742, %v742
        %v785 = vmul.f32 %v747, %v747
        %v786 = vmul.f32 %v752, %v752
        %787 = vadd.xlane.f32.xlu0 %v755
        %v788 = vpop.xlane.xlu0 %787
        %789 = vadd.xlane.f32.xlu0 %v756
        %v790 = vpop.xlane.xlu0 %789
        %791 = vadd.xlane.f32.xlu0 %v757
        %v792 = vpop.xlane.xlu0 %791
        %793 = vadd.xlane.f32.xlu0 %v758
        %v794 = vpop.xlane.xlu0 %793
        %795 = vadd.xlane.f32.xlu0 %v759
        %v796 = vpop.xlane.xlu0 %795
        %797 = vadd.xlane.f32.xlu0 %v760
        %v798 = vpop.xlane.xlu0 %797
        %799 = vadd.xlane.f32.xlu0 %v761
        %v800 = vpop.xlane.xlu0 %799
        %801 = vadd.xlane.f32.xlu0 %v762
        %v802 = vpop.xlane.xlu0 %801
        %803 = vadd.xlane.f32.xlu0 %v763
        %v804 = vpop.xlane.xlu0 %803
        %805 = vadd.xlane.f32.xlu0 %v764
        %v806 = vpop.xlane.xlu0 %805
        %807 = vadd.xlane.f32.xlu0 %v765
        %v808 = vpop.xlane.xlu0 %807
        %809 = vadd.xlane.f32.xlu0 %v766
        %v810 = vpop.xlane.xlu0 %809
        %811 = vadd.xlane.f32.xlu0 %v767
        %v812 = vpop.xlane.xlu0 %811
        %813 = vadd.xlane.f32.xlu0 %v768
        %v814 = vpop.xlane.xlu0 %813
        %815 = vadd.xlane.f32.xlu0 %v769
        %v816 = vpop.xlane.xlu0 %815
        %817 = vadd.xlane.f32.xlu0 %v770
        %v818 = vpop.xlane.xlu0 %817
        %819 = vadd.xlane.f32.xlu0 %v771
        %v820 = vpop.xlane.xlu0 %819
        %821 = vadd.xlane.f32.xlu0 %v772
        %v822 = vpop.xlane.xlu0 %821
        %823 = vadd.xlane.f32.xlu0 %v773
        %v824 = vpop.xlane.xlu0 %823
        %825 = vadd.xlane.f32.xlu0 %v774
        %v826 = vpop.xlane.xlu0 %825
        %827 = vadd.xlane.f32.xlu0 %v775
        %v828 = vpop.xlane.xlu0 %827
        %829 = vadd.xlane.f32.xlu0 %v776
        %v830 = vpop.xlane.xlu0 %829
        %831 = vadd.xlane.f32.xlu0 %v777
        %v832 = vpop.xlane.xlu0 %831
        %833 = vadd.xlane.f32.xlu0 %v778
        %v834 = vpop.xlane.xlu0 %833
        %835 = vadd.xlane.f32.xlu0 %v779
        %v836 = vpop.xlane.xlu0 %835
        %837 = vadd.xlane.f32.xlu0 %v780
        %v838 = vpop.xlane.xlu0 %837
        %839 = vadd.xlane.f32.xlu0 %v781
        %v840 = vpop.xlane.xlu0 %839
        %841 = vadd.xlane.f32.xlu0 %v782
        %v842 = vpop.xlane.xlu0 %841
        %843 = vadd.xlane.f32.xlu0 %v783
        %v844 = vpop.xlane.xlu0 %843
        %845 = vadd.xlane.f32.xlu0 %v784
        %v846 = vpop.xlane.xlu0 %845
        %847 = vadd.xlane.f32.xlu0 %v785
        %v848 = vpop.xlane.xlu0 %847
        %849 = vadd.xlane.f32.xlu0 %v786
        %v850 = vpop.xlane.xlu0 %849
        %v851 = vmax.f32 %v788, 1e-30
        %v852 = vmax.f32 %v790, 1e-30
        %v853 = vmax.f32 %v792, 1e-30
        %v854 = vmax.f32 %v794, 1e-30
        %v855 = vmax.f32 %v796, 1e-30
        %v856 = vmax.f32 %v798, 1e-30
        %v857 = vmax.f32 %v800, 1e-30
        %v858 = vmax.f32 %v802, 1e-30
        %v859 = vmax.f32 %v804, 1e-30
        %v860 = vmax.f32 %v806, 1e-30
        %v861 = vmax.f32 %v808, 1e-30
        %v862 = vmax.f32 %v810, 1e-30
        %v863 = vmax.f32 %v812, 1e-30
        %v864 = vmax.f32 %v814, 1e-30
        %v865 = vmax.f32 %v816, 1e-30
        %v866 = vmax.f32 %v818, 1e-30
        %v867 = vmax.f32 %v820, 1e-30
        %v868 = vmax.f32 %v822, 1e-30
        %v869 = vmax.f32 %v824, 1e-30
        %v870 = vmax.f32 %v826, 1e-30
        %v871 = vmax.f32 %v828, 1e-30
        %v872 = vmax.f32 %v830, 1e-30
        %v873 = vmax.f32 %v832, 1e-30
        %v874 = vmax.f32 %v834, 1e-30
        %v875 = vmax.f32 %v836, 1e-30
        %v876 = vmax.f32 %v838, 1e-30
        %v877 = vmax.f32 %v840, 1e-30
        %v878 = vmax.f32 %v842, 1e-30
        %v879 = vmax.f32 %v844, 1e-30
        %v880 = vmax.f32 %v846, 1e-30
        %v881 = vmax.f32 %v848, 1e-30
        %v882 = vmax.f32 %v850, 1e-30
        %v883 = vrsqrt.pop %v851
        %v884 = vrsqrt.pop %v852
        %v885 = vrsqrt.pop %v853
        %v886 = vrsqrt.pop %v854
        %v887 = vrsqrt.pop %v855
        %v888 = vrsqrt.pop %v856
        %v889 = vrsqrt.pop %v857
        %v890 = vrsqrt.pop %v858
        %v891 = vrsqrt.pop %v859
        %v892 = vrsqrt.pop %v860
        %v893 = vrsqrt.pop %v861
        %v894 = vrsqrt.pop %v862
        %v895 = vrsqrt.pop %v863
        %v896 = vrsqrt.pop %v864
        %v897 = vrsqrt.pop %v865
        %v898 = vrsqrt.pop %v866
        %v899 = vrsqrt.pop %v867
        %v900 = vrsqrt.pop %v868
        %v901 = vrsqrt.pop %v869
        %v902 = vrsqrt.pop %v870
        %v903 = vrsqrt.pop %v871
        %v904 = vrsqrt.pop %v872
        %v905 = vrsqrt.pop %v873
        %v906 = vrsqrt.pop %v874
        %v907 = vrsqrt.pop %v875
        %v908 = vrsqrt.pop %v876
        %v909 = vrsqrt.pop %v877
        %v910 = vrsqrt.pop %v878
        %v911 = vrsqrt.pop %v879
        %v912 = vrsqrt.pop %v880
        %v913 = vrsqrt.pop %v881
        %v914 = vrsqrt.pop %v882
        %v915 = vmul.f32 %v851, %v883
        %v916 = vmul.f32 %v852, %v884
        %v917 = vmul.f32 %v853, %v885
        %v918 = vmul.f32 %v854, %v886
        %v919 = vmul.f32 %v855, %v887
        %v920 = vmul.f32 %v856, %v888
        %v921 = vmul.f32 %v857, %v889
        %v922 = vmul.f32 %v858, %v890
        %v923 = vmul.f32 %v859, %v891
        %v924 = vmul.f32 %v860, %v892
        %v925 = vmul.f32 %v861, %v893
        %v926 = vmul.f32 %v862, %v894
        %v927 = vmul.f32 %v863, %v895
        %v928 = vmul.f32 %v864, %v896
        %v929 = vmul.f32 %v865, %v897
        %v930 = vmul.f32 %v866, %v898
        %v931 = vmul.f32 %v867, %v899
        %v932 = vmul.f32 %v868, %v900
        %v933 = vmul.f32 %v869, %v901
        %v934 = vmul.f32 %v870, %v902
        %v935 = vmul.f32 %v871, %v903
        %v936 = vmul.f32 %v872, %v904
        %v937 = vmul.f32 %v873, %v905
        %v938 = vmul.f32 %v874, %v906
        %v939 = vmul.f32 %v875, %v907
        %v940 = vmul.f32 %v876, %v908
        %v941 = vmul.f32 %v877, %v909
        %v942 = vmul.f32 %v878, %v910
        %v943 = vmul.f32 %v879, %v911
        %v944 = vmul.f32 %v880, %v912
        %v945 = vmul.f32 %v881, %v913
        %v946 = vmul.f32 %v882, %v914
        %v947 = vmul.f32 %v915, %v370
        %v948 = vmul.f32 %v916, %v371
        %v949 = vmul.f32 %v917, %v372
        %v950 = vmul.f32 %v918, %v373
        %v951 = vmul.f32 %v919, %v374
        %v952 = vmul.f32 %v920, %v375
        %v953 = vmul.f32 %v921, %v376
        %v954 = vmul.f32 %v922, %v377
        %v955 = vmul.f32 %v923, %v378
        %v956 = vmul.f32 %v924, %v379
        %v957 = vmul.f32 %v925, %v380
        %v958 = vmul.f32 %v926, %v381
        %v959 = vmul.f32 %v927, %v382
        %v960 = vmul.f32 %v928, %v383
        %v961 = vmul.f32 %v929, %v384
        %v962 = vmul.f32 %v930, %v385
        %v963 = vmul.f32 %v931, %v386
        %v964 = vmul.f32 %v932, %v387
        %v965 = vmul.f32 %v933, %v388
        %v966 = vmul.f32 %v934, %v389
        %v967 = vmul.f32 %v935, %v390
        %v968 = vmul.f32 %v936, %v391
        %v969 = vmul.f32 %v937, %v392
        %v970 = vmul.f32 %v938, %v393
        %v971 = vmul.f32 %v939, %v394
        %v972 = vmul.f32 %v940, %v395
        %v973 = vmul.f32 %v941, %v396
        %v974 = vmul.f32 %v942, %v397
        %v975 = vmul.f32 %v943, %v398
        %v976 = vmul.f32 %v944, %v399
        %v977 = vmul.f32 %v945, %v400
        %v978 = vmul.f32 %v946, %v401
        %v979 = vmax.f32 %v402, -0.9999999
        %v980 = vmax.f32 %v403, -0.9999999
        %v981 = vmax.f32 %v404, -0.9999999
        %v982 = vmax.f32 %v405, -0.9999999
        %v983 = vmax.f32 %v406, -0.9999999
        %v984 = vmax.f32 %v407, -0.9999999
        %v985 = vmax.f32 %v408, -0.9999999
        %v986 = vmax.f32 %v409, -0.9999999
        %v987 = vmax.f32 %v410, -0.9999999
        %v988 = vmax.f32 %v411, -0.9999999
        %v989 = vmax.f32 %v412, -0.9999999
        %v990 = vmax.f32 %v413, -0.9999999
        %v991 = vmax.f32 %v414, -0.9999999
        %v992 = vmax.f32 %v415, -0.9999999
        %v993 = vmax.f32 %v416, -0.9999999
        %v994 = vmax.f32 %v417, -0.9999999
        %v995 = vmax.f32 %v418, -0.9999999
        %v996 = vmax.f32 %v419, -0.9999999
        %v997 = vmax.f32 %v420, -0.9999999
        %v998 = vmax.f32 %v421, -0.9999999
        %v999 = vmax.f32 %v422, -0.9999999
        %v1000 = vmax.f32 %v423, -0.9999999
        %v1001 = vmax.f32 %v424, -0.9999999
        %v1002 = vmax.f32 %v425, -0.9999999
        %v1003 = vmax.f32 %v426, -0.9999999
        %v1004 = vmax.f32 %v427, -0.9999999
        %v1005 = vmax.f32 %v428, -0.9999999
        %v1006 = vmax.f32 %v429, -0.9999999
        %v1007 = vmax.f32 %v430, -0.9999999
        %v1008 = vmax.f32 %v431, -0.9999999
        %v1009 = vmax.f32 %v432, -0.9999999
        %v1010 = vmax.f32 %v433, -0.9999999
        %v1011 = vmin.f32 %v979, 0.9999999
        %v1012 = vmin.f32 %v980, 0.9999999
        %v1013 = vmin.f32 %v981, 0.9999999
        %v1014 = vmin.f32 %v982, 0.9999999
        %v1015 = vmin.f32 %v983, 0.9999999
        %v1016 = vmin.f32 %v984, 0.9999999
        %v1017 = vmin.f32 %v985, 0.9999999
        %v1018 = vmin.f32 %v986, 0.9999999
        %v1019 = vmin.f32 %v987, 0.9999999
        %v1020 = vmin.f32 %v988, 0.9999999
        %v1021 = vmin.f32 %v989, 0.9999999
        %v1022 = vmin.f32 %v990, 0.9999999
        %v1023 = vmin.f32 %v991, 0.9999999
        %v1024 = vmin.f32 %v992, 0.9999999
        %v1025 = vmin.f32 %v993, 0.9999999
        %v1026 = vmin.f32 %v994, 0.9999999
        %v1027 = vmin.f32 %v995, 0.9999999
        %v1028 = vmin.f32 %v996, 0.9999999
        %v1029 = vmin.f32 %v997, 0.9999999
        %v1030 = vmin.f32 %v998, 0.9999999
        %v1031 = vmin.f32 %v999, 0.9999999
        %v1032 = vmin.f32 %v1000, 0.9999999
        %v1033 = vmin.f32 %v1001, 0.9999999
        %v1034 = vmin.f32 %v1002, 0.9999999
        %v1035 = vmin.f32 %v1003, 0.9999999
        %v1036 = vmin.f32 %v1004, 0.9999999
        %v1037 = vmin.f32 %v1005, 0.9999999
        %v1038 = vmin.f32 %v1006, 0.9999999
        %v1039 = vmin.f32 %v1007, 0.9999999
        %v1040 = vmin.f32 %v1008, 0.9999999
        %v1041 = vmin.f32 %v1009, 0.9999999
        %v1042 = vmin.f32 %v1010, 0.9999999
        %v1043 = vadd.f32 %v1011, 1.0
        %v1044 = vlog2.pop %v1043
        %v1045 = vmul.f32 %v1044, 0.6931472
        %v1046 = vmul.f32 -0.5, %v1011
        %v1047 = vadd.f32 %v1046, 1.0
        %v1048 = vmul.f32 %v1047, %v1011
        %v1049 = vand.u32 2147483647, %v1011
        %vm1050 = vcmp.lt.f32.partialorder %v1049, 0.0004427343
        %v1051 = vsel %vm1050, %v1048, %v1045
        %v1052 = vadd.f32 %v1012, 1.0
        %v1053 = vlog2.pop %v1052
        %v1054 = vmul.f32 %v1053, 0.6931472
        %v1055 = vmul.f32 -0.5, %v1012
        %v1056 = vadd.f32 %v1055, 1.0
        %v1057 = vmul.f32 %v1056, %v1012
        %v1058 = vand.u32 2147483647, %v1012
        %vm1059 = vcmp.lt.f32.partialorder %v1058, 0.0004427343
        %v1060 = vsel %vm1059, %v1057, %v1054
        %v1061 = vadd.f32 %v1013, 1.0
        %v1062 = vlog2.pop %v1061
        %v1063 = vmul.f32 %v1062, 0.6931472
        %v1064 = vmul.f32 -0.5, %v1013
        %v1065 = vadd.f32 %v1064, 1.0
        %v1066 = vmul.f32 %v1065, %v1013
        %v1067 = vand.u32 2147483647, %v1013
        %vm1068 = vcmp.lt.f32.partialorder %v1067, 0.0004427343
        %v1069 = vsel %vm1068, %v1066, %v1063
        %v1070 = vadd.f32 %v1014, 1.0
        %v1071 = vlog2.pop %v1070
        %v1072 = vmul.f32 %v1071, 0.6931472
        %v1073 = vmul.f32 -0.5, %v1014
        %v1074 = vadd.f32 %v1073, 1.0
        %v1075 = vmul.f32 %v1074, %v1014
        %v1076 = vand.u32 2147483647, %v1014
        %vm1077 = vcmp.lt.f32.partialorder %v1076, 0.0004427343
        %v1078 = vsel %vm1077, %v1075, %v1072
        %v1079 = vadd.f32 %v1015, 1.0
        %v1080 = vlog2.pop %v1079
        %v1081 = vmul.f32 %v1080, 0.6931472
        %v1082 = vmul.f32 -0.5, %v1015
        %v1083 = vadd.f32 %v1082, 1.0
        %v1084 = vmul.f32 %v1083, %v1015
        %v1085 = vand.u32 2147483647, %v1015
        %vm1086 = vcmp.lt.f32.partialorder %v1085, 0.0004427343
        %v1087 = vsel %vm1086, %v1084, %v1081
        %v1088 = vadd.f32 %v1016, 1.0
        %v1089 = vlog2.pop %v1088
        %v1090 = vmul.f32 %v1089, 0.6931472
        %v1091 = vmul.f32 -0.5, %v1016
        %v1092 = vadd.f32 %v1091, 1.0
        %v1093 = vmul.f32 %v1092, %v1016
        %v1094 = vand.u32 2147483647, %v1016
        %vm1095 = vcmp.lt.f32.partialorder %v1094, 0.0004427343
        %v1096 = vsel %vm1095, %v1093, %v1090
        %v1097 = vadd.f32 %v1017, 1.0
        %v1098 = vlog2.pop %v1097
        %v1099 = vmul.f32 %v1098, 0.6931472
        %v1100 = vmul.f32 -0.5, %v1017
        %v1101 = vadd.f32 %v1100, 1.0
        %v1102 = vmul.f32 %v1101, %v1017
        %v1103 = vand.u32 2147483647, %v1017
        %vm1104 = vcmp.lt.f32.partialorder %v1103, 0.0004427343
        %v1105 = vsel %vm1104, %v1102, %v1099
        %v1106 = vadd.f32 %v1018, 1.0
        %v1107 = vlog2.pop %v1106
        %v1108 = vmul.f32 %v1107, 0.6931472
        %v1109 = vmul.f32 -0.5, %v1018
        %v1110 = vadd.f32 %v1109, 1.0
        %v1111 = vmul.f32 %v1110, %v1018
        %v1112 = vand.u32 2147483647, %v1018
        %vm1113 = vcmp.lt.f32.partialorder %v1112, 0.0004427343
        %v1114 = vsel %vm1113, %v1111, %v1108
        %v1115 = vadd.f32 %v1019, 1.0
        %v1116 = vlog2.pop %v1115
        %v1117 = vmul.f32 %v1116, 0.6931472
        %v1118 = vmul.f32 -0.5, %v1019
        %v1119 = vadd.f32 %v1118, 1.0
        %v1120 = vmul.f32 %v1119, %v1019
        %v1121 = vand.u32 2147483647, %v1019
        %vm1122 = vcmp.lt.f32.partialorder %v1121, 0.0004427343
        %v1123 = vsel %vm1122, %v1120, %v1117
        %v1124 = vadd.f32 %v1020, 1.0
        %v1125 = vlog2.pop %v1124
        %v1126 = vmul.f32 %v1125, 0.6931472
        %v1127 = vmul.f32 -0.5, %v1020
        %v1128 = vadd.f32 %v1127, 1.0
        %v1129 = vmul.f32 %v1128, %v1020
        %v1130 = vand.u32 2147483647, %v1020
        %vm1131 = vcmp.lt.f32.partialorder %v1130, 0.0004427343
        %v1132 = vsel %vm1131, %v1129, %v1126
        %v1133 = vadd.f32 %v1021, 1.0
        %v1134 = vlog2.pop %v1133
        %v1135 = vmul.f32 %v1134, 0.6931472
        %v1136 = vmul.f32 -0.5, %v1021
        %v1137 = vadd.f32 %v1136, 1.0
        %v1138 = vmul.f32 %v1137, %v1021
        %v1139 = vand.u32 2147483647, %v1021
        %vm1140 = vcmp.lt.f32.partialorder %v1139, 0.0004427343
        %v1141 = vsel %vm1140, %v1138, %v1135
        %v1142 = vadd.f32 %v1022, 1.0
        %v1143 = vlog2.pop %v1142
        %v1144 = vmul.f32 %v1143, 0.6931472
        %v1145 = vmul.f32 -0.5, %v1022
        %v1146 = vadd.f32 %v1145, 1.0
        %v1147 = vmul.f32 %v1146, %v1022
        %v1148 = vand.u32 2147483647, %v1022
        %vm1149 = vcmp.lt.f32.partialorder %v1148, 0.0004427343
        %v1150 = vsel %vm1149, %v1147, %v1144
        %v1151 = vadd.f32 %v1023, 1.0
        %v1152 = vlog2.pop %v1151
        %v1153 = vmul.f32 %v1152, 0.6931472
        %v1154 = vmul.f32 -0.5, %v1023
        %v1155 = vadd.f32 %v1154, 1.0
        %v1156 = vmul.f32 %v1155, %v1023
        %v1157 = vand.u32 2147483647, %v1023
        %vm1158 = vcmp.lt.f32.partialorder %v1157, 0.0004427343
        %v1159 = vsel %vm1158, %v1156, %v1153
        %v1160 = vadd.f32 %v1024, 1.0
        %v1161 = vlog2.pop %v1160
        %v1162 = vmul.f32 %v1161, 0.6931472
        %v1163 = vmul.f32 -0.5, %v1024
        %v1164 = vadd.f32 %v1163, 1.0
        %v1165 = vmul.f32 %v1164, %v1024
        %v1166 = vand.u32 2147483647, %v1024
        %vm1167 = vcmp.lt.f32.partialorder %v1166, 0.0004427343
        %v1168 = vsel %vm1167, %v1165, %v1162
        %v1169 = vadd.f32 %v1025, 1.0
        %v1170 = vlog2.pop %v1169
        %v1171 = vmul.f32 %v1170, 0.6931472
        %v1172 = vmul.f32 -0.5, %v1025
        %v1173 = vadd.f32 %v1172, 1.0
        %v1174 = vmul.f32 %v1173, %v1025
        %v1175 = vand.u32 2147483647, %v1025
        %vm1176 = vcmp.lt.f32.partialorder %v1175, 0.0004427343
        %v1177 = vsel %vm1176, %v1174, %v1171
        %v1178 = vadd.f32 %v1026, 1.0
        %v1179 = vlog2.pop %v1178
        %v1180 = vmul.f32 %v1179, 0.6931472
        %v1181 = vmul.f32 -0.5, %v1026
        %v1182 = vadd.f32 %v1181, 1.0
        %v1183 = vmul.f32 %v1182, %v1026
        %v1184 = vand.u32 2147483647, %v1026
        %vm1185 = vcmp.lt.f32.partialorder %v1184, 0.0004427343
        %v1186 = vsel %vm1185, %v1183, %v1180
        %v1187 = vadd.f32 %v1027, 1.0
        %v1188 = vlog2.pop %v1187
        %v1189 = vmul.f32 %v1188, 0.6931472
        %v1190 = vmul.f32 -0.5, %v1027
        %v1191 = vadd.f32 %v1190, 1.0
        %v1192 = vmul.f32 %v1191, %v1027
        %v1193 = vand.u32 2147483647, %v1027
        %vm1194 = vcmp.lt.f32.partialorder %v1193, 0.0004427343
        %v1195 = vsel %vm1194, %v1192, %v1189
        %v1196 = vadd.f32 %v1028, 1.0
        %v1197 = vlog2.pop %v1196
        %v1198 = vmul.f32 %v1197, 0.6931472
        %v1199 = vmul.f32 -0.5, %v1028
        %v1200 = vadd.f32 %v1199, 1.0
        %v1201 = vmul.f32 %v1200, %v1028
        %v1202 = vand.u32 2147483647, %v1028
        %vm1203 = vcmp.lt.f32.partialorder %v1202, 0.0004427343
        %v1204 = vsel %vm1203, %v1201, %v1198
        %v1205 = vadd.f32 %v1029, 1.0
        %v1206 = vlog2.pop %v1205
        %v1207 = vmul.f32 %v1206, 0.6931472
        %v1208 = vmul.f32 -0.5, %v1029
        %v1209 = vadd.f32 %v1208, 1.0
        %v1210 = vmul.f32 %v1209, %v1029
        %v1211 = vand.u32 2147483647, %v1029
        %vm1212 = vcmp.lt.f32.partialorder %v1211, 0.0004427343
        %v1213 = vsel %vm1212, %v1210, %v1207
        %v1214 = vadd.f32 %v1030, 1.0
        %v1215 = vlog2.pop %v1214
        %v1216 = vmul.f32 %v1215, 0.6931472
        %v1217 = vmul.f32 -0.5, %v1030
        %v1218 = vadd.f32 %v1217, 1.0
        %v1219 = vmul.f32 %v1218, %v1030
        %v1220 = vand.u32 2147483647, %v1030
        %vm1221 = vcmp.lt.f32.partialorder %v1220, 0.0004427343
        %v1222 = vsel %vm1221, %v1219, %v1216
        %v1223 = vadd.f32 %v1031, 1.0
        %v1224 = vlog2.pop %v1223
        %v1225 = vmul.f32 %v1224, 0.6931472
        %v1226 = vmul.f32 -0.5, %v1031
        %v1227 = vadd.f32 %v1226, 1.0
        %v1228 = vmul.f32 %v1227, %v1031
        %v1229 = vand.u32 2147483647, %v1031
        %vm1230 = vcmp.lt.f32.partialorder %v1229, 0.0004427343
        %v1231 = vsel %vm1230, %v1228, %v1225
        %v1232 = vadd.f32 %v1032, 1.0
        %v1233 = vlog2.pop %v1232
        %v1234 = vmul.f32 %v1233, 0.6931472
        %v1235 = vmul.f32 -0.5, %v1032
        %v1236 = vadd.f32 %v1235, 1.0
        %v1237 = vmul.f32 %v1236, %v1032
        %v1238 = vand.u32 2147483647, %v1032
        %vm1239 = vcmp.lt.f32.partialorder %v1238, 0.0004427343
        %v1240 = vsel %vm1239, %v1237, %v1234
        %v1241 = vadd.f32 %v1033, 1.0
        %v1242 = vlog2.pop %v1241
        %v1243 = vmul.f32 %v1242, 0.6931472
        %v1244 = vmul.f32 -0.5, %v1033
        %v1245 = vadd.f32 %v1244, 1.0
        %v1246 = vmul.f32 %v1245, %v1033
        %v1247 = vand.u32 2147483647, %v1033
        %vm1248 = vcmp.lt.f32.partialorder %v1247, 0.0004427343
        %v1249 = vsel %vm1248, %v1246, %v1243
        %v1250 = vadd.f32 %v1034, 1.0
        %v1251 = vlog2.pop %v1250
        %v1252 = vmul.f32 %v1251, 0.6931472
        %v1253 = vmul.f32 -0.5, %v1034
        %v1254 = vadd.f32 %v1253, 1.0
        %v1255 = vmul.f32 %v1254, %v1034
        %v1256 = vand.u32 2147483647, %v1034
        %vm1257 = vcmp.lt.f32.partialorder %v1256, 0.0004427343
        %v1258 = vsel %vm1257, %v1255, %v1252
        %v1259 = vadd.f32 %v1035, 1.0
        %v1260 = vlog2.pop %v1259
        %v1261 = vmul.f32 %v1260, 0.6931472
        %v1262 = vmul.f32 -0.5, %v1035
        %v1263 = vadd.f32 %v1262, 1.0
        %v1264 = vmul.f32 %v1263, %v1035
        %v1265 = vand.u32 2147483647, %v1035
        %vm1266 = vcmp.lt.f32.partialorder %v1265, 0.0004427343
        %v1267 = vsel %vm1266, %v1264, %v1261
        %v1268 = vadd.f32 %v1036, 1.0
        %v1269 = vlog2.pop %v1268
        %v1270 = vmul.f32 %v1269, 0.6931472
        %v1271 = vmul.f32 -0.5, %v1036
        %v1272 = vadd.f32 %v1271, 1.0
        %v1273 = vmul.f32 %v1272, %v1036
        %v1274 = vand.u32 2147483647, %v1036
        %vm1275 = vcmp.lt.f32.partialorder %v1274, 0.0004427343
        %v1276 = vsel %vm1275, %v1273, %v1270
        %v1277 = vadd.f32 %v1037, 1.0
        %v1278 = vlog2.pop %v1277
        %v1279 = vmul.f32 %v1278, 0.6931472
        %v1280 = vmul.f32 -0.5, %v1037
        %v1281 = vadd.f32 %v1280, 1.0
        %v1282 = vmul.f32 %v1281, %v1037
        %v1283 = vand.u32 2147483647, %v1037
        %vm1284 = vcmp.lt.f32.partialorder %v1283, 0.0004427343
        %v1285 = vsel %vm1284, %v1282, %v1279
        %v1286 = vadd.f32 %v1038, 1.0
        %v1287 = vlog2.pop %v1286
        %v1288 = vmul.f32 %v1287, 0.6931472
        %v1289 = vmul.f32 -0.5, %v1038
        %v1290 = vadd.f32 %v1289, 1.0
        %v1291 = vmul.f32 %v1290, %v1038
        %v1292 = vand.u32 2147483647, %v1038
        %vm1293 = vcmp.lt.f32.partialorder %v1292, 0.0004427343
        %v1294 = vsel %vm1293, %v1291, %v1288
        %v1295 = vadd.f32 %v1039, 1.0
        %v1296 = vlog2.pop %v1295
        %v1297 = vmul.f32 %v1296, 0.6931472
        %v1298 = vmul.f32 -0.5, %v1039
        %v1299 = vadd.f32 %v1298, 1.0
        %v1300 = vmul.f32 %v1299, %v1039
        %v1301 = vand.u32 2147483647, %v1039
        %vm1302 = vcmp.lt.f32.partialorder %v1301, 0.0004427343
        %v1303 = vsel %vm1302, %v1300, %v1297
        %v1304 = vadd.f32 %v1040, 1.0
        %v1305 = vlog2.pop %v1304
        %v1306 = vmul.f32 %v1305, 0.6931472
        %v1307 = vmul.f32 -0.5, %v1040
        %v1308 = vadd.f32 %v1307, 1.0
        %v1309 = vmul.f32 %v1308, %v1040
        %v1310 = vand.u32 2147483647, %v1040
        %vm1311 = vcmp.lt.f32.partialorder %v1310, 0.0004427343
        %v1312 = vsel %vm1311, %v1309, %v1306
        %v1313 = vadd.f32 %v1041, 1.0
        %v1314 = vlog2.pop %v1313
        %v1315 = vmul.f32 %v1314, 0.6931472
        %v1316 = vmul.f32 -0.5, %v1041
        %v1317 = vadd.f32 %v1316, 1.0
        %v1318 = vmul.f32 %v1317, %v1041
        %v1319 = vand.u32 2147483647, %v1041
        %vm1320 = vcmp.lt.f32.partialorder %v1319, 0.0004427343
        %v1321 = vsel %vm1320, %v1318, %v1315
        %v1322 = vadd.f32 %v1042, 1.0
        %v1323 = vlog2.pop %v1322
        %v1324 = vmul.f32 %v1323, 0.6931472
        %v1325 = vmul.f32 -0.5, %v1042
        %v1326 = vadd.f32 %v1325, 1.0
        %v1327 = vmul.f32 %v1326, %v1042
        %v1328 = vand.u32 2147483647, %v1042
        %vm1329 = vcmp.lt.f32.partialorder %v1328, 0.0004427343
        %v1330 = vsel %vm1329, %v1327, %v1324
        %v1331 = vsub.f32 0.0, %v1011
        %v1332 = vsub.f32 0.0, %v1012
        %v1333 = vsub.f32 0.0, %v1013
        %v1334 = vsub.f32 0.0, %v1014
        %v1335 = vsub.f32 0.0, %v1015
        %v1336 = vsub.f32 0.0, %v1016
        %v1337 = vsub.f32 0.0, %v1017
        %v1338 = vsub.f32 0.0, %v1018
        %v1339 = vsub.f32 0.0, %v1019
        %v1340 = vsub.f32 0.0, %v1020
        %v1341 = vsub.f32 0.0, %v1021
        %v1342 = vsub.f32 0.0, %v1022
        %v1343 = vsub.f32 0.0, %v1023
        %v1344 = vsub.f32 0.0, %v1024
        %v1345 = vsub.f32 0.0, %v1025
        %v1346 = vsub.f32 0.0, %v1026
        %v1347 = vsub.f32 0.0, %v1027
        %v1348 = vsub.f32 0.0, %v1028
        %v1349 = vsub.f32 0.0, %v1029
        %v1350 = vsub.f32 0.0, %v1030
        %v1351 = vsub.f32 0.0, %v1031
        %v1352 = vsub.f32 0.0, %v1032
        %v1353 = vsub.f32 0.0, %v1033
        %v1354 = vsub.f32 0.0, %v1034
        %v1355 = vsub.f32 0.0, %v1035
        %v1356 = vsub.f32 0.0, %v1036
        %v1357 = vsub.f32 0.0, %v1037
        %v1358 = vsub.f32 0.0, %v1038
        %v1359 = vsub.f32 0.0, %v1039
        %v1360 = vsub.f32 0.0, %v1040
        %v1361 = vsub.f32 0.0, %v1041
        %v1362 = vsub.f32 0.0, %v1042
        %v1363 = vadd.f32 %v1331, 1.0
        %v1364 = vlog2.pop %v1363
        %v1365 = vmul.f32 %v1364, 0.6931472
        %v1366 = vmul.f32 -0.5, %v1331
        %v1367 = vadd.f32 %v1366, 1.0
        %v1368 = vmul.f32 %v1367, %v1331
        %v1369 = vand.u32 2147483647, %v1331
        %vm1370 = vcmp.lt.f32.partialorder %v1369, 0.0004427343
        %v1371 = vsel %vm1370, %v1368, %v1365
        %v1372 = vadd.f32 %v1332, 1.0
        %v1373 = vlog2.pop %v1372
        %v1374 = vmul.f32 %v1373, 0.6931472
        %v1375 = vmul.f32 -0.5, %v1332
        %v1376 = vadd.f32 %v1375, 1.0
        %v1377 = vmul.f32 %v1376, %v1332
        %v1378 = vand.u32 2147483647, %v1332
        %vm1379 = vcmp.lt.f32.partialorder %v1378, 0.0004427343
        %v1380 = vsel %vm1379, %v1377, %v1374
        %v1381 = vadd.f32 %v1333, 1.0
        %v1382 = vlog2.pop %v1381
        %v1383 = vmul.f32 %v1382, 0.6931472
        %v1384 = vmul.f32 -0.5, %v1333
        %v1385 = vadd.f32 %v1384, 1.0
        %v1386 = vmul.f32 %v1385, %v1333
        %v1387 = vand.u32 2147483647, %v1333
        %vm1388 = vcmp.lt.f32.partialorder %v1387, 0.0004427343
        %v1389 = vsel %vm1388, %v1386, %v1383
        %v1390 = vadd.f32 %v1334, 1.0
        %v1391 = vlog2.pop %v1390
        %v1392 = vmul.f32 %v1391, 0.6931472
        %v1393 = vmul.f32 -0.5, %v1334
        %v1394 = vadd.f32 %v1393, 1.0
        %v1395 = vmul.f32 %v1394, %v1334
        %v1396 = vand.u32 2147483647, %v1334
        %vm1397 = vcmp.lt.f32.partialorder %v1396, 0.0004427343
        %v1398 = vsel %vm1397, %v1395, %v1392
        %v1399 = vadd.f32 %v1335, 1.0
        %v1400 = vlog2.pop %v1399
        %v1401 = vmul.f32 %v1400, 0.6931472
        %v1402 = vmul.f32 -0.5, %v1335
        %v1403 = vadd.f32 %v1402, 1.0
        %v1404 = vmul.f32 %v1403, %v1335
        %v1405 = vand.u32 2147483647, %v1335
        %vm1406 = vcmp.lt.f32.partialorder %v1405, 0.0004427343
        %v1407 = vsel %vm1406, %v1404, %v1401
        %v1408 = vadd.f32 %v1336, 1.0
        %v1409 = vlog2.pop %v1408
        %v1410 = vmul.f32 %v1409, 0.6931472
        %v1411 = vmul.f32 -0.5, %v1336
        %v1412 = vadd.f32 %v1411, 1.0
        %v1413 = vmul.f32 %v1412, %v1336
        %v1414 = vand.u32 2147483647, %v1336
        %vm1415 = vcmp.lt.f32.partialorder %v1414, 0.0004427343
        %v1416 = vsel %vm1415, %v1413, %v1410
        %v1417 = vadd.f32 %v1337, 1.0
        %v1418 = vlog2.pop %v1417
        %v1419 = vmul.f32 %v1418, 0.6931472
        %v1420 = vmul.f32 -0.5, %v1337
        %v1421 = vadd.f32 %v1420, 1.0
        %v1422 = vmul.f32 %v1421, %v1337
        %v1423 = vand.u32 2147483647, %v1337
        %vm1424 = vcmp.lt.f32.partialorder %v1423, 0.0004427343
        %v1425 = vsel %vm1424, %v1422, %v1419
        %v1426 = vadd.f32 %v1338, 1.0
        %v1427 = vlog2.pop %v1426
        %v1428 = vmul.f32 %v1427, 0.6931472
        %v1429 = vmul.f32 -0.5, %v1338
        %v1430 = vadd.f32 %v1429, 1.0
        %v1431 = vmul.f32 %v1430, %v1338
        %v1432 = vand.u32 2147483647, %v1338
        %vm1433 = vcmp.lt.f32.partialorder %v1432, 0.0004427343
        %v1434 = vsel %vm1433, %v1431, %v1428
        %v1435 = vadd.f32 %v1339, 1.0
        %v1436 = vlog2.pop %v1435
        %v1437 = vmul.f32 %v1436, 0.6931472
        %v1438 = vmul.f32 -0.5, %v1339
        %v1439 = vadd.f32 %v1438, 1.0
        %v1440 = vmul.f32 %v1439, %v1339
        %v1441 = vand.u32 2147483647, %v1339
        %vm1442 = vcmp.lt.f32.partialorder %v1441, 0.0004427343
        %v1443 = vsel %vm1442, %v1440, %v1437
        %v1444 = vadd.f32 %v1340, 1.0
        %v1445 = vlog2.pop %v1444
        %v1446 = vmul.f32 %v1445, 0.6931472
        %v1447 = vmul.f32 -0.5, %v1340
        %v1448 = vadd.f32 %v1447, 1.0
        %v1449 = vmul.f32 %v1448, %v1340
        %v1450 = vand.u32 2147483647, %v1340
        %vm1451 = vcmp.lt.f32.partialorder %v1450, 0.0004427343
        %v1452 = vsel %vm1451, %v1449, %v1446
        %v1453 = vadd.f32 %v1341, 1.0
        %v1454 = vlog2.pop %v1453
        %v1455 = vmul.f32 %v1454, 0.6931472
        %v1456 = vmul.f32 -0.5, %v1341
        %v1457 = vadd.f32 %v1456, 1.0
        %v1458 = vmul.f32 %v1457, %v1341
        %v1459 = vand.u32 2147483647, %v1341
        %vm1460 = vcmp.lt.f32.partialorder %v1459, 0.0004427343
        %v1461 = vsel %vm1460, %v1458, %v1455
        %v1462 = vadd.f32 %v1342, 1.0
        %v1463 = vlog2.pop %v1462
        %v1464 = vmul.f32 %v1463, 0.6931472
        %v1465 = vmul.f32 -0.5, %v1342
        %v1466 = vadd.f32 %v1465, 1.0
        %v1467 = vmul.f32 %v1466, %v1342
        %v1468 = vand.u32 2147483647, %v1342
        %vm1469 = vcmp.lt.f32.partialorder %v1468, 0.0004427343
        %v1470 = vsel %vm1469, %v1467, %v1464
        %v1471 = vadd.f32 %v1343, 1.0
        %v1472 = vlog2.pop %v1471
        %v1473 = vmul.f32 %v1472, 0.6931472
        %v1474 = vmul.f32 -0.5, %v1343
        %v1475 = vadd.f32 %v1474, 1.0
        %v1476 = vmul.f32 %v1475, %v1343
        %v1477 = vand.u32 2147483647, %v1343
        %vm1478 = vcmp.lt.f32.partialorder %v1477, 0.0004427343
        %v1479 = vsel %vm1478, %v1476, %v1473
        %v1480 = vadd.f32 %v1344, 1.0
        %v1481 = vlog2.pop %v1480
        %v1482 = vmul.f32 %v1481, 0.6931472
        %v1483 = vmul.f32 -0.5, %v1344
        %v1484 = vadd.f32 %v1483, 1.0
        %v1485 = vmul.f32 %v1484, %v1344
        %v1486 = vand.u32 2147483647, %v1344
        %vm1487 = vcmp.lt.f32.partialorder %v1486, 0.0004427343
        %v1488 = vsel %vm1487, %v1485, %v1482
        %v1489 = vadd.f32 %v1345, 1.0
        %v1490 = vlog2.pop %v1489
        %v1491 = vmul.f32 %v1490, 0.6931472
        %v1492 = vmul.f32 -0.5, %v1345
        %v1493 = vadd.f32 %v1492, 1.0
        %v1494 = vmul.f32 %v1493, %v1345
        %v1495 = vand.u32 2147483647, %v1345
        %vm1496 = vcmp.lt.f32.partialorder %v1495, 0.0004427343
        %v1497 = vsel %vm1496, %v1494, %v1491
        %v1498 = vadd.f32 %v1346, 1.0
        %v1499 = vlog2.pop %v1498
        %v1500 = vmul.f32 %v1499, 0.6931472
        %v1501 = vmul.f32 -0.5, %v1346
        %v1502 = vadd.f32 %v1501, 1.0
        %v1503 = vmul.f32 %v1502, %v1346
        %v1504 = vand.u32 2147483647, %v1346
        %vm1505 = vcmp.lt.f32.partialorder %v1504, 0.0004427343
        %v1506 = vsel %vm1505, %v1503, %v1500
        %v1507 = vadd.f32 %v1347, 1.0
        %v1508 = vlog2.pop %v1507
        %v1509 = vmul.f32 %v1508, 0.6931472
        %v1510 = vmul.f32 -0.5, %v1347
        %v1511 = vadd.f32 %v1510, 1.0
        %v1512 = vmul.f32 %v1511, %v1347
        %v1513 = vand.u32 2147483647, %v1347
        %vm1514 = vcmp.lt.f32.partialorder %v1513, 0.0004427343
        %v1515 = vsel %vm1514, %v1512, %v1509
        %v1516 = vadd.f32 %v1348, 1.0
        %v1517 = vlog2.pop %v1516
        %v1518 = vmul.f32 %v1517, 0.6931472
        %v1519 = vmul.f32 -0.5, %v1348
        %v1520 = vadd.f32 %v1519, 1.0
        %v1521 = vmul.f32 %v1520, %v1348
        %v1522 = vand.u32 2147483647, %v1348
        %vm1523 = vcmp.lt.f32.partialorder %v1522, 0.0004427343
        %v1524 = vsel %vm1523, %v1521, %v1518
        %v1525 = vadd.f32 %v1349, 1.0
        %v1526 = vlog2.pop %v1525
        %v1527 = vmul.f32 %v1526, 0.6931472
        %v1528 = vmul.f32 -0.5, %v1349
        %v1529 = vadd.f32 %v1528, 1.0
        %v1530 = vmul.f32 %v1529, %v1349
        %v1531 = vand.u32 2147483647, %v1349
        %vm1532 = vcmp.lt.f32.partialorder %v1531, 0.0004427343
        %v1533 = vsel %vm1532, %v1530, %v1527
        %v1534 = vadd.f32 %v1350, 1.0
        %v1535 = vlog2.pop %v1534
        %v1536 = vmul.f32 %v1535, 0.6931472
        %v1537 = vmul.f32 -0.5, %v1350
        %v1538 = vadd.f32 %v1537, 1.0
        %v1539 = vmul.f32 %v1538, %v1350
        %v1540 = vand.u32 2147483647, %v1350
        %vm1541 = vcmp.lt.f32.partialorder %v1540, 0.0004427343
        %v1542 = vsel %vm1541, %v1539, %v1536
        %v1543 = vadd.f32 %v1351, 1.0
        %v1544 = vlog2.pop %v1543
        %v1545 = vmul.f32 %v1544, 0.6931472
        %v1546 = vmul.f32 -0.5, %v1351
        %v1547 = vadd.f32 %v1546, 1.0
        %v1548 = vmul.f32 %v1547, %v1351
        %v1549 = vand.u32 2147483647, %v1351
        %vm1550 = vcmp.lt.f32.partialorder %v1549, 0.0004427343
        %v1551 = vsel %vm1550, %v1548, %v1545
        %v1552 = vadd.f32 %v1352, 1.0
        %v1553 = vlog2.pop %v1552
        %v1554 = vmul.f32 %v1553, 0.6931472
        %v1555 = vmul.f32 -0.5, %v1352
        %v1556 = vadd.f32 %v1555, 1.0
        %v1557 = vmul.f32 %v1556, %v1352
        %v1558 = vand.u32 2147483647, %v1352
        %vm1559 = vcmp.lt.f32.partialorder %v1558, 0.0004427343
        %v1560 = vsel %vm1559, %v1557, %v1554
        %v1561 = vadd.f32 %v1353, 1.0
        %v1562 = vlog2.pop %v1561
        %v1563 = vmul.f32 %v1562, 0.6931472
        %v1564 = vmul.f32 -0.5, %v1353
        %v1565 = vadd.f32 %v1564, 1.0
        %v1566 = vmul.f32 %v1565, %v1353
        %v1567 = vand.u32 2147483647, %v1353
        %vm1568 = vcmp.lt.f32.partialorder %v1567, 0.0004427343
        %v1569 = vsel %vm1568, %v1566, %v1563
        %v1570 = vadd.f32 %v1354, 1.0
        %v1571 = vlog2.pop %v1570
        %v1572 = vmul.f32 %v1571, 0.6931472
        %v1573 = vmul.f32 -0.5, %v1354
        %v1574 = vadd.f32 %v1573, 1.0
        %v1575 = vmul.f32 %v1574, %v1354
        %v1576 = vand.u32 2147483647, %v1354
        %vm1577 = vcmp.lt.f32.partialorder %v1576, 0.0004427343
        %v1578 = vsel %vm1577, %v1575, %v1572
        %v1579 = vadd.f32 %v1355, 1.0
        %v1580 = vlog2.pop %v1579
        %v1581 = vmul.f32 %v1580, 0.6931472
        %v1582 = vmul.f32 -0.5, %v1355
        %v1583 = vadd.f32 %v1582, 1.0
        %v1584 = vmul.f32 %v1583, %v1355
        %v1585 = vand.u32 2147483647, %v1355
        %vm1586 = vcmp.lt.f32.partialorder %v1585, 0.0004427343
        %v1587 = vsel %vm1586, %v1584, %v1581
        %v1588 = vadd.f32 %v1356, 1.0
        %v1589 = vlog2.pop %v1588
        %v1590 = vmul.f32 %v1589, 0.6931472
        %v1591 = vmul.f32 -0.5, %v1356
        %v1592 = vadd.f32 %v1591, 1.0
        %v1593 = vmul.f32 %v1592, %v1356
        %v1594 = vand.u32 2147483647, %v1356
        %vm1595 = vcmp.lt.f32.partialorder %v1594, 0.0004427343
        %v1596 = vsel %vm1595, %v1593, %v1590
        %v1597 = vadd.f32 %v1357, 1.0
        %v1598 = vlog2.pop %v1597
        %v1599 = vmul.f32 %v1598, 0.6931472
        %v1600 = vmul.f32 -0.5, %v1357
        %v1601 = vadd.f32 %v1600, 1.0
        %v1602 = vmul.f32 %v1601, %v1357
        %v1603 = vand.u32 2147483647, %v1357
        %vm1604 = vcmp.lt.f32.partialorder %v1603, 0.0004427343
        %v1605 = vsel %vm1604, %v1602, %v1599
        %v1606 = vadd.f32 %v1358, 1.0
        %v1607 = vlog2.pop %v1606
        %v1608 = vmul.f32 %v1607, 0.6931472
        %v1609 = vmul.f32 -0.5, %v1358
        %v1610 = vadd.f32 %v1609, 1.0
        %v1611 = vmul.f32 %v1610, %v1358
        %v1612 = vand.u32 2147483647, %v1358
        %vm1613 = vcmp.lt.f32.partialorder %v1612, 0.0004427343
        %v1614 = vsel %vm1613, %v1611, %v1608
        %v1615 = vadd.f32 %v1359, 1.0
        %v1616 = vlog2.pop %v1615
        %v1617 = vmul.f32 %v1616, 0.6931472
        %v1618 = vmul.f32 -0.5, %v1359
        %v1619 = vadd.f32 %v1618, 1.0
        %v1620 = vmul.f32 %v1619, %v1359
        %v1621 = vand.u32 2147483647, %v1359
        %vm1622 = vcmp.lt.f32.partialorder %v1621, 0.0004427343
        %v1623 = vsel %vm1622, %v1620, %v1617
        %v1624 = vadd.f32 %v1360, 1.0
        %v1625 = vlog2.pop %v1624
        %v1626 = vmul.f32 %v1625, 0.6931472
        %v1627 = vmul.f32 -0.5, %v1360
        %v1628 = vadd.f32 %v1627, 1.0
        %v1629 = vmul.f32 %v1628, %v1360
        %v1630 = vand.u32 2147483647, %v1360
        %vm1631 = vcmp.lt.f32.partialorder %v1630, 0.0004427343
        %v1632 = vsel %vm1631, %v1629, %v1626
        %v1633 = vadd.f32 %v1361, 1.0
        %v1634 = vlog2.pop %v1633
        %v1635 = vmul.f32 %v1634, 0.6931472
        %v1636 = vmul.f32 -0.5, %v1361
        %v1637 = vadd.f32 %v1636, 1.0
        %v1638 = vmul.f32 %v1637, %v1361
        %v1639 = vand.u32 2147483647, %v1361
        %vm1640 = vcmp.lt.f32.partialorder %v1639, 0.0004427343
        %v1641 = vsel %vm1640, %v1638, %v1635
        %v1642 = vadd.f32 %v1362, 1.0
        %v1643 = vlog2.pop %v1642
        %v1644 = vmul.f32 %v1643, 0.6931472
        %v1645 = vmul.f32 -0.5, %v1362
        %v1646 = vadd.f32 %v1645, 1.0
        %v1647 = vmul.f32 %v1646, %v1362
        %v1648 = vand.u32 2147483647, %v1362
        %vm1649 = vcmp.lt.f32.partialorder %v1648, 0.0004427343
        %v1650 = vsel %vm1649, %v1647, %v1644
        %v1651 = vsub.f32 %v1051, %v1371
        %v1652 = vsub.f32 %v1060, %v1380
        %v1653 = vsub.f32 %v1069, %v1389
        %v1654 = vsub.f32 %v1078, %v1398
        %v1655 = vsub.f32 %v1087, %v1407
        %v1656 = vsub.f32 %v1096, %v1416
        %v1657 = vsub.f32 %v1105, %v1425
        %v1658 = vsub.f32 %v1114, %v1434
        %v1659 = vsub.f32 %v1123, %v1443
        %v1660 = vsub.f32 %v1132, %v1452
        %v1661 = vsub.f32 %v1141, %v1461
        %v1662 = vsub.f32 %v1150, %v1470
        %v1663 = vsub.f32 %v1159, %v1479
        %v1664 = vsub.f32 %v1168, %v1488
        %v1665 = vsub.f32 %v1177, %v1497
        %v1666 = vsub.f32 %v1186, %v1506
        %v1667 = vsub.f32 %v1195, %v1515
        %v1668 = vsub.f32 %v1204, %v1524
        %v1669 = vsub.f32 %v1213, %v1533
        %v1670 = vsub.f32 %v1222, %v1542
        %v1671 = vsub.f32 %v1231, %v1551
        %v1672 = vsub.f32 %v1240, %v1560
        %v1673 = vsub.f32 %v1249, %v1569
        %v1674 = vsub.f32 %v1258, %v1578
        %v1675 = vsub.f32 %v1267, %v1587
        %v1676 = vsub.f32 %v1276, %v1596
        %v1677 = vsub.f32 %v1285, %v1605
        %v1678 = vsub.f32 %v1294, %v1614
        %v1679 = vsub.f32 %v1303, %v1623
        %v1680 = vsub.f32 %v1312, %v1632
        %v1681 = vsub.f32 %v1321, %v1641
        %v1682 = vsub.f32 %v1330, %v1650
        %v1683 = vmul.f32 %v1651, 0.5
        %v1684 = vmul.f32 %v1652, 0.5
        %v1685 = vmul.f32 %v1653, 0.5
        %v1686 = vmul.f32 %v1654, 0.5
        %v1687 = vmul.f32 %v1655, 0.5
        %v1688 = vmul.f32 %v1656, 0.5
        %v1689 = vmul.f32 %v1657, 0.5
        %v1690 = vmul.f32 %v1658, 0.5
        %v1691 = vmul.f32 %v1659, 0.5
        %v1692 = vmul.f32 %v1660, 0.5
        %v1693 = vmul.f32 %v1661, 0.5
        %v1694 = vmul.f32 %v1662, 0.5
        %v1695 = vmul.f32 %v1663, 0.5
        %v1696 = vmul.f32 %v1664, 0.5
        %v1697 = vmul.f32 %v1665, 0.5
        %v1698 = vmul.f32 %v1666, 0.5
        %v1699 = vmul.f32 %v1667, 0.5
        %v1700 = vmul.f32 %v1668, 0.5
        %v1701 = vmul.f32 %v1669, 0.5
        %v1702 = vmul.f32 %v1670, 0.5
        %v1703 = vmul.f32 %v1671, 0.5
        %v1704 = vmul.f32 %v1672, 0.5
        %v1705 = vmul.f32 %v1673, 0.5
        %v1706 = vmul.f32 %v1674, 0.5
        %v1707 = vmul.f32 %v1675, 0.5
        %v1708 = vmul.f32 %v1676, 0.5
        %v1709 = vmul.f32 %v1677, 0.5
        %v1710 = vmul.f32 %v1678, 0.5
        %v1711 = vmul.f32 %v1679, 0.5
        %v1712 = vmul.f32 %v1680, 0.5
        %v1713 = vmul.f32 %v1681, 0.5
        %v1714 = vmul.f32 %v1682, 0.5
        %v1715 = vmul.f32 %v947, %v1683
        %v1716 = vmul.f32 %v948, %v1684
        %v1717 = vmul.f32 %v949, %v1685
        %v1718 = vmul.f32 %v950, %v1686
        %v1719 = vmul.f32 %v951, %v1687
        %v1720 = vmul.f32 %v952, %v1688
        %v1721 = vmul.f32 %v953, %v1689
        %v1722 = vmul.f32 %v954, %v1690
        %v1723 = vmul.f32 %v955, %v1691
        %v1724 = vmul.f32 %v956, %v1692
        %v1725 = vmul.f32 %v957, %v1693
        %v1726 = vmul.f32 %v958, %v1694
        %v1727 = vmul.f32 %v959, %v1695
        %v1728 = vmul.f32 %v960, %v1696
        %v1729 = vmul.f32 %v961, %v1697
        %v1730 = vmul.f32 %v962, %v1698
        %v1731 = vmul.f32 %v963, %v1699
        %v1732 = vmul.f32 %v964, %v1700
        %v1733 = vmul.f32 %v965, %v1701
        %v1734 = vmul.f32 %v966, %v1702
        %v1735 = vmul.f32 %v967, %v1703
        %v1736 = vmul.f32 %v968, %v1704
        %v1737 = vmul.f32 %v969, %v1705
        %v1738 = vmul.f32 %v970, %v1706
        %v1739 = vmul.f32 %v971, %v1707
        %v1740 = vmul.f32 %v972, %v1708
        %v1741 = vmul.f32 %v973, %v1709
        %v1742 = vmul.f32 %v974, %v1710
        %v1743 = vmul.f32 %v975, %v1711
        %v1744 = vmul.f32 %v976, %v1712
        %v1745 = vmul.f32 %v977, %v1713
        %v1746 = vmul.f32 %v978, %v1714
        %v1747 = vtanh.pop %v1715
        %v1748 = vtanh.pop %v1716
        %v1749 = vtanh.pop %v1717
        %v1750 = vtanh.pop %v1718
        %v1751 = vtanh.pop %v1719
        %v1752 = vtanh.pop %v1720
        %v1753 = vtanh.pop %v1721
        %v1754 = vtanh.pop %v1722
        %v1755 = vtanh.pop %v1723
        %v1756 = vtanh.pop %v1724
        %v1757 = vtanh.pop %v1725
        %v1758 = vtanh.pop %v1726
        %v1759 = vtanh.pop %v1727
        %v1760 = vtanh.pop %v1728
        %v1761 = vtanh.pop %v1729
        %v1762 = vtanh.pop %v1730
        %v1763 = vtanh.pop %v1731
        %v1764 = vtanh.pop %v1732
        %v1765 = vtanh.pop %v1733
        %v1766 = vtanh.pop %v1734
        %v1767 = vtanh.pop %v1735
        %v1768 = vtanh.pop %v1736
        %v1769 = vtanh.pop %v1737
        %v1770 = vtanh.pop %v1738
        %v1771 = vtanh.pop %v1739
        %v1772 = vtanh.pop %v1740
        %v1773 = vtanh.pop %v1741
        %v1774 = vtanh.pop %v1742
        %v1775 = vtanh.pop %v1743
        %v1776 = vtanh.pop %v1744
        %v1777 = vtanh.pop %v1745
        %v1778 = vtanh.pop %v1746
        %vm1779 = vcmp.gt.f32.partialorder %v788, 0.0
        %vm1780 = vcmp.gt.f32.partialorder %v790, 0.0
        %vm1781 = vcmp.gt.f32.partialorder %v792, 0.0
        %vm1782 = vcmp.gt.f32.partialorder %v794, 0.0
        %vm1783 = vcmp.gt.f32.partialorder %v796, 0.0
        %vm1784 = vcmp.gt.f32.partialorder %v798, 0.0
        %vm1785 = vcmp.gt.f32.partialorder %v800, 0.0
        %vm1786 = vcmp.gt.f32.partialorder %v802, 0.0
        %vm1787 = vcmp.gt.f32.partialorder %v804, 0.0
        %vm1788 = vcmp.gt.f32.partialorder %v806, 0.0
        %vm1789 = vcmp.gt.f32.partialorder %v808, 0.0
        %vm1790 = vcmp.gt.f32.partialorder %v810, 0.0
        %vm1791 = vcmp.gt.f32.partialorder %v812, 0.0
        %vm1792 = vcmp.gt.f32.partialorder %v814, 0.0
        %vm1793 = vcmp.gt.f32.partialorder %v816, 0.0
        %vm1794 = vcmp.gt.f32.partialorder %v818, 0.0
        %vm1795 = vcmp.gt.f32.partialorder %v820, 0.0
        %vm1796 = vcmp.gt.f32.partialorder %v822, 0.0
        %vm1797 = vcmp.gt.f32.partialorder %v824, 0.0
        %vm1798 = vcmp.gt.f32.partialorder %v826, 0.0
        %vm1799 = vcmp.gt.f32.partialorder %v828, 0.0
        %vm1800 = vcmp.gt.f32.partialorder %v830, 0.0
        %vm1801 = vcmp.gt.f32.partialorder %v832, 0.0
        %vm1802 = vcmp.gt.f32.partialorder %v834, 0.0
        %vm1803 = vcmp.gt.f32.partialorder %v836, 0.0
        %vm1804 = vcmp.gt.f32.partialorder %v838, 0.0
        %vm1805 = vcmp.gt.f32.partialorder %v840, 0.0
        %vm1806 = vcmp.gt.f32.partialorder %v842, 0.0
        %vm1807 = vcmp.gt.f32.partialorder %v844, 0.0
        %vm1808 = vcmp.gt.f32.partialorder %v846, 0.0
        %vm1809 = vcmp.gt.f32.partialorder %v848, 0.0
        %vm1810 = vcmp.gt.f32.partialorder %v850, 0.0
        %v1811 = vsel %vm1779, %v1747, 0.0
        %v1812 = vsel %vm1780, %v1748, 0.0
        %v1813 = vsel %vm1781, %v1749, 0.0
        %v1814 = vsel %vm1782, %v1750, 0.0
        %v1815 = vsel %vm1783, %v1751, 0.0
        %v1816 = vsel %vm1784, %v1752, 0.0
        %v1817 = vsel %vm1785, %v1753, 0.0
        %v1818 = vsel %vm1786, %v1754, 0.0
        %v1819 = vsel %vm1787, %v1755, 0.0
        %v1820 = vsel %vm1788, %v1756, 0.0
        %v1821 = vsel %vm1789, %v1757, 0.0
        %v1822 = vsel %vm1790, %v1758, 0.0
        %v1823 = vsel %vm1791, %v1759, 0.0
        %v1824 = vsel %vm1792, %v1760, 0.0
        %v1825 = vsel %vm1793, %v1761, 0.0
        %v1826 = vsel %vm1794, %v1762, 0.0
        %v1827 = vsel %vm1795, %v1763, 0.0
        %v1828 = vsel %vm1796, %v1764, 0.0
        %v1829 = vsel %vm1797, %v1765, 0.0
        %v1830 = vsel %vm1798, %v1766, 0.0
        %v1831 = vsel %vm1799, %v1767, 0.0
        %v1832 = vsel %vm1800, %v1768, 0.0
        %v1833 = vsel %vm1801, %v1769, 0.0
        %v1834 = vsel %vm1802, %v1770, 0.0
        %v1835 = vsel %vm1803, %v1771, 0.0
        %v1836 = vsel %vm1804, %v1772, 0.0
        %v1837 = vsel %vm1805, %v1773, 0.0
        %v1838 = vsel %vm1806, %v1774, 0.0
        %v1839 = vsel %vm1807, %v1775, 0.0
        %v1840 = vsel %vm1808, %v1776, 0.0
        %v1841 = vsel %vm1809, %v1777, 0.0
        %v1842 = vsel %vm1810, %v1778, 0.0
        %v1843 = vmax.f32 %v1811, 1e-15
        %v1844 = vmax.f32 %v1812, 1e-15
        %v1845 = vmax.f32 %v1813, 1e-15
        %v1846 = vmax.f32 %v1814, 1e-15
        %v1847 = vmax.f32 %v1815, 1e-15
        %v1848 = vmax.f32 %v1816, 1e-15
        %v1849 = vmax.f32 %v1817, 1e-15
        %v1850 = vmax.f32 %v1818, 1e-15
        %v1851 = vmax.f32 %v1819, 1e-15
        %v1852 = vmax.f32 %v1820, 1e-15
        %v1853 = vmax.f32 %v1821, 1e-15
        %v1854 = vmax.f32 %v1822, 1e-15
        %v1855 = vmax.f32 %v1823, 1e-15
        %v1856 = vmax.f32 %v1824, 1e-15
        %v1857 = vmax.f32 %v1825, 1e-15
        %v1858 = vmax.f32 %v1826, 1e-15
        %v1859 = vmax.f32 %v1827, 1e-15
        %v1860 = vmax.f32 %v1828, 1e-15
        %v1861 = vmax.f32 %v1829, 1e-15
        %v1862 = vmax.f32 %v1830, 1e-15
        %v1863 = vmax.f32 %v1831, 1e-15
        %v1864 = vmax.f32 %v1832, 1e-15
        %v1865 = vmax.f32 %v1833, 1e-15
        %v1866 = vmax.f32 %v1834, 1e-15
        %v1867 = vmax.f32 %v1835, 1e-15
        %v1868 = vmax.f32 %v1836, 1e-15
        %v1869 = vmax.f32 %v1837, 1e-15
        %v1870 = vmax.f32 %v1838, 1e-15
        %v1871 = vmax.f32 %v1839, 1e-15
        %v1872 = vmax.f32 %v1840, 1e-15
        %v1873 = vmax.f32 %v1841, 1e-15
        %v1874 = vmax.f32 %v1842, 1e-15
        %v1875 = vrcp.pop %v1843
        %v1876 = vrcp.pop %v1844
        %v1877 = vrcp.pop %v1845
        %v1878 = vrcp.pop %v1846
        %v1879 = vrcp.pop %v1847
        %v1880 = vrcp.pop %v1848
        %v1881 = vrcp.pop %v1849
        %v1882 = vrcp.pop %v1850
        %v1883 = vrcp.pop %v1851
        %v1884 = vrcp.pop %v1852
        %v1885 = vrcp.pop %v1853
        %v1886 = vrcp.pop %v1854
        %v1887 = vrcp.pop %v1855
        %v1888 = vrcp.pop %v1856
        %v1889 = vrcp.pop %v1857
        %v1890 = vrcp.pop %v1858
        %v1891 = vrcp.pop %v1859
        %v1892 = vrcp.pop %v1860
        %v1893 = vrcp.pop %v1861
        %v1894 = vrcp.pop %v1862
        %v1895 = vrcp.pop %v1863
        %v1896 = vrcp.pop %v1864
        %v1897 = vrcp.pop %v1865
        %v1898 = vrcp.pop %v1866
        %v1899 = vrcp.pop %v1867
        %v1900 = vrcp.pop %v1868
        %v1901 = vrcp.pop %v1869
        %v1902 = vrcp.pop %v1870
        %v1903 = vrcp.pop %v1871
        %v1904 = vrcp.pop %v1872
        %v1905 = vrcp.pop %v1873
        %v1906 = vrcp.pop %v1874
        %v1907 = vmul.f32 %v1875, 0.996
        %v1908 = vmul.f32 %v1876, 0.996
        %v1909 = vmul.f32 %v1877, 0.996
        %v1910 = vmul.f32 %v1878, 0.996
        %v1911 = vmul.f32 %v1879, 0.996
        %v1912 = vmul.f32 %v1880, 0.996
        %v1913 = vmul.f32 %v1881, 0.996
        %v1914 = vmul.f32 %v1882, 0.996
        %v1915 = vmul.f32 %v1883, 0.996
        %v1916 = vmul.f32 %v1884, 0.996
        %v1917 = vmul.f32 %v1885, 0.996
        %v1918 = vmul.f32 %v1886, 0.996
        %v1919 = vmul.f32 %v1887, 0.996
        %v1920 = vmul.f32 %v1888, 0.996
        %v1921 = vmul.f32 %v1889, 0.996
        %v1922 = vmul.f32 %v1890, 0.996
        %v1923 = vmul.f32 %v1891, 0.996
        %v1924 = vmul.f32 %v1892, 0.996
        %v1925 = vmul.f32 %v1893, 0.996
        %v1926 = vmul.f32 %v1894, 0.996
        %v1927 = vmul.f32 %v1895, 0.996
        %v1928 = vmul.f32 %v1896, 0.996
        %v1929 = vmul.f32 %v1897, 0.996
        %v1930 = vmul.f32 %v1898, 0.996
        %v1931 = vmul.f32 %v1899, 0.996
        %v1932 = vmul.f32 %v1900, 0.996
        %v1933 = vmul.f32 %v1901, 0.996
        %v1934 = vmul.f32 %v1902, 0.996
        %v1935 = vmul.f32 %v1903, 0.996
        %v1936 = vmul.f32 %v1904, 0.996
        %v1937 = vmul.f32 %v1905, 0.996
        %v1938 = vmul.f32 %v1906, 0.996
        %v1939 = vmin.f32 %v1907, 1.0
        %v1940 = vmin.f32 %v1908, 1.0
        %v1941 = vmin.f32 %v1909, 1.0
        %v1942 = vmin.f32 %v1910, 1.0
        %v1943 = vmin.f32 %v1911, 1.0
        %v1944 = vmin.f32 %v1912, 1.0
        %v1945 = vmin.f32 %v1913, 1.0
        %v1946 = vmin.f32 %v1914, 1.0
        %v1947 = vmin.f32 %v1915, 1.0
        %v1948 = vmin.f32 %v1916, 1.0
        %v1949 = vmin.f32 %v1917, 1.0
        %v1950 = vmin.f32 %v1918, 1.0
        %v1951 = vmin.f32 %v1919, 1.0
        %v1952 = vmin.f32 %v1920, 1.0
        %v1953 = vmin.f32 %v1921, 1.0
        %v1954 = vmin.f32 %v1922, 1.0
        %v1955 = vmin.f32 %v1923, 1.0
        %v1956 = vmin.f32 %v1924, 1.0
        %v1957 = vmin.f32 %v1925, 1.0
        %v1958 = vmin.f32 %v1926, 1.0
        %v1959 = vmin.f32 %v1927, 1.0
        %v1960 = vmin.f32 %v1928, 1.0
        %v1961 = vmin.f32 %v1929, 1.0
        %v1962 = vmin.f32 %v1930, 1.0
        %v1963 = vmin.f32 %v1931, 1.0
        %v1964 = vmin.f32 %v1932, 1.0
        %v1965 = vmin.f32 %v1933, 1.0
        %v1966 = vmin.f32 %v1934, 1.0
        %v1967 = vmin.f32 %v1935, 1.0
        %v1968 = vmin.f32 %v1936, 1.0
        %v1969 = vmin.f32 %v1937, 1.0
        %v1970 = vmin.f32 %v1938, 1.0
        %v1971 = vmul.f32 %v1811, %v883
        %v1972 = vmul.f32 %v1812, %v884
        %v1973 = vmul.f32 %v1813, %v885
        %v1974 = vmul.f32 %v1814, %v886
        %v1975 = vmul.f32 %v1815, %v887
        %v1976 = vmul.f32 %v1816, %v888
        %v1977 = vmul.f32 %v1817, %v889
        %v1978 = vmul.f32 %v1818, %v890
        %v1979 = vmul.f32 %v1819, %v891
        %v1980 = vmul.f32 %v1820, %v892
        %v1981 = vmul.f32 %v1821, %v893
        %v1982 = vmul.f32 %v1822, %v894
        %v1983 = vmul.f32 %v1823, %v895
        %v1984 = vmul.f32 %v1824, %v896
        %v1985 = vmul.f32 %v1825, %v897
        %v1986 = vmul.f32 %v1826, %v898
        %v1987 = vmul.f32 %v1827, %v899
        %v1988 = vmul.f32 %v1828, %v900
        %v1989 = vmul.f32 %v1829, %v901
        %v1990 = vmul.f32 %v1830, %v902
        %v1991 = vmul.f32 %v1831, %v903
        %v1992 = vmul.f32 %v1832, %v904
        %v1993 = vmul.f32 %v1833, %v905
        %v1994 = vmul.f32 %v1834, %v906
        %v1995 = vmul.f32 %v1835, %v907
        %v1996 = vmul.f32 %v1836, %v908
        %v1997 = vmul.f32 %v1837, %v909
        %v1998 = vmul.f32 %v1838, %v910
        %v1999 = vmul.f32 %v1839, %v911
        %v2000 = vmul.f32 %v1840, %v912
        %v2001 = vmul.f32 %v1841, %v913
        %v2002 = vmul.f32 %v1842, %v914
        %v2003 = vmul.f32 %v1971, %v1939
        %v2004 = vmul.f32 %v1972, %v1940
        %v2005 = vmul.f32 %v1973, %v1941
        %v2006 = vmul.f32 %v1974, %v1942
        %v2007 = vmul.f32 %v1975, %v1943
        %v2008 = vmul.f32 %v1976, %v1944
        %v2009 = vmul.f32 %v1977, %v1945
        %v2010 = vmul.f32 %v1978, %v1946
        %v2011 = vmul.f32 %v1979, %v1947
        %v2012 = vmul.f32 %v1980, %v1948
        %v2013 = vmul.f32 %v1981, %v1949
        %v2014 = vmul.f32 %v1982, %v1950
        %v2015 = vmul.f32 %v1983, %v1951
        %v2016 = vmul.f32 %v1984, %v1952
        %v2017 = vmul.f32 %v1985, %v1953
        %v2018 = vmul.f32 %v1986, %v1954
        %v2019 = vmul.f32 %v1987, %v1955
        %v2020 = vmul.f32 %v1988, %v1956
        %v2021 = vmul.f32 %v1989, %v1957
        %v2022 = vmul.f32 %v1990, %v1958
        %v2023 = vmul.f32 %v1991, %v1959
        %v2024 = vmul.f32 %v1992, %v1960
        %v2025 = vmul.f32 %v1993, %v1961
        %v2026 = vmul.f32 %v1994, %v1962
        %v2027 = vmul.f32 %v1995, %v1963
        %v2028 = vmul.f32 %v1996, %v1964
        %v2029 = vmul.f32 %v1997, %v1965
        %v2030 = vmul.f32 %v1998, %v1966
        %v2031 = vmul.f32 %v1999, %v1967
        %v2032 = vmul.f32 %v2000, %v1968
        %v2033 = vmul.f32 %v2001, %v1969
        %v2034 = vmul.f32 %v2002, %v1970
        %v2035 = vmul.f32 %v597, %v2003
        %v2036 = vmul.f32 %v602, %v2004
        %v2037 = vmul.f32 %v607, %v2005
        %v2038 = vmul.f32 %v612, %v2006
        %v2039 = vmul.f32 %v617, %v2007
        %v2040 = vmul.f32 %v622, %v2008
        %v2041 = vmul.f32 %v627, %v2009
        %v2042 = vmul.f32 %v632, %v2010
        %v2043 = vmul.f32 %v637, %v2011
        %v2044 = vmul.f32 %v642, %v2012
        %v2045 = vmul.f32 %v647, %v2013
        %v2046 = vmul.f32 %v652, %v2014
        %v2047 = vmul.f32 %v657, %v2015
        %v2048 = vmul.f32 %v662, %v2016
        %v2049 = vmul.f32 %v667, %v2017
        %v2050 = vmul.f32 %v672, %v2018
        %v2051 = vmul.f32 %v677, %v2019
        %v2052 = vmul.f32 %v682, %v2020
        %v2053 = vmul.f32 %v687, %v2021
        %v2054 = vmul.f32 %v692, %v2022
        %v2055 = vmul.f32 %v697, %v2023
        %v2056 = vmul.f32 %v702, %v2024
        %v2057 = vmul.f32 %v707, %v2025
        %v2058 = vmul.f32 %v712, %v2026
        %v2059 = vmul.f32 %v717, %v2027
        %v2060 = vmul.f32 %v722, %v2028
        %v2061 = vmul.f32 %v727, %v2029
        %v2062 = vmul.f32 %v732, %v2030
        %v2063 = vmul.f32 %v737, %v2031
        %v2064 = vmul.f32 %v742, %v2032
        %v2065 = vmul.f32 %v747, %v2033
        %v2066 = vmul.f32 %v752, %v2034
        %v2067 = vmin.f32 %v1811, 0.996
        %v2068 = vmin.f32 %v1812, 0.996
        %v2069 = vmin.f32 %v1813, 0.996
        %v2070 = vmin.f32 %v1814, 0.996
        %v2071 = vmin.f32 %v1815, 0.996
        %v2072 = vmin.f32 %v1816, 0.996
        %v2073 = vmin.f32 %v1817, 0.996
        %v2074 = vmin.f32 %v1818, 0.996
        %v2075 = vmin.f32 %v1819, 0.996
        %v2076 = vmin.f32 %v1820, 0.996
        %v2077 = vmin.f32 %v1821, 0.996
        %v2078 = vmin.f32 %v1822, 0.996
        %v2079 = vmin.f32 %v1823, 0.996
        %v2080 = vmin.f32 %v1824, 0.996
        %v2081 = vmin.f32 %v1825, 0.996
        %v2082 = vmin.f32 %v1826, 0.996
        %v2083 = vmin.f32 %v1827, 0.996
        %v2084 = vmin.f32 %v1828, 0.996
        %v2085 = vmin.f32 %v1829, 0.996
        %v2086 = vmin.f32 %v1830, 0.996
        %v2087 = vmin.f32 %v1831, 0.996
        %v2088 = vmin.f32 %v1832, 0.996
        %v2089 = vmin.f32 %v1833, 0.996
        %v2090 = vmin.f32 %v1834, 0.996
        %v2091 = vmin.f32 %v1835, 0.996
        %v2092 = vmin.f32 %v1836, 0.996
        %v2093 = vmin.f32 %v1837, 0.996
        %v2094 = vmin.f32 %v1838, 0.996
        %v2095 = vmin.f32 %v1839, 0.996
        %v2096 = vmin.f32 %v1840, 0.996
        %v2097 = vmin.f32 %v1841, 0.996
        %v2098 = vmin.f32 %v1842, 0.996
        %v2099 = vmul.f32 %v208, %v208
        %vm2100 = vcmask 1040384
        %v2101 = vsel %vm2100, %v2099, 0.0
        %2102 = vadd.xlane.f32.xlu0 %v2101
        %v2103 = vpop.xlane.xlu0 %2102
        %v2105 = vlaneseq
        %v2106 = vshrl.u32 %v2105, 7
        %v2107 = vsub.s32 0, %v2106
        %v2108 = vrot.slane %v208, %v2107
        %v2110 = vmul.f32 %v2035, %v2108
        %v2111 = vmul.f32 %v2036, %v2108
        %v2112 = vmul.f32 %v2037, %v2108
        %v2113 = vmul.f32 %v2038, %v2108
        %v2114 = vmul.f32 %v2039, %v2108
        %v2115 = vmul.f32 %v2040, %v2108
        %v2116 = vmul.f32 %v2041, %v2108
        %v2117 = vmul.f32 %v2042, %v2108
        %v2118 = vmul.f32 %v2043, %v2108
        %v2119 = vmul.f32 %v2044, %v2108
        %v2120 = vmul.f32 %v2045, %v2108
        %v2121 = vmul.f32 %v2046, %v2108
        %v2122 = vmul.f32 %v2047, %v2108
        %v2123 = vmul.f32 %v2048, %v2108
        %v2124 = vmul.f32 %v2049, %v2108
        %v2125 = vmul.f32 %v2050, %v2108
        %v2126 = vmul.f32 %v2051, %v2108
        %v2127 = vmul.f32 %v2052, %v2108
        %v2128 = vmul.f32 %v2053, %v2108
        %v2129 = vmul.f32 %v2054, %v2108
        %v2130 = vmul.f32 %v2055, %v2108
        %v2131 = vmul.f32 %v2056, %v2108
        %v2132 = vmul.f32 %v2057, %v2108
        %v2133 = vmul.f32 %v2058, %v2108
        %v2134 = vmul.f32 %v2059, %v2108
        %v2135 = vmul.f32 %v2060, %v2108
        %v2136 = vmul.f32 %v2061, %v2108
        %v2137 = vmul.f32 %v2062, %v2108
        %v2138 = vmul.f32 %v2063, %v2108
        %v2139 = vmul.f32 %v2064, %v2108
        %v2140 = vmul.f32 %v2065, %v2108
        %v2141 = vmul.f32 %v2066, %v2108
        %2142 = vadd.xlane.f32.xlu0 %v2110
        %v2143 = vpop.xlane.xlu0 %2142
        %2144 = vadd.xlane.f32.xlu0 %v2111
        %v2145 = vpop.xlane.xlu0 %2144
        %2146 = vadd.xlane.f32.xlu0 %v2112
        %v2147 = vpop.xlane.xlu0 %2146
        %2148 = vadd.xlane.f32.xlu0 %v2113
        %v2149 = vpop.xlane.xlu0 %2148
        %2150 = vadd.xlane.f32.xlu0 %v2114
        %v2151 = vpop.xlane.xlu0 %2150
        %2152 = vadd.xlane.f32.xlu0 %v2115
        %v2153 = vpop.xlane.xlu0 %2152
        %2154 = vadd.xlane.f32.xlu0 %v2116
        %v2155 = vpop.xlane.xlu0 %2154
        %2156 = vadd.xlane.f32.xlu0 %v2117
        %v2157 = vpop.xlane.xlu0 %2156
        %2158 = vadd.xlane.f32.xlu0 %v2118
        %v2159 = vpop.xlane.xlu0 %2158
        %2160 = vadd.xlane.f32.xlu0 %v2119
        %v2161 = vpop.xlane.xlu0 %2160
        %2162 = vadd.xlane.f32.xlu0 %v2120
        %v2163 = vpop.xlane.xlu0 %2162
        %2164 = vadd.xlane.f32.xlu0 %v2121
        %v2165 = vpop.xlane.xlu0 %2164
        %2166 = vadd.xlane.f32.xlu0 %v2122
        %v2167 = vpop.xlane.xlu0 %2166
        %2168 = vadd.xlane.f32.xlu0 %v2123
        %v2169 = vpop.xlane.xlu0 %2168
        %2170 = vadd.xlane.f32.xlu0 %v2124
        %v2171 = vpop.xlane.xlu0 %2170
        %2172 = vadd.xlane.f32.xlu0 %v2125
        %v2173 = vpop.xlane.xlu0 %2172
        %2174 = vadd.xlane.f32.xlu0 %v2126
        %v2175 = vpop.xlane.xlu0 %2174
        %2176 = vadd.xlane.f32.xlu0 %v2127
        %v2177 = vpop.xlane.xlu0 %2176
        %2178 = vadd.xlane.f32.xlu0 %v2128
        %v2179 = vpop.xlane.xlu0 %2178
        %2180 = vadd.xlane.f32.xlu0 %v2129
        %v2181 = vpop.xlane.xlu0 %2180
        %2182 = vadd.xlane.f32.xlu0 %v2130
        %v2183 = vpop.xlane.xlu0 %2182
        %2184 = vadd.xlane.f32.xlu0 %v2131
        %v2185 = vpop.xlane.xlu0 %2184
        %2186 = vadd.xlane.f32.xlu0 %v2132
        %v2187 = vpop.xlane.xlu0 %2186
        %2188 = vadd.xlane.f32.xlu0 %v2133
        %v2189 = vpop.xlane.xlu0 %2188
        %2190 = vadd.xlane.f32.xlu0 %v2134
        %v2191 = vpop.xlane.xlu0 %2190
        %2192 = vadd.xlane.f32.xlu0 %v2135
        %v2193 = vpop.xlane.xlu0 %2192
        %2194 = vadd.xlane.f32.xlu0 %v2136
        %v2195 = vpop.xlane.xlu0 %2194
        %2196 = vadd.xlane.f32.xlu0 %v2137
        %v2197 = vpop.xlane.xlu0 %2196
        %2198 = vadd.xlane.f32.xlu0 %v2138
        %v2199 = vpop.xlane.xlu0 %2198
        %2200 = vadd.xlane.f32.xlu0 %v2139
        %v2201 = vpop.xlane.xlu0 %2200
        %2202 = vadd.xlane.f32.xlu0 %v2140
        %v2203 = vpop.xlane.xlu0 %2202
        %2204 = vadd.xlane.f32.xlu0 %v2141
        %v2205 = vpop.xlane.xlu0 %2204
        %v2206 = vmul.f32 %v2067, %v2067
        %v2207 = vmul.f32 %v2068, %v2068
        %v2208 = vmul.f32 %v2069, %v2069
        %v2209 = vmul.f32 %v2070, %v2070
        %v2210 = vmul.f32 %v2071, %v2071
        %v2211 = vmul.f32 %v2072, %v2072
        %v2212 = vmul.f32 %v2073, %v2073
        %v2213 = vmul.f32 %v2074, %v2074
        %v2214 = vmul.f32 %v2075, %v2075
        %v2215 = vmul.f32 %v2076, %v2076
        %v2216 = vmul.f32 %v2077, %v2077
        %v2217 = vmul.f32 %v2078, %v2078
        %v2218 = vmul.f32 %v2079, %v2079
        %v2219 = vmul.f32 %v2080, %v2080
        %v2220 = vmul.f32 %v2081, %v2081
        %v2221 = vmul.f32 %v2082, %v2082
        %v2222 = vmul.f32 %v2083, %v2083
        %v2223 = vmul.f32 %v2084, %v2084
        %v2224 = vmul.f32 %v2085, %v2085
        %v2225 = vmul.f32 %v2086, %v2086
        %v2226 = vmul.f32 %v2087, %v2087
        %v2227 = vmul.f32 %v2088, %v2088
        %v2228 = vmul.f32 %v2089, %v2089
        %v2229 = vmul.f32 %v2090, %v2090
        %v2230 = vmul.f32 %v2091, %v2091
        %v2231 = vmul.f32 %v2092, %v2092
        %v2232 = vmul.f32 %v2093, %v2093
        %v2233 = vmul.f32 %v2094, %v2094
        %v2234 = vmul.f32 %v2095, %v2095
        %v2235 = vmul.f32 %v2096, %v2096
        %v2236 = vmul.f32 %v2097, %v2097
        %v2237 = vmul.f32 %v2098, %v2098
        %v2238 = vmul.f32 %v2143, 2.0
        %v2239 = vmul.f32 %v2145, 2.0
        %v2240 = vmul.f32 %v2147, 2.0
        %v2241 = vmul.f32 %v2149, 2.0
        %v2242 = vmul.f32 %v2151, 2.0
        %v2243 = vmul.f32 %v2153, 2.0
        %v2244 = vmul.f32 %v2155, 2.0
        %v2245 = vmul.f32 %v2157, 2.0
        %v2246 = vmul.f32 %v2159, 2.0
        %v2247 = vmul.f32 %v2161, 2.0
        %v2248 = vmul.f32 %v2163, 2.0
        %v2249 = vmul.f32 %v2165, 2.0
        %v2250 = vmul.f32 %v2167, 2.0
        %v2251 = vmul.f32 %v2169, 2.0
        %v2252 = vmul.f32 %v2171, 2.0
        %v2253 = vmul.f32 %v2173, 2.0
        %v2254 = vmul.f32 %v2175, 2.0
        %v2255 = vmul.f32 %v2177, 2.0
        %v2256 = vmul.f32 %v2179, 2.0
        %v2257 = vmul.f32 %v2181, 2.0
        %v2258 = vmul.f32 %v2183, 2.0
        %v2259 = vmul.f32 %v2185, 2.0
        %v2260 = vmul.f32 %v2187, 2.0
        %v2261 = vmul.f32 %v2189, 2.0
        %v2262 = vmul.f32 %v2191, 2.0
        %v2263 = vmul.f32 %v2193, 2.0
        %v2264 = vmul.f32 %v2195, 2.0
        %v2265 = vmul.f32 %v2197, 2.0
        %v2266 = vmul.f32 %v2199, 2.0
        %v2267 = vmul.f32 %v2201, 2.0
        %v2268 = vmul.f32 %v2203, 2.0
        %v2269 = vmul.f32 %v2205, 2.0
        %v2270 = vadd.f32 %v2238, 1.0
        %v2271 = vadd.f32 %v2239, 1.0
        %v2272 = vadd.f32 %v2240, 1.0
        %v2273 = vadd.f32 %v2241, 1.0
        %v2274 = vadd.f32 %v2242, 1.0
        %v2275 = vadd.f32 %v2243, 1.0
        %v2276 = vadd.f32 %v2244, 1.0
        %v2277 = vadd.f32 %v2245, 1.0
        %v2278 = vadd.f32 %v2246, 1.0
        %v2279 = vadd.f32 %v2247, 1.0
        %v2280 = vadd.f32 %v2248, 1.0
        %v2281 = vadd.f32 %v2249, 1.0
        %v2282 = vadd.f32 %v2250, 1.0
        %v2283 = vadd.f32 %v2251, 1.0
        %v2284 = vadd.f32 %v2252, 1.0
        %v2285 = vadd.f32 %v2253, 1.0
        %v2286 = vadd.f32 %v2254, 1.0
        %v2287 = vadd.f32 %v2255, 1.0
        %v2288 = vadd.f32 %v2256, 1.0
        %v2289 = vadd.f32 %v2257, 1.0
        %v2290 = vadd.f32 %v2258, 1.0
        %v2291 = vadd.f32 %v2259, 1.0
        %v2292 = vadd.f32 %v2260, 1.0
        %v2293 = vadd.f32 %v2261, 1.0
        %v2294 = vadd.f32 %v2262, 1.0
        %v2295 = vadd.f32 %v2263, 1.0
        %v2296 = vadd.f32 %v2264, 1.0
        %v2297 = vadd.f32 %v2265, 1.0
        %v2298 = vadd.f32 %v2266, 1.0
        %v2299 = vadd.f32 %v2267, 1.0
        %v2300 = vadd.f32 %v2268, 1.0
        %v2301 = vadd.f32 %v2269, 1.0
        %v2302 = vlaneseq
        %v2303 = vshrl.u32 %v2302, 7
        %v2304 = vsub.s32 0, %v2303
        %v2305 = vrot.slane %v2103, %v2304
        %v2306 = vadd.f32 %v2270, %v2305
        %v2307 = vadd.f32 %v2271, %v2305
        %v2308 = vadd.f32 %v2272, %v2305
        %v2309 = vadd.f32 %v2273, %v2305
        %v2310 = vadd.f32 %v2274, %v2305
        %v2311 = vadd.f32 %v2275, %v2305
        %v2312 = vadd.f32 %v2276, %v2305
        %v2313 = vadd.f32 %v2277, %v2305
        %v2314 = vadd.f32 %v2278, %v2305
        %v2315 = vadd.f32 %v2279, %v2305
        %v2316 = vadd.f32 %v2280, %v2305
        %v2317 = vadd.f32 %v2281, %v2305
        %v2318 = vadd.f32 %v2282, %v2305
        %v2319 = vadd.f32 %v2283, %v2305
        %v2320 = vadd.f32 %v2284, %v2305
        %v2321 = vadd.f32 %v2285, %v2305
        %v2322 = vadd.f32 %v2286, %v2305
        %v2323 = vadd.f32 %v2287, %v2305
        %v2324 = vadd.f32 %v2288, %v2305
        %v2325 = vadd.f32 %v2289, %v2305
        %v2326 = vadd.f32 %v2290, %v2305
        %v2327 = vadd.f32 %v2291, %v2305
        %v2328 = vadd.f32 %v2292, %v2305
        %v2329 = vadd.f32 %v2293, %v2305
        %v2330 = vadd.f32 %v2294, %v2305
        %v2331 = vadd.f32 %v2295, %v2305
        %v2332 = vadd.f32 %v2296, %v2305
        %v2333 = vadd.f32 %v2297, %v2305
        %v2334 = vadd.f32 %v2298, %v2305
        %v2335 = vadd.f32 %v2299, %v2305
        %v2336 = vadd.f32 %v2300, %v2305
        %v2337 = vadd.f32 %v2301, %v2305
        %v2338 = vsub.f32 1.0, %v2206
        %v2339 = vsub.f32 1.0, %v2207
        %v2340 = vsub.f32 1.0, %v2208
        %v2341 = vsub.f32 1.0, %v2209
        %v2342 = vsub.f32 1.0, %v2210
        %v2343 = vsub.f32 1.0, %v2211
        %v2344 = vsub.f32 1.0, %v2212
        %v2345 = vsub.f32 1.0, %v2213
        %v2346 = vsub.f32 1.0, %v2214
        %v2347 = vsub.f32 1.0, %v2215
        %v2348 = vsub.f32 1.0, %v2216
        %v2349 = vsub.f32 1.0, %v2217
        %v2350 = vsub.f32 1.0, %v2218
        %v2351 = vsub.f32 1.0, %v2219
        %v2352 = vsub.f32 1.0, %v2220
        %v2353 = vsub.f32 1.0, %v2221
        %v2354 = vsub.f32 1.0, %v2222
        %v2355 = vsub.f32 1.0, %v2223
        %v2356 = vsub.f32 1.0, %v2224
        %v2357 = vsub.f32 1.0, %v2225
        %v2358 = vsub.f32 1.0, %v2226
        %v2359 = vsub.f32 1.0, %v2227
        %v2360 = vsub.f32 1.0, %v2228
        %v2361 = vsub.f32 1.0, %v2229
        %v2362 = vsub.f32 1.0, %v2230
        %v2363 = vsub.f32 1.0, %v2231
        %v2364 = vsub.f32 1.0, %v2232
        %v2365 = vsub.f32 1.0, %v2233
        %v2366 = vsub.f32 1.0, %v2234
        %v2367 = vsub.f32 1.0, %v2235
        %v2368 = vsub.f32 1.0, %v2236
        %v2369 = vsub.f32 1.0, %v2237
        %v2370 = vmul.f32 %v2206, %v2305
        %v2371 = vmul.f32 %v2207, %v2305
        %v2372 = vmul.f32 %v2208, %v2305
        %v2373 = vmul.f32 %v2209, %v2305
        %v2374 = vmul.f32 %v2210, %v2305
        %v2375 = vmul.f32 %v2211, %v2305
        %v2376 = vmul.f32 %v2212, %v2305
        %v2377 = vmul.f32 %v2213, %v2305
        %v2378 = vmul.f32 %v2214, %v2305
        %v2379 = vmul.f32 %v2215, %v2305
        %v2380 = vmul.f32 %v2216, %v2305
        %v2381 = vmul.f32 %v2217, %v2305
        %v2382 = vmul.f32 %v2218, %v2305
        %v2383 = vmul.f32 %v2219, %v2305
        %v2384 = vmul.f32 %v2220, %v2305
        %v2385 = vmul.f32 %v2221, %v2305
        %v2386 = vmul.f32 %v2222, %v2305
        %v2387 = vmul.f32 %v2223, %v2305
        %v2388 = vmul.f32 %v2224, %v2305
        %v2389 = vmul.f32 %v2225, %v2305
        %v2390 = vmul.f32 %v2226, %v2305
        %v2391 = vmul.f32 %v2227, %v2305
        %v2392 = vmul.f32 %v2228, %v2305
        %v2393 = vmul.f32 %v2229, %v2305
        %v2394 = vmul.f32 %v2230, %v2305
        %v2395 = vmul.f32 %v2231, %v2305
        %v2396 = vmul.f32 %v2232, %v2305
        %v2397 = vmul.f32 %v2233, %v2305
        %v2398 = vmul.f32 %v2234, %v2305
        %v2399 = vmul.f32 %v2235, %v2305
        %v2400 = vmul.f32 %v2236, %v2305
        %v2401 = vmul.f32 %v2237, %v2305
        %v2402 = vadd.f32 %v2270, %v2370
        %v2403 = vadd.f32 %v2271, %v2371
        %v2404 = vadd.f32 %v2272, %v2372
        %v2405 = vadd.f32 %v2273, %v2373
        %v2406 = vadd.f32 %v2274, %v2374
        %v2407 = vadd.f32 %v2275, %v2375
        %v2408 = vadd.f32 %v2276, %v2376
        %v2409 = vadd.f32 %v2277, %v2377
        %v2410 = vadd.f32 %v2278, %v2378
        %v2411 = vadd.f32 %v2279, %v2379
        %v2412 = vadd.f32 %v2280, %v2380
        %v2413 = vadd.f32 %v2281, %v2381
        %v2414 = vadd.f32 %v2282, %v2382
        %v2415 = vadd.f32 %v2283, %v2383
        %v2416 = vadd.f32 %v2284, %v2384
        %v2417 = vadd.f32 %v2285, %v2385
        %v2418 = vadd.f32 %v2286, %v2386
        %v2419 = vadd.f32 %v2287, %v2387
        %v2420 = vadd.f32 %v2288, %v2388
        %v2421 = vadd.f32 %v2289, %v2389
        %v2422 = vadd.f32 %v2290, %v2390
        %v2423 = vadd.f32 %v2291, %v2391
        %v2424 = vadd.f32 %v2292, %v2392
        %v2425 = vadd.f32 %v2293, %v2393
        %v2426 = vadd.f32 %v2294, %v2394
        %v2427 = vadd.f32 %v2295, %v2395
        %v2428 = vadd.f32 %v2296, %v2396
        %v2429 = vadd.f32 %v2297, %v2397
        %v2430 = vadd.f32 %v2298, %v2398
        %v2431 = vadd.f32 %v2299, %v2399
        %v2432 = vadd.f32 %v2300, %v2400
        %v2433 = vadd.f32 %v2301, %v2401
        %v2434 = vmax.f32 %v2402, 1e-15
        %v2435 = vmax.f32 %v2403, 1e-15
        %v2436 = vmax.f32 %v2404, 1e-15
        %v2437 = vmax.f32 %v2405, 1e-15
        %v2438 = vmax.f32 %v2406, 1e-15
        %v2439 = vmax.f32 %v2407, 1e-15
        %v2440 = vmax.f32 %v2408, 1e-15
        %v2441 = vmax.f32 %v2409, 1e-15
        %v2442 = vmax.f32 %v2410, 1e-15
        %v2443 = vmax.f32 %v2411, 1e-15
        %v2444 = vmax.f32 %v2412, 1e-15
        %v2445 = vmax.f32 %v2413, 1e-15
        %v2446 = vmax.f32 %v2414, 1e-15
        %v2447 = vmax.f32 %v2415, 1e-15
        %v2448 = vmax.f32 %v2416, 1e-15
        %v2449 = vmax.f32 %v2417, 1e-15
        %v2450 = vmax.f32 %v2418, 1e-15
        %v2451 = vmax.f32 %v2419, 1e-15
        %v2452 = vmax.f32 %v2420, 1e-15
        %v2453 = vmax.f32 %v2421, 1e-15
        %v2454 = vmax.f32 %v2422, 1e-15
        %v2455 = vmax.f32 %v2423, 1e-15
        %v2456 = vmax.f32 %v2424, 1e-15
        %v2457 = vmax.f32 %v2425, 1e-15
        %v2458 = vmax.f32 %v2426, 1e-15
        %v2459 = vmax.f32 %v2427, 1e-15
        %v2460 = vmax.f32 %v2428, 1e-15
        %v2461 = vmax.f32 %v2429, 1e-15
        %v2462 = vmax.f32 %v2430, 1e-15
        %v2463 = vmax.f32 %v2431, 1e-15
        %v2464 = vmax.f32 %v2432, 1e-15
        %v2465 = vmax.f32 %v2433, 1e-15
        %v2466 = vrcp.pop %v2434
        %v2467 = vmul.f32 1.0, %v2466
        %v2468 = vrcp.pop %v2435
        %v2469 = vmul.f32 1.0, %v2468
        %v2470 = vrcp.pop %v2436
        %v2471 = vmul.f32 1.0, %v2470
        %v2472 = vrcp.pop %v2437
        %v2473 = vmul.f32 1.0, %v2472
        %v2474 = vrcp.pop %v2438
        %v2475 = vmul.f32 1.0, %v2474
        %v2476 = vrcp.pop %v2439
        %v2477 = vmul.f32 1.0, %v2476
        %v2478 = vrcp.pop %v2440
        %v2479 = vmul.f32 1.0, %v2478
        %v2480 = vrcp.pop %v2441
        %v2481 = vmul.f32 1.0, %v2480
        %v2482 = vrcp.pop %v2442
        %v2483 = vmul.f32 1.0, %v2482
        %v2484 = vrcp.pop %v2443
        %v2485 = vmul.f32 1.0, %v2484
        %v2486 = vrcp.pop %v2444
        %v2487 = vmul.f32 1.0, %v2486
        %v2488 = vrcp.pop %v2445
        %v2489 = vmul.f32 1.0, %v2488
        %v2490 = vrcp.pop %v2446
        %v2491 = vmul.f32 1.0, %v2490
        %v2492 = vrcp.pop %v2447
        %v2493 = vmul.f32 1.0, %v2492
        %v2494 = vrcp.pop %v2448
        %v2495 = vmul.f32 1.0, %v2494
        %v2496 = vrcp.pop %v2449
        %v2497 = vmul.f32 1.0, %v2496
        %v2498 = vrcp.pop %v2450
        %v2499 = vmul.f32 1.0, %v2498
        %v2500 = vrcp.pop %v2451
        %v2501 = vmul.f32 1.0, %v2500
        %v2502 = vrcp.pop %v2452
        %v2503 = vmul.f32 1.0, %v2502
        %v2504 = vrcp.pop %v2453
        %v2505 = vmul.f32 1.0, %v2504
        %v2506 = vrcp.pop %v2454
        %v2507 = vmul.f32 1.0, %v2506
        %v2508 = vrcp.pop %v2455
        %v2509 = vmul.f32 1.0, %v2508
        %v2510 = vrcp.pop %v2456
        %v2511 = vmul.f32 1.0, %v2510
        %v2512 = vrcp.pop %v2457
        %v2513 = vmul.f32 1.0, %v2512
        %v2514 = vrcp.pop %v2458
        %v2515 = vmul.f32 1.0, %v2514
        %v2516 = vrcp.pop %v2459
        %v2517 = vmul.f32 1.0, %v2516
        %v2518 = vrcp.pop %v2460
        %v2519 = vmul.f32 1.0, %v2518
        %v2520 = vrcp.pop %v2461
        %v2521 = vmul.f32 1.0, %v2520
        %v2522 = vrcp.pop %v2462
        %v2523 = vmul.f32 1.0, %v2522
        %v2524 = vrcp.pop %v2463
        %v2525 = vmul.f32 1.0, %v2524
        %v2526 = vrcp.pop %v2464
        %v2527 = vmul.f32 1.0, %v2526
        %v2528 = vrcp.pop %v2465
        %v2529 = vmul.f32 1.0, %v2528
        %v2530 = vmul.f32 %v2306, %v2467
        %v2531 = vmul.f32 %v2307, %v2469
        %v2532 = vmul.f32 %v2308, %v2471
        %v2533 = vmul.f32 %v2309, %v2473
        %v2534 = vmul.f32 %v2310, %v2475
        %v2535 = vmul.f32 %v2311, %v2477
        %v2536 = vmul.f32 %v2312, %v2479
        %v2537 = vmul.f32 %v2313, %v2481
        %v2538 = vmul.f32 %v2314, %v2483
        %v2539 = vmul.f32 %v2315, %v2485
        %v2540 = vmul.f32 %v2316, %v2487
        %v2541 = vmul.f32 %v2317, %v2489
        %v2542 = vmul.f32 %v2318, %v2491
        %v2543 = vmul.f32 %v2319, %v2493
        %v2544 = vmul.f32 %v2320, %v2495
        %v2545 = vmul.f32 %v2321, %v2497
        %v2546 = vmul.f32 %v2322, %v2499
        %v2547 = vmul.f32 %v2323, %v2501
        %v2548 = vmul.f32 %v2324, %v2503
        %v2549 = vmul.f32 %v2325, %v2505
        %v2550 = vmul.f32 %v2326, %v2507
        %v2551 = vmul.f32 %v2327, %v2509
        %v2552 = vmul.f32 %v2328, %v2511
        %v2553 = vmul.f32 %v2329, %v2513
        %v2554 = vmul.f32 %v2330, %v2515
        %v2555 = vmul.f32 %v2331, %v2517
        %v2556 = vmul.f32 %v2332, %v2519
        %v2557 = vmul.f32 %v2333, %v2521
        %v2558 = vmul.f32 %v2334, %v2523
        %v2559 = vmul.f32 %v2335, %v2525
        %v2560 = vmul.f32 %v2336, %v2527
        %v2561 = vmul.f32 %v2337, %v2529
        %v2562 = vmul.f32 %v2530, %v2035
        %v2563 = vmul.f32 %v2531, %v2036
        %v2564 = vmul.f32 %v2532, %v2037
        %v2565 = vmul.f32 %v2533, %v2038
        %v2566 = vmul.f32 %v2534, %v2039
        %v2567 = vmul.f32 %v2535, %v2040
        %v2568 = vmul.f32 %v2536, %v2041
        %v2569 = vmul.f32 %v2537, %v2042
        %v2570 = vmul.f32 %v2538, %v2043
        %v2571 = vmul.f32 %v2539, %v2044
        %v2572 = vmul.f32 %v2540, %v2045
        %v2573 = vmul.f32 %v2541, %v2046
        %v2574 = vmul.f32 %v2542, %v2047
        %v2575 = vmul.f32 %v2543, %v2048
        %v2576 = vmul.f32 %v2544, %v2049
        %v2577 = vmul.f32 %v2545, %v2050
        %v2578 = vmul.f32 %v2546, %v2051
        %v2579 = vmul.f32 %v2547, %v2052
        %v2580 = vmul.f32 %v2548, %v2053
        %v2581 = vmul.f32 %v2549, %v2054
        %v2582 = vmul.f32 %v2550, %v2055
        %v2583 = vmul.f32 %v2551, %v2056
        %v2584 = vmul.f32 %v2552, %v2057
        %v2585 = vmul.f32 %v2553, %v2058
        %v2586 = vmul.f32 %v2554, %v2059
        %v2587 = vmul.f32 %v2555, %v2060
        %v2588 = vmul.f32 %v2556, %v2061
        %v2589 = vmul.f32 %v2557, %v2062
        %v2590 = vmul.f32 %v2558, %v2063
        %v2591 = vmul.f32 %v2559, %v2064
        %v2592 = vmul.f32 %v2560, %v2065
        %v2593 = vmul.f32 %v2561, %v2066
        %v2594 = vmul.f32 %v2338, %v2467
        %v2595 = vmul.f32 %v2339, %v2469
        %v2596 = vmul.f32 %v2340, %v2471
        %v2597 = vmul.f32 %v2341, %v2473
        %v2598 = vmul.f32 %v2342, %v2475
        %v2599 = vmul.f32 %v2343, %v2477
        %v2600 = vmul.f32 %v2344, %v2479
        %v2601 = vmul.f32 %v2345, %v2481
        %v2602 = vmul.f32 %v2346, %v2483
        %v2603 = vmul.f32 %v2347, %v2485
        %v2604 = vmul.f32 %v2348, %v2487
        %v2605 = vmul.f32 %v2349, %v2489
        %v2606 = vmul.f32 %v2350, %v2491
        %v2607 = vmul.f32 %v2351, %v2493
        %v2608 = vmul.f32 %v2352, %v2495
        %v2609 = vmul.f32 %v2353, %v2497
        %v2610 = vmul.f32 %v2354, %v2499
        %v2611 = vmul.f32 %v2355, %v2501
        %v2612 = vmul.f32 %v2356, %v2503
        %v2613 = vmul.f32 %v2357, %v2505
        %v2614 = vmul.f32 %v2358, %v2507
        %v2615 = vmul.f32 %v2359, %v2509
        %v2616 = vmul.f32 %v2360, %v2511
        %v2617 = vmul.f32 %v2361, %v2513
        %v2618 = vmul.f32 %v2362, %v2515
        %v2619 = vmul.f32 %v2363, %v2517
        %v2620 = vmul.f32 %v2364, %v2519
        %v2621 = vmul.f32 %v2365, %v2521
        %v2622 = vmul.f32 %v2366, %v2523
        %v2623 = vmul.f32 %v2367, %v2525
        %v2624 = vmul.f32 %v2368, %v2527
        %v2625 = vmul.f32 %v2369, %v2529
        %v2626 = vmul.f32 %v2594, %v2108
        %v2627 = vmul.f32 %v2595, %v2108
        %v2628 = vmul.f32 %v2596, %v2108
        %v2629 = vmul.f32 %v2597, %v2108
        %v2630 = vmul.f32 %v2598, %v2108
        %v2631 = vmul.f32 %v2599, %v2108
        %v2632 = vmul.f32 %v2600, %v2108
        %v2633 = vmul.f32 %v2601, %v2108
        %v2634 = vmul.f32 %v2602, %v2108
        %v2635 = vmul.f32 %v2603, %v2108
        %v2636 = vmul.f32 %v2604, %v2108
        %v2637 = vmul.f32 %v2605, %v2108
        %v2638 = vmul.f32 %v2606, %v2108
        %v2639 = vmul.f32 %v2607, %v2108
        %v2640 = vmul.f32 %v2608, %v2108
        %v2641 = vmul.f32 %v2609, %v2108
        %v2642 = vmul.f32 %v2610, %v2108
        %v2643 = vmul.f32 %v2611, %v2108
        %v2644 = vmul.f32 %v2612, %v2108
        %v2645 = vmul.f32 %v2613, %v2108
        %v2646 = vmul.f32 %v2614, %v2108
        %v2647 = vmul.f32 %v2615, %v2108
        %v2648 = vmul.f32 %v2616, %v2108
        %v2649 = vmul.f32 %v2617, %v2108
        %v2650 = vmul.f32 %v2618, %v2108
        %v2651 = vmul.f32 %v2619, %v2108
        %v2652 = vmul.f32 %v2620, %v2108
        %v2653 = vmul.f32 %v2621, %v2108
        %v2654 = vmul.f32 %v2622, %v2108
        %v2655 = vmul.f32 %v2623, %v2108
        %v2656 = vmul.f32 %v2624, %v2108
        %v2657 = vmul.f32 %v2625, %v2108
        %v2658 = vadd.f32 %v2562, %v2626
        %v2659 = vadd.f32 %v2563, %v2627
        %v2660 = vadd.f32 %v2564, %v2628
        %v2661 = vadd.f32 %v2565, %v2629
        %v2662 = vadd.f32 %v2566, %v2630
        %v2663 = vadd.f32 %v2567, %v2631
        %v2664 = vadd.f32 %v2568, %v2632
        %v2665 = vadd.f32 %v2569, %v2633
        %v2666 = vadd.f32 %v2570, %v2634
        %v2667 = vadd.f32 %v2571, %v2635
        %v2668 = vadd.f32 %v2572, %v2636
        %v2669 = vadd.f32 %v2573, %v2637
        %v2670 = vadd.f32 %v2574, %v2638
        %v2671 = vadd.f32 %v2575, %v2639
        %v2672 = vadd.f32 %v2576, %v2640
        %v2673 = vadd.f32 %v2577, %v2641
        %v2674 = vadd.f32 %v2578, %v2642
        %v2675 = vadd.f32 %v2579, %v2643
        %v2676 = vadd.f32 %v2580, %v2644
        %v2677 = vadd.f32 %v2581, %v2645
        %v2678 = vadd.f32 %v2582, %v2646
        %v2679 = vadd.f32 %v2583, %v2647
        %v2680 = vadd.f32 %v2584, %v2648
        %v2681 = vadd.f32 %v2585, %v2649
        %v2682 = vadd.f32 %v2586, %v2650
        %v2683 = vadd.f32 %v2587, %v2651
        %v2684 = vadd.f32 %v2588, %v2652
        %v2685 = vadd.f32 %v2589, %v2653
        %v2686 = vadd.f32 %v2590, %v2654
        %v2687 = vadd.f32 %v2591, %v2655
        %v2688 = vadd.f32 %v2592, %v2656
        %v2689 = vadd.f32 %v2593, %v2657
        %v2690 = vmul.f32 %v2658, %v2658
        %v2691 = vmul.f32 %v2659, %v2659
        %v2692 = vmul.f32 %v2660, %v2660
        %v2693 = vmul.f32 %v2661, %v2661
        %v2694 = vmul.f32 %v2662, %v2662
        %v2695 = vmul.f32 %v2663, %v2663
        %v2696 = vmul.f32 %v2664, %v2664
        %v2697 = vmul.f32 %v2665, %v2665
        %v2698 = vmul.f32 %v2666, %v2666
        %v2699 = vmul.f32 %v2667, %v2667
        %v2700 = vmul.f32 %v2668, %v2668
        %v2701 = vmul.f32 %v2669, %v2669
        %v2702 = vmul.f32 %v2670, %v2670
        %v2703 = vmul.f32 %v2671, %v2671
        %v2704 = vmul.f32 %v2672, %v2672
        %v2705 = vmul.f32 %v2673, %v2673
        %v2706 = vmul.f32 %v2674, %v2674
        %v2707 = vmul.f32 %v2675, %v2675
        %v2708 = vmul.f32 %v2676, %v2676
        %v2709 = vmul.f32 %v2677, %v2677
        %v2710 = vmul.f32 %v2678, %v2678
        %v2711 = vmul.f32 %v2679, %v2679
        %v2712 = vmul.f32 %v2680, %v2680
        %v2713 = vmul.f32 %v2681, %v2681
        %v2714 = vmul.f32 %v2682, %v2682
        %v2715 = vmul.f32 %v2683, %v2683
        %v2716 = vmul.f32 %v2684, %v2684
        %v2717 = vmul.f32 %v2685, %v2685
        %v2718 = vmul.f32 %v2686, %v2686
        %v2719 = vmul.f32 %v2687, %v2687
        %v2720 = vmul.f32 %v2688, %v2688
        %v2721 = vmul.f32 %v2689, %v2689
        %2722 = vadd.xlane.f32.xlu0 %v2690
        %v2723 = vpop.xlane.xlu0 %2722
        %2724 = vadd.xlane.f32.xlu0 %v2691
        %v2725 = vpop.xlane.xlu0 %2724
        %2726 = vadd.xlane.f32.xlu0 %v2692
        %v2727 = vpop.xlane.xlu0 %2726
        %2728 = vadd.xlane.f32.xlu0 %v2693
        %v2729 = vpop.xlane.xlu0 %2728
        %2730 = vadd.xlane.f32.xlu0 %v2694
        %v2731 = vpop.xlane.xlu0 %2730
        %2732 = vadd.xlane.f32.xlu0 %v2695
        %v2733 = vpop.xlane.xlu0 %2732
        %2734 = vadd.xlane.f32.xlu0 %v2696
        %v2735 = vpop.xlane.xlu0 %2734
        %2736 = vadd.xlane.f32.xlu0 %v2697
        %v2737 = vpop.xlane.xlu0 %2736
        %2738 = vadd.xlane.f32.xlu0 %v2698
        %v2739 = vpop.xlane.xlu0 %2738
        %2740 = vadd.xlane.f32.xlu0 %v2699
        %v2741 = vpop.xlane.xlu0 %2740
        %2742 = vadd.xlane.f32.xlu0 %v2700
        %v2743 = vpop.xlane.xlu0 %2742
        %2744 = vadd.xlane.f32.xlu0 %v2701
        %v2745 = vpop.xlane.xlu0 %2744
        %2746 = vadd.xlane.f32.xlu0 %v2702
        %v2747 = vpop.xlane.xlu0 %2746
        %2748 = vadd.xlane.f32.xlu0 %v2703
        %v2749 = vpop.xlane.xlu0 %2748
        %2750 = vadd.xlane.f32.xlu0 %v2704
        %v2751 = vpop.xlane.xlu0 %2750
        %2752 = vadd.xlane.f32.xlu0 %v2705
        %v2753 = vpop.xlane.xlu0 %2752
        %2754 = vadd.xlane.f32.xlu0 %v2706
        %v2755 = vpop.xlane.xlu0 %2754
        %2756 = vadd.xlane.f32.xlu0 %v2707
        %v2757 = vpop.xlane.xlu0 %2756
        %2758 = vadd.xlane.f32.xlu0 %v2708
        %v2759 = vpop.xlane.xlu0 %2758
        %2760 = vadd.xlane.f32.xlu0 %v2709
        %v2761 = vpop.xlane.xlu0 %2760
        %2762 = vadd.xlane.f32.xlu0 %v2710
        %v2763 = vpop.xlane.xlu0 %2762
        %2764 = vadd.xlane.f32.xlu0 %v2711
        %v2765 = vpop.xlane.xlu0 %2764
        %2766 = vadd.xlane.f32.xlu0 %v2712
        %v2767 = vpop.xlane.xlu0 %2766
        %2768 = vadd.xlane.f32.xlu0 %v2713
        %v2769 = vpop.xlane.xlu0 %2768
        %2770 = vadd.xlane.f32.xlu0 %v2714
        %v2771 = vpop.xlane.xlu0 %2770
        %2772 = vadd.xlane.f32.xlu0 %v2715
        %v2773 = vpop.xlane.xlu0 %2772
        %2774 = vadd.xlane.f32.xlu0 %v2716
        %v2775 = vpop.xlane.xlu0 %2774
        %2776 = vadd.xlane.f32.xlu0 %v2717
        %v2777 = vpop.xlane.xlu0 %2776
        %2778 = vadd.xlane.f32.xlu0 %v2718
        %v2779 = vpop.xlane.xlu0 %2778
        %2780 = vadd.xlane.f32.xlu0 %v2719
        %v2781 = vpop.xlane.xlu0 %2780
        %2782 = vadd.xlane.f32.xlu0 %v2720
        %v2783 = vpop.xlane.xlu0 %2782
        %2784 = vadd.xlane.f32.xlu0 %v2721
        %v2785 = vpop.xlane.xlu0 %2784
        %v2786 = vmax.f32 %v2723, 1e-30
        %v2787 = vmax.f32 %v2725, 1e-30
        %v2788 = vmax.f32 %v2727, 1e-30
        %v2789 = vmax.f32 %v2729, 1e-30
        %v2790 = vmax.f32 %v2731, 1e-30
        %v2791 = vmax.f32 %v2733, 1e-30
        %v2792 = vmax.f32 %v2735, 1e-30
        %v2793 = vmax.f32 %v2737, 1e-30
        %v2794 = vmax.f32 %v2739, 1e-30
        %v2795 = vmax.f32 %v2741, 1e-30
        %v2796 = vmax.f32 %v2743, 1e-30
        %v2797 = vmax.f32 %v2745, 1e-30
        %v2798 = vmax.f32 %v2747, 1e-30
        %v2799 = vmax.f32 %v2749, 1e-30
        %v2800 = vmax.f32 %v2751, 1e-30
        %v2801 = vmax.f32 %v2753, 1e-30
        %v2802 = vmax.f32 %v2755, 1e-30
        %v2803 = vmax.f32 %v2757, 1e-30
        %v2804 = vmax.f32 %v2759, 1e-30
        %v2805 = vmax.f32 %v2761, 1e-30
        %v2806 = vmax.f32 %v2763, 1e-30
        %v2807 = vmax.f32 %v2765, 1e-30
        %v2808 = vmax.f32 %v2767, 1e-30
        %v2809 = vmax.f32 %v2769, 1e-30
        %v2810 = vmax.f32 %v2771, 1e-30
        %v2811 = vmax.f32 %v2773, 1e-30
        %v2812 = vmax.f32 %v2775, 1e-30
        %v2813 = vmax.f32 %v2777, 1e-30
        %v2814 = vmax.f32 %v2779, 1e-30
        %v2815 = vmax.f32 %v2781, 1e-30
        %v2816 = vmax.f32 %v2783, 1e-30
        %v2817 = vmax.f32 %v2785, 1e-30
        %v2818 = vrsqrt.pop %v2786
        %v2819 = vrsqrt.pop %v2787
        %v2820 = vrsqrt.pop %v2788
        %v2821 = vrsqrt.pop %v2789
        %v2822 = vrsqrt.pop %v2790
        %v2823 = vrsqrt.pop %v2791
        %v2824 = vrsqrt.pop %v2792
        %v2825 = vrsqrt.pop %v2793
        %v2826 = vrsqrt.pop %v2794
        %v2827 = vrsqrt.pop %v2795
        %v2828 = vrsqrt.pop %v2796
        %v2829 = vrsqrt.pop %v2797
        %v2830 = vrsqrt.pop %v2798
        %v2831 = vrsqrt.pop %v2799
        %v2832 = vrsqrt.pop %v2800
        %v2833 = vrsqrt.pop %v2801
        %v2834 = vrsqrt.pop %v2802
        %v2835 = vrsqrt.pop %v2803
        %v2836 = vrsqrt.pop %v2804
        %v2837 = vrsqrt.pop %v2805
        %v2838 = vrsqrt.pop %v2806
        %v2839 = vrsqrt.pop %v2807
        %v2840 = vrsqrt.pop %v2808
        %v2841 = vrsqrt.pop %v2809
        %v2842 = vrsqrt.pop %v2810
        %v2843 = vrsqrt.pop %v2811
        %v2844 = vrsqrt.pop %v2812
        %v2845 = vrsqrt.pop %v2813
        %v2846 = vrsqrt.pop %v2814
        %v2847 = vrsqrt.pop %v2815
        %v2848 = vrsqrt.pop %v2816
        %v2849 = vrsqrt.pop %v2817
        %v2850 = vmul.f32 %v2786, %v2818
        %v2851 = vmul.f32 %v2787, %v2819
        %v2852 = vmul.f32 %v2788, %v2820
        %v2853 = vmul.f32 %v2789, %v2821
        %v2854 = vmul.f32 %v2790, %v2822
        %v2855 = vmul.f32 %v2791, %v2823
        %v2856 = vmul.f32 %v2792, %v2824
        %v2857 = vmul.f32 %v2793, %v2825
        %v2858 = vmul.f32 %v2794, %v2826
        %v2859 = vmul.f32 %v2795, %v2827
        %v2860 = vmul.f32 %v2796, %v2828
        %v2861 = vmul.f32 %v2797, %v2829
        %v2862 = vmul.f32 %v2798, %v2830
        %v2863 = vmul.f32 %v2799, %v2831
        %v2864 = vmul.f32 %v2800, %v2832
        %v2865 = vmul.f32 %v2801, %v2833
        %v2866 = vmul.f32 %v2802, %v2834
        %v2867 = vmul.f32 %v2803, %v2835
        %v2868 = vmul.f32 %v2804, %v2836
        %v2869 = vmul.f32 %v2805, %v2837
        %v2870 = vmul.f32 %v2806, %v2838
        %v2871 = vmul.f32 %v2807, %v2839
        %v2872 = vmul.f32 %v2808, %v2840
        %v2873 = vmul.f32 %v2809, %v2841
        %v2874 = vmul.f32 %v2810, %v2842
        %v2875 = vmul.f32 %v2811, %v2843
        %v2876 = vmul.f32 %v2812, %v2844
        %v2877 = vmul.f32 %v2813, %v2845
        %v2878 = vmul.f32 %v2814, %v2846
        %v2879 = vmul.f32 %v2815, %v2847
        %v2880 = vmul.f32 %v2816, %v2848
        %v2881 = vmul.f32 %v2817, %v2849
        %v2882 = vmul.f32 %v2818, 0.996
        %v2883 = vmul.f32 %v2819, 0.996
        %v2884 = vmul.f32 %v2820, 0.996
        %v2885 = vmul.f32 %v2821, 0.996
        %v2886 = vmul.f32 %v2822, 0.996
        %v2887 = vmul.f32 %v2823, 0.996
        %v2888 = vmul.f32 %v2824, 0.996
        %v2889 = vmul.f32 %v2825, 0.996
        %v2890 = vmul.f32 %v2826, 0.996
        %v2891 = vmul.f32 %v2827, 0.996
        %v2892 = vmul.f32 %v2828, 0.996
        %v2893 = vmul.f32 %v2829, 0.996
        %v2894 = vmul.f32 %v2830, 0.996
        %v2895 = vmul.f32 %v2831, 0.996
        %v2896 = vmul.f32 %v2832, 0.996
        %v2897 = vmul.f32 %v2833, 0.996
        %v2898 = vmul.f32 %v2834, 0.996
        %v2899 = vmul.f32 %v2835, 0.996
        %v2900 = vmul.f32 %v2836, 0.996
        %v2901 = vmul.f32 %v2837, 0.996
        %v2902 = vmul.f32 %v2838, 0.996
        %v2903 = vmul.f32 %v2839, 0.996
        %v2904 = vmul.f32 %v2840, 0.996
        %v2905 = vmul.f32 %v2841, 0.996
        %v2906 = vmul.f32 %v2842, 0.996
        %v2907 = vmul.f32 %v2843, 0.996
        %v2908 = vmul.f32 %v2844, 0.996
        %v2909 = vmul.f32 %v2845, 0.996
        %v2910 = vmul.f32 %v2846, 0.996
        %v2911 = vmul.f32 %v2847, 0.996
        %v2912 = vmul.f32 %v2848, 0.996
        %v2913 = vmul.f32 %v2849, 0.996
        %v2914 = vmin.f32 %v2882, 1.0
        %v2915 = vmin.f32 %v2883, 1.0
        %v2916 = vmin.f32 %v2884, 1.0
        %v2917 = vmin.f32 %v2885, 1.0
        %v2918 = vmin.f32 %v2886, 1.0
        %v2919 = vmin.f32 %v2887, 1.0
        %v2920 = vmin.f32 %v2888, 1.0
        %v2921 = vmin.f32 %v2889, 1.0
        %v2922 = vmin.f32 %v2890, 1.0
        %v2923 = vmin.f32 %v2891, 1.0
        %v2924 = vmin.f32 %v2892, 1.0
        %v2925 = vmin.f32 %v2893, 1.0
        %v2926 = vmin.f32 %v2894, 1.0
        %v2927 = vmin.f32 %v2895, 1.0
        %v2928 = vmin.f32 %v2896, 1.0
        %v2929 = vmin.f32 %v2897, 1.0
        %v2930 = vmin.f32 %v2898, 1.0
        %v2931 = vmin.f32 %v2899, 1.0
        %v2932 = vmin.f32 %v2900, 1.0
        %v2933 = vmin.f32 %v2901, 1.0
        %v2934 = vmin.f32 %v2902, 1.0
        %v2935 = vmin.f32 %v2903, 1.0
        %v2936 = vmin.f32 %v2904, 1.0
        %v2937 = vmin.f32 %v2905, 1.0
        %v2938 = vmin.f32 %v2906, 1.0
        %v2939 = vmin.f32 %v2907, 1.0
        %v2940 = vmin.f32 %v2908, 1.0
        %v2941 = vmin.f32 %v2909, 1.0
        %v2942 = vmin.f32 %v2910, 1.0
        %v2943 = vmin.f32 %v2911, 1.0
        %v2944 = vmin.f32 %v2912, 1.0
        %v2945 = vmin.f32 %v2913, 1.0
        %v2946 = vmul.f32 %v2658, %v2914
        %v2947 = vmul.f32 %v2659, %v2915
        %v2948 = vmul.f32 %v2660, %v2916
        %v2949 = vmul.f32 %v2661, %v2917
        %v2950 = vmul.f32 %v2662, %v2918
        %v2951 = vmul.f32 %v2663, %v2919
        %v2952 = vmul.f32 %v2664, %v2920
        %v2953 = vmul.f32 %v2665, %v2921
        %v2954 = vmul.f32 %v2666, %v2922
        %v2955 = vmul.f32 %v2667, %v2923
        %v2956 = vmul.f32 %v2668, %v2924
        %v2957 = vmul.f32 %v2669, %v2925
        %v2958 = vmul.f32 %v2670, %v2926
        %v2959 = vmul.f32 %v2671, %v2927
        %v2960 = vmul.f32 %v2672, %v2928
        %v2961 = vmul.f32 %v2673, %v2929
        %v2962 = vmul.f32 %v2674, %v2930
        %v2963 = vmul.f32 %v2675, %v2931
        %v2964 = vmul.f32 %v2676, %v2932
        %v2965 = vmul.f32 %v2677, %v2933
        %v2966 = vmul.f32 %v2678, %v2934
        %v2967 = vmul.f32 %v2679, %v2935
        %v2968 = vmul.f32 %v2680, %v2936
        %v2969 = vmul.f32 %v2681, %v2937
        %v2970 = vmul.f32 %v2682, %v2938
        %v2971 = vmul.f32 %v2683, %v2939
        %v2972 = vmul.f32 %v2684, %v2940
        %v2973 = vmul.f32 %v2685, %v2941
        %v2974 = vmul.f32 %v2686, %v2942
        %v2975 = vmul.f32 %v2687, %v2943
        %v2976 = vmul.f32 %v2688, %v2944
        %v2977 = vmul.f32 %v2689, %v2945
        %v2978 = vmin.f32 %v2850, 0.996
        %v2979 = vmin.f32 %v2851, 0.996
        %v2980 = vmin.f32 %v2852, 0.996
        %v2981 = vmin.f32 %v2853, 0.996
        %v2982 = vmin.f32 %v2854, 0.996
        %v2983 = vmin.f32 %v2855, 0.996
        %v2984 = vmin.f32 %v2856, 0.996
        %v2985 = vmin.f32 %v2857, 0.996
        %v2986 = vmin.f32 %v2858, 0.996
        %v2987 = vmin.f32 %v2859, 0.996
        %v2988 = vmin.f32 %v2860, 0.996
        %v2989 = vmin.f32 %v2861, 0.996
        %v2990 = vmin.f32 %v2862, 0.996
        %v2991 = vmin.f32 %v2863, 0.996
        %v2992 = vmin.f32 %v2864, 0.996
        %v2993 = vmin.f32 %v2865, 0.996
        %v2994 = vmin.f32 %v2866, 0.996
        %v2995 = vmin.f32 %v2867, 0.996
        %v2996 = vmin.f32 %v2868, 0.996
        %v2997 = vmin.f32 %v2869, 0.996
        %v2998 = vmin.f32 %v2870, 0.996
        %v2999 = vmin.f32 %v2871, 0.996
        %v3000 = vmin.f32 %v2872, 0.996
        %v3001 = vmin.f32 %v2873, 0.996
        %v3002 = vmin.f32 %v2874, 0.996
        %v3003 = vmin.f32 %v2875, 0.996
        %v3004 = vmin.f32 %v2876, 0.996
        %v3005 = vmin.f32 %v2877, 0.996
        %v3006 = vmin.f32 %v2878, 0.996
        %v3007 = vmin.f32 %v2879, 0.996
        %v3008 = vmin.f32 %v2880, 0.996
        %v3009 = vmin.f32 %v2881, 0.996
        %v3010 = vmax.f32 %v2978, 1e-15
        %v3011 = vmax.f32 %v2979, 1e-15
        %v3012 = vmax.f32 %v2980, 1e-15
        %v3013 = vmax.f32 %v2981, 1e-15
        %v3014 = vmax.f32 %v2982, 1e-15
        %v3015 = vmax.f32 %v2983, 1e-15
        %v3016 = vmax.f32 %v2984, 1e-15
        %v3017 = vmax.f32 %v2985, 1e-15
        %v3018 = vmax.f32 %v2986, 1e-15
        %v3019 = vmax.f32 %v2987, 1e-15
        %v3020 = vmax.f32 %v2988, 1e-15
        %v3021 = vmax.f32 %v2989, 1e-15
        %v3022 = vmax.f32 %v2990, 1e-15
        %v3023 = vmax.f32 %v2991, 1e-15
        %v3024 = vmax.f32 %v2992, 1e-15
        %v3025 = vmax.f32 %v2993, 1e-15
        %v3026 = vmax.f32 %v2994, 1e-15
        %v3027 = vmax.f32 %v2995, 1e-15
        %v3028 = vmax.f32 %v2996, 1e-15
        %v3029 = vmax.f32 %v2997, 1e-15
        %v3030 = vmax.f32 %v2998, 1e-15
        %v3031 = vmax.f32 %v2999, 1e-15
        %v3032 = vmax.f32 %v3000, 1e-15
        %v3033 = vmax.f32 %v3001, 1e-15
        %v3034 = vmax.f32 %v3002, 1e-15
        %v3035 = vmax.f32 %v3003, 1e-15
        %v3036 = vmax.f32 %v3004, 1e-15
        %v3037 = vmax.f32 %v3005, 1e-15
        %v3038 = vmax.f32 %v3006, 1e-15
        %v3039 = vmax.f32 %v3007, 1e-15
        %v3040 = vmax.f32 %v3008, 1e-15
        %v3041 = vmax.f32 %v3009, 1e-15
        %v3042 = vmax.f32 %v3010, -0.9999999
        %v3043 = vmax.f32 %v3011, -0.9999999
        %v3044 = vmax.f32 %v3012, -0.9999999
        %v3045 = vmax.f32 %v3013, -0.9999999
        %v3046 = vmax.f32 %v3014, -0.9999999
        %v3047 = vmax.f32 %v3015, -0.9999999
        %v3048 = vmax.f32 %v3016, -0.9999999
        %v3049 = vmax.f32 %v3017, -0.9999999
        %v3050 = vmax.f32 %v3018, -0.9999999
        %v3051 = vmax.f32 %v3019, -0.9999999
        %v3052 = vmax.f32 %v3020, -0.9999999
        %v3053 = vmax.f32 %v3021, -0.9999999
        %v3054 = vmax.f32 %v3022, -0.9999999
        %v3055 = vmax.f32 %v3023, -0.9999999
        %v3056 = vmax.f32 %v3024, -0.9999999
        %v3057 = vmax.f32 %v3025, -0.9999999
        %v3058 = vmax.f32 %v3026, -0.9999999
        %v3059 = vmax.f32 %v3027, -0.9999999
        %v3060 = vmax.f32 %v3028, -0.9999999
        %v3061 = vmax.f32 %v3029, -0.9999999
        %v3062 = vmax.f32 %v3030, -0.9999999
        %v3063 = vmax.f32 %v3031, -0.9999999
        %v3064 = vmax.f32 %v3032, -0.9999999
        %v3065 = vmax.f32 %v3033, -0.9999999
        %v3066 = vmax.f32 %v3034, -0.9999999
        %v3067 = vmax.f32 %v3035, -0.9999999
        %v3068 = vmax.f32 %v3036, -0.9999999
        %v3069 = vmax.f32 %v3037, -0.9999999
        %v3070 = vmax.f32 %v3038, -0.9999999
        %v3071 = vmax.f32 %v3039, -0.9999999
        %v3072 = vmax.f32 %v3040, -0.9999999
        %v3073 = vmax.f32 %v3041, -0.9999999
        %v3074 = vmin.f32 %v3042, 0.9999999
        %v3075 = vmin.f32 %v3043, 0.9999999
        %v3076 = vmin.f32 %v3044, 0.9999999
        %v3077 = vmin.f32 %v3045, 0.9999999
        %v3078 = vmin.f32 %v3046, 0.9999999
        %v3079 = vmin.f32 %v3047, 0.9999999
        %v3080 = vmin.f32 %v3048, 0.9999999
        %v3081 = vmin.f32 %v3049, 0.9999999
        %v3082 = vmin.f32 %v3050, 0.9999999
        %v3083 = vmin.f32 %v3051, 0.9999999
        %v3084 = vmin.f32 %v3052, 0.9999999
        %v3085 = vmin.f32 %v3053, 0.9999999
        %v3086 = vmin.f32 %v3054, 0.9999999
        %v3087 = vmin.f32 %v3055, 0.9999999
        %v3088 = vmin.f32 %v3056, 0.9999999
        %v3089 = vmin.f32 %v3057, 0.9999999
        %v3090 = vmin.f32 %v3058, 0.9999999
        %v3091 = vmin.f32 %v3059, 0.9999999
        %v3092 = vmin.f32 %v3060, 0.9999999
        %v3093 = vmin.f32 %v3061, 0.9999999
        %v3094 = vmin.f32 %v3062, 0.9999999
        %v3095 = vmin.f32 %v3063, 0.9999999
        %v3096 = vmin.f32 %v3064, 0.9999999
        %v3097 = vmin.f32 %v3065, 0.9999999
        %v3098 = vmin.f32 %v3066, 0.9999999
        %v3099 = vmin.f32 %v3067, 0.9999999
        %v3100 = vmin.f32 %v3068, 0.9999999
        %v3101 = vmin.f32 %v3069, 0.9999999
        %v3102 = vmin.f32 %v3070, 0.9999999
        %v3103 = vmin.f32 %v3071, 0.9999999
        %v3104 = vmin.f32 %v3072, 0.9999999
        %v3105 = vmin.f32 %v3073, 0.9999999
        %v3106 = vadd.f32 %v3074, 1.0
        %v3107 = vlog2.pop %v3106
        %v3108 = vmul.f32 %v3107, 0.6931472
        %v3109 = vmul.f32 -0.5, %v3074
        %v3110 = vadd.f32 %v3109, 1.0
        %v3111 = vmul.f32 %v3110, %v3074
        %v3112 = vand.u32 2147483647, %v3074
        %vm3113 = vcmp.lt.f32.partialorder %v3112, 0.0004427343
        %v3114 = vsel %vm3113, %v3111, %v3108
        %v3115 = vadd.f32 %v3075, 1.0
        %v3116 = vlog2.pop %v3115
        %v3117 = vmul.f32 %v3116, 0.6931472
        %v3118 = vmul.f32 -0.5, %v3075
        %v3119 = vadd.f32 %v3118, 1.0
        %v3120 = vmul.f32 %v3119, %v3075
        %v3121 = vand.u32 2147483647, %v3075
        %vm3122 = vcmp.lt.f32.partialorder %v3121, 0.0004427343
        %v3123 = vsel %vm3122, %v3120, %v3117
        %v3124 = vadd.f32 %v3076, 1.0
        %v3125 = vlog2.pop %v3124
        %v3126 = vmul.f32 %v3125, 0.6931472
        %v3127 = vmul.f32 -0.5, %v3076
        %v3128 = vadd.f32 %v3127, 1.0
        %v3129 = vmul.f32 %v3128, %v3076
        %v3130 = vand.u32 2147483647, %v3076
        %vm3131 = vcmp.lt.f32.partialorder %v3130, 0.0004427343
        %v3132 = vsel %vm3131, %v3129, %v3126
        %v3133 = vadd.f32 %v3077, 1.0
        %v3134 = vlog2.pop %v3133
        %v3135 = vmul.f32 %v3134, 0.6931472
        %v3136 = vmul.f32 -0.5, %v3077
        %v3137 = vadd.f32 %v3136, 1.0
        %v3138 = vmul.f32 %v3137, %v3077
        %v3139 = vand.u32 2147483647, %v3077
        %vm3140 = vcmp.lt.f32.partialorder %v3139, 0.0004427343
        %v3141 = vsel %vm3140, %v3138, %v3135
        %v3142 = vadd.f32 %v3078, 1.0
        %v3143 = vlog2.pop %v3142
        %v3144 = vmul.f32 %v3143, 0.6931472
        %v3145 = vmul.f32 -0.5, %v3078
        %v3146 = vadd.f32 %v3145, 1.0
        %v3147 = vmul.f32 %v3146, %v3078
        %v3148 = vand.u32 2147483647, %v3078
        %vm3149 = vcmp.lt.f32.partialorder %v3148, 0.0004427343
        %v3150 = vsel %vm3149, %v3147, %v3144
        %v3151 = vadd.f32 %v3079, 1.0
        %v3152 = vlog2.pop %v3151
        %v3153 = vmul.f32 %v3152, 0.6931472
        %v3154 = vmul.f32 -0.5, %v3079
        %v3155 = vadd.f32 %v3154, 1.0
        %v3156 = vmul.f32 %v3155, %v3079
        %v3157 = vand.u32 2147483647, %v3079
        %vm3158 = vcmp.lt.f32.partialorder %v3157, 0.0004427343
        %v3159 = vsel %vm3158, %v3156, %v3153
        %v3160 = vadd.f32 %v3080, 1.0
        %v3161 = vlog2.pop %v3160
        %v3162 = vmul.f32 %v3161, 0.6931472
        %v3163 = vmul.f32 -0.5, %v3080
        %v3164 = vadd.f32 %v3163, 1.0
        %v3165 = vmul.f32 %v3164, %v3080
        %v3166 = vand.u32 2147483647, %v3080
        %vm3167 = vcmp.lt.f32.partialorder %v3166, 0.0004427343
        %v3168 = vsel %vm3167, %v3165, %v3162
        %v3169 = vadd.f32 %v3081, 1.0
        %v3170 = vlog2.pop %v3169
        %v3171 = vmul.f32 %v3170, 0.6931472
        %v3172 = vmul.f32 -0.5, %v3081
        %v3173 = vadd.f32 %v3172, 1.0
        %v3174 = vmul.f32 %v3173, %v3081
        %v3175 = vand.u32 2147483647, %v3081
        %vm3176 = vcmp.lt.f32.partialorder %v3175, 0.0004427343
        %v3177 = vsel %vm3176, %v3174, %v3171
        %v3178 = vadd.f32 %v3082, 1.0
        %v3179 = vlog2.pop %v3178
        %v3180 = vmul.f32 %v3179, 0.6931472
        %v3181 = vmul.f32 -0.5, %v3082
        %v3182 = vadd.f32 %v3181, 1.0
        %v3183 = vmul.f32 %v3182, %v3082
        %v3184 = vand.u32 2147483647, %v3082
        %vm3185 = vcmp.lt.f32.partialorder %v3184, 0.0004427343
        %v3186 = vsel %vm3185, %v3183, %v3180
        %v3187 = vadd.f32 %v3083, 1.0
        %v3188 = vlog2.pop %v3187
        %v3189 = vmul.f32 %v3188, 0.6931472
        %v3190 = vmul.f32 -0.5, %v3083
        %v3191 = vadd.f32 %v3190, 1.0
        %v3192 = vmul.f32 %v3191, %v3083
        %v3193 = vand.u32 2147483647, %v3083
        %vm3194 = vcmp.lt.f32.partialorder %v3193, 0.0004427343
        %v3195 = vsel %vm3194, %v3192, %v3189
        %v3196 = vadd.f32 %v3084, 1.0
        %v3197 = vlog2.pop %v3196
        %v3198 = vmul.f32 %v3197, 0.6931472
        %v3199 = vmul.f32 -0.5, %v3084
        %v3200 = vadd.f32 %v3199, 1.0
        %v3201 = vmul.f32 %v3200, %v3084
        %v3202 = vand.u32 2147483647, %v3084
        %vm3203 = vcmp.lt.f32.partialorder %v3202, 0.0004427343
        %v3204 = vsel %vm3203, %v3201, %v3198
        %v3205 = vadd.f32 %v3085, 1.0
        %v3206 = vlog2.pop %v3205
        %v3207 = vmul.f32 %v3206, 0.6931472
        %v3208 = vmul.f32 -0.5, %v3085
        %v3209 = vadd.f32 %v3208, 1.0
        %v3210 = vmul.f32 %v3209, %v3085
        %v3211 = vand.u32 2147483647, %v3085
        %vm3212 = vcmp.lt.f32.partialorder %v3211, 0.0004427343
        %v3213 = vsel %vm3212, %v3210, %v3207
        %v3214 = vadd.f32 %v3086, 1.0
        %v3215 = vlog2.pop %v3214
        %v3216 = vmul.f32 %v3215, 0.6931472
        %v3217 = vmul.f32 -0.5, %v3086
        %v3218 = vadd.f32 %v3217, 1.0
        %v3219 = vmul.f32 %v3218, %v3086
        %v3220 = vand.u32 2147483647, %v3086
        %vm3221 = vcmp.lt.f32.partialorder %v3220, 0.0004427343
        %v3222 = vsel %vm3221, %v3219, %v3216
        %v3223 = vadd.f32 %v3087, 1.0
        %v3224 = vlog2.pop %v3223
        %v3225 = vmul.f32 %v3224, 0.6931472
        %v3226 = vmul.f32 -0.5, %v3087
        %v3227 = vadd.f32 %v3226, 1.0
        %v3228 = vmul.f32 %v3227, %v3087
        %v3229 = vand.u32 2147483647, %v3087
        %vm3230 = vcmp.lt.f32.partialorder %v3229, 0.0004427343
        %v3231 = vsel %vm3230, %v3228, %v3225
        %v3232 = vadd.f32 %v3088, 1.0
        %v3233 = vlog2.pop %v3232
        %v3234 = vmul.f32 %v3233, 0.6931472
        %v3235 = vmul.f32 -0.5, %v3088
        %v3236 = vadd.f32 %v3235, 1.0
        %v3237 = vmul.f32 %v3236, %v3088
        %v3238 = vand.u32 2147483647, %v3088
        %vm3239 = vcmp.lt.f32.partialorder %v3238, 0.0004427343
        %v3240 = vsel %vm3239, %v3237, %v3234
        %v3241 = vadd.f32 %v3089, 1.0
        %v3242 = vlog2.pop %v3241
        %v3243 = vmul.f32 %v3242, 0.6931472
        %v3244 = vmul.f32 -0.5, %v3089
        %v3245 = vadd.f32 %v3244, 1.0
        %v3246 = vmul.f32 %v3245, %v3089
        %v3247 = vand.u32 2147483647, %v3089
        %vm3248 = vcmp.lt.f32.partialorder %v3247, 0.0004427343
        %v3249 = vsel %vm3248, %v3246, %v3243
        %v3250 = vadd.f32 %v3090, 1.0
        %v3251 = vlog2.pop %v3250
        %v3252 = vmul.f32 %v3251, 0.6931472
        %v3253 = vmul.f32 -0.5, %v3090
        %v3254 = vadd.f32 %v3253, 1.0
        %v3255 = vmul.f32 %v3254, %v3090
        %v3256 = vand.u32 2147483647, %v3090
        %vm3257 = vcmp.lt.f32.partialorder %v3256, 0.0004427343
        %v3258 = vsel %vm3257, %v3255, %v3252
        %v3259 = vadd.f32 %v3091, 1.0
        %v3260 = vlog2.pop %v3259
        %v3261 = vmul.f32 %v3260, 0.6931472
        %v3262 = vmul.f32 -0.5, %v3091
        %v3263 = vadd.f32 %v3262, 1.0
        %v3264 = vmul.f32 %v3263, %v3091
        %v3265 = vand.u32 2147483647, %v3091
        %vm3266 = vcmp.lt.f32.partialorder %v3265, 0.0004427343
        %v3267 = vsel %vm3266, %v3264, %v3261
        %v3268 = vadd.f32 %v3092, 1.0
        %v3269 = vlog2.pop %v3268
        %v3270 = vmul.f32 %v3269, 0.6931472
        %v3271 = vmul.f32 -0.5, %v3092
        %v3272 = vadd.f32 %v3271, 1.0
        %v3273 = vmul.f32 %v3272, %v3092
        %v3274 = vand.u32 2147483647, %v3092
        %vm3275 = vcmp.lt.f32.partialorder %v3274, 0.0004427343
        %v3276 = vsel %vm3275, %v3273, %v3270
        %v3277 = vadd.f32 %v3093, 1.0
        %v3278 = vlog2.pop %v3277
        %v3279 = vmul.f32 %v3278, 0.6931472
        %v3280 = vmul.f32 -0.5, %v3093
        %v3281 = vadd.f32 %v3280, 1.0
        %v3282 = vmul.f32 %v3281, %v3093
        %v3283 = vand.u32 2147483647, %v3093
        %vm3284 = vcmp.lt.f32.partialorder %v3283, 0.0004427343
        %v3285 = vsel %vm3284, %v3282, %v3279
        %v3286 = vadd.f32 %v3094, 1.0
        %v3287 = vlog2.pop %v3286
        %v3288 = vmul.f32 %v3287, 0.6931472
        %v3289 = vmul.f32 -0.5, %v3094
        %v3290 = vadd.f32 %v3289, 1.0
        %v3291 = vmul.f32 %v3290, %v3094
        %v3292 = vand.u32 2147483647, %v3094
        %vm3293 = vcmp.lt.f32.partialorder %v3292, 0.0004427343
        %v3294 = vsel %vm3293, %v3291, %v3288
        %v3295 = vadd.f32 %v3095, 1.0
        %v3296 = vlog2.pop %v3295
        %v3297 = vmul.f32 %v3296, 0.6931472
        %v3298 = vmul.f32 -0.5, %v3095
        %v3299 = vadd.f32 %v3298, 1.0
        %v3300 = vmul.f32 %v3299, %v3095
        %v3301 = vand.u32 2147483647, %v3095
        %vm3302 = vcmp.lt.f32.partialorder %v3301, 0.0004427343
        %v3303 = vsel %vm3302, %v3300, %v3297
        %v3304 = vadd.f32 %v3096, 1.0
        %v3305 = vlog2.pop %v3304
        %v3306 = vmul.f32 %v3305, 0.6931472
        %v3307 = vmul.f32 -0.5, %v3096
        %v3308 = vadd.f32 %v3307, 1.0
        %v3309 = vmul.f32 %v3308, %v3096
        %v3310 = vand.u32 2147483647, %v3096
        %vm3311 = vcmp.lt.f32.partialorder %v3310, 0.0004427343
        %v3312 = vsel %vm3311, %v3309, %v3306
        %v3313 = vadd.f32 %v3097, 1.0
        %v3314 = vlog2.pop %v3313
        %v3315 = vmul.f32 %v3314, 0.6931472
        %v3316 = vmul.f32 -0.5, %v3097
        %v3317 = vadd.f32 %v3316, 1.0
        %v3318 = vmul.f32 %v3317, %v3097
        %v3319 = vand.u32 2147483647, %v3097
        %vm3320 = vcmp.lt.f32.partialorder %v3319, 0.0004427343
        %v3321 = vsel %vm3320, %v3318, %v3315
        %v3322 = vadd.f32 %v3098, 1.0
        %v3323 = vlog2.pop %v3322
        %v3324 = vmul.f32 %v3323, 0.6931472
        %v3325 = vmul.f32 -0.5, %v3098
        %v3326 = vadd.f32 %v3325, 1.0
        %v3327 = vmul.f32 %v3326, %v3098
        %v3328 = vand.u32 2147483647, %v3098
        %vm3329 = vcmp.lt.f32.partialorder %v3328, 0.0004427343
        %v3330 = vsel %vm3329, %v3327, %v3324
        %v3331 = vadd.f32 %v3099, 1.0
        %v3332 = vlog2.pop %v3331
        %v3333 = vmul.f32 %v3332, 0.6931472
        %v3334 = vmul.f32 -0.5, %v3099
        %v3335 = vadd.f32 %v3334, 1.0
        %v3336 = vmul.f32 %v3335, %v3099
        %v3337 = vand.u32 2147483647, %v3099
        %vm3338 = vcmp.lt.f32.partialorder %v3337, 0.0004427343
        %v3339 = vsel %vm3338, %v3336, %v3333
        %v3340 = vadd.f32 %v3100, 1.0
        %v3341 = vlog2.pop %v3340
        %v3342 = vmul.f32 %v3341, 0.6931472
        %v3343 = vmul.f32 -0.5, %v3100
        %v3344 = vadd.f32 %v3343, 1.0
        %v3345 = vmul.f32 %v3344, %v3100
        %v3346 = vand.u32 2147483647, %v3100
        %vm3347 = vcmp.lt.f32.partialorder %v3346, 0.0004427343
        %v3348 = vsel %vm3347, %v3345, %v3342
        %v3349 = vadd.f32 %v3101, 1.0
        %v3350 = vlog2.pop %v3349
        %v3351 = vmul.f32 %v3350, 0.6931472
        %v3352 = vmul.f32 -0.5, %v3101
        %v3353 = vadd.f32 %v3352, 1.0
        %v3354 = vmul.f32 %v3353, %v3101
        %v3355 = vand.u32 2147483647, %v3101
        %vm3356 = vcmp.lt.f32.partialorder %v3355, 0.0004427343
        %v3357 = vsel %vm3356, %v3354, %v3351
        %v3358 = vadd.f32 %v3102, 1.0
        %v3359 = vlog2.pop %v3358
        %v3360 = vmul.f32 %v3359, 0.6931472
        %v3361 = vmul.f32 -0.5, %v3102
        %v3362 = vadd.f32 %v3361, 1.0
        %v3363 = vmul.f32 %v3362, %v3102
        %v3364 = vand.u32 2147483647, %v3102
        %vm3365 = vcmp.lt.f32.partialorder %v3364, 0.0004427343
        %v3366 = vsel %vm3365, %v3363, %v3360
        %v3367 = vadd.f32 %v3103, 1.0
        %v3368 = vlog2.pop %v3367
        %v3369 = vmul.f32 %v3368, 0.6931472
        %v3370 = vmul.f32 -0.5, %v3103
        %v3371 = vadd.f32 %v3370, 1.0
        %v3372 = vmul.f32 %v3371, %v3103
        %v3373 = vand.u32 2147483647, %v3103
        %vm3374 = vcmp.lt.f32.partialorder %v3373, 0.0004427343
        %v3375 = vsel %vm3374, %v3372, %v3369
        %v3376 = vadd.f32 %v3104, 1.0
        %v3377 = vlog2.pop %v3376
        %v3378 = vmul.f32 %v3377, 0.6931472
        %v3379 = vmul.f32 -0.5, %v3104
        %v3380 = vadd.f32 %v3379, 1.0
        %v3381 = vmul.f32 %v3380, %v3104
        %v3382 = vand.u32 2147483647, %v3104
        %vm3383 = vcmp.lt.f32.partialorder %v3382, 0.0004427343
        %v3384 = vsel %vm3383, %v3381, %v3378
        %v3385 = vadd.f32 %v3105, 1.0
        %v3386 = vlog2.pop %v3385
        %v3387 = vmul.f32 %v3386, 0.6931472
        %v3388 = vmul.f32 -0.5, %v3105
        %v3389 = vadd.f32 %v3388, 1.0
        %v3390 = vmul.f32 %v3389, %v3105
        %v3391 = vand.u32 2147483647, %v3105
        %vm3392 = vcmp.lt.f32.partialorder %v3391, 0.0004427343
        %v3393 = vsel %vm3392, %v3390, %v3387
        %v3394 = vsub.f32 0.0, %v3074
        %v3395 = vsub.f32 0.0, %v3075
        %v3396 = vsub.f32 0.0, %v3076
        %v3397 = vsub.f32 0.0, %v3077
        %v3398 = vsub.f32 0.0, %v3078
        %v3399 = vsub.f32 0.0, %v3079
        %v3400 = vsub.f32 0.0, %v3080
        %v3401 = vsub.f32 0.0, %v3081
        %v3402 = vsub.f32 0.0, %v3082
        %v3403 = vsub.f32 0.0, %v3083
        %v3404 = vsub.f32 0.0, %v3084
        %v3405 = vsub.f32 0.0, %v3085
        %v3406 = vsub.f32 0.0, %v3086
        %v3407 = vsub.f32 0.0, %v3087
        %v3408 = vsub.f32 0.0, %v3088
        %v3409 = vsub.f32 0.0, %v3089
        %v3410 = vsub.f32 0.0, %v3090
        %v3411 = vsub.f32 0.0, %v3091
        %v3412 = vsub.f32 0.0, %v3092
        %v3413 = vsub.f32 0.0, %v3093
        %v3414 = vsub.f32 0.0, %v3094
        %v3415 = vsub.f32 0.0, %v3095
        %v3416 = vsub.f32 0.0, %v3096
        %v3417 = vsub.f32 0.0, %v3097
        %v3418 = vsub.f32 0.0, %v3098
        %v3419 = vsub.f32 0.0, %v3099
        %v3420 = vsub.f32 0.0, %v3100
        %v3421 = vsub.f32 0.0, %v3101
        %v3422 = vsub.f32 0.0, %v3102
        %v3423 = vsub.f32 0.0, %v3103
        %v3424 = vsub.f32 0.0, %v3104
        %v3425 = vsub.f32 0.0, %v3105
        %v3426 = vadd.f32 %v3394, 1.0
        %v3427 = vlog2.pop %v3426
        %v3428 = vmul.f32 %v3427, 0.6931472
        %v3429 = vmul.f32 -0.5, %v3394
        %v3430 = vadd.f32 %v3429, 1.0
        %v3431 = vmul.f32 %v3430, %v3394
        %v3432 = vand.u32 2147483647, %v3394
        %vm3433 = vcmp.lt.f32.partialorder %v3432, 0.0004427343
        %v3434 = vsel %vm3433, %v3431, %v3428
        %v3435 = vadd.f32 %v3395, 1.0
        %v3436 = vlog2.pop %v3435
        %v3437 = vmul.f32 %v3436, 0.6931472
        %v3438 = vmul.f32 -0.5, %v3395
        %v3439 = vadd.f32 %v3438, 1.0
        %v3440 = vmul.f32 %v3439, %v3395
        %v3441 = vand.u32 2147483647, %v3395
        %vm3442 = vcmp.lt.f32.partialorder %v3441, 0.0004427343
        %v3443 = vsel %vm3442, %v3440, %v3437
        %v3444 = vadd.f32 %v3396, 1.0
        %v3445 = vlog2.pop %v3444
        %v3446 = vmul.f32 %v3445, 0.6931472
        %v3447 = vmul.f32 -0.5, %v3396
        %v3448 = vadd.f32 %v3447, 1.0
        %v3449 = vmul.f32 %v3448, %v3396
        %v3450 = vand.u32 2147483647, %v3396
        %vm3451 = vcmp.lt.f32.partialorder %v3450, 0.0004427343
        %v3452 = vsel %vm3451, %v3449, %v3446
        %v3453 = vadd.f32 %v3397, 1.0
        %v3454 = vlog2.pop %v3453
        %v3455 = vmul.f32 %v3454, 0.6931472
        %v3456 = vmul.f32 -0.5, %v3397
        %v3457 = vadd.f32 %v3456, 1.0
        %v3458 = vmul.f32 %v3457, %v3397
        %v3459 = vand.u32 2147483647, %v3397
        %vm3460 = vcmp.lt.f32.partialorder %v3459, 0.0004427343
        %v3461 = vsel %vm3460, %v3458, %v3455
        %v3462 = vadd.f32 %v3398, 1.0
        %v3463 = vlog2.pop %v3462
        %v3464 = vmul.f32 %v3463, 0.6931472
        %v3465 = vmul.f32 -0.5, %v3398
        %v3466 = vadd.f32 %v3465, 1.0
        %v3467 = vmul.f32 %v3466, %v3398
        %v3468 = vand.u32 2147483647, %v3398
        %vm3469 = vcmp.lt.f32.partialorder %v3468, 0.0004427343
        %v3470 = vsel %vm3469, %v3467, %v3464
        %v3471 = vadd.f32 %v3399, 1.0
        %v3472 = vlog2.pop %v3471
        %v3473 = vmul.f32 %v3472, 0.6931472
        %v3474 = vmul.f32 -0.5, %v3399
        %v3475 = vadd.f32 %v3474, 1.0
        %v3476 = vmul.f32 %v3475, %v3399
        %v3477 = vand.u32 2147483647, %v3399
        %vm3478 = vcmp.lt.f32.partialorder %v3477, 0.0004427343
        %v3479 = vsel %vm3478, %v3476, %v3473
        %v3480 = vadd.f32 %v3400, 1.0
        %v3481 = vlog2.pop %v3480
        %v3482 = vmul.f32 %v3481, 0.6931472
        %v3483 = vmul.f32 -0.5, %v3400
        %v3484 = vadd.f32 %v3483, 1.0
        %v3485 = vmul.f32 %v3484, %v3400
        %v3486 = vand.u32 2147483647, %v3400
        %vm3487 = vcmp.lt.f32.partialorder %v3486, 0.0004427343
        %v3488 = vsel %vm3487, %v3485, %v3482
        %v3489 = vadd.f32 %v3401, 1.0
        %v3490 = vlog2.pop %v3489
        %v3491 = vmul.f32 %v3490, 0.6931472
        %v3492 = vmul.f32 -0.5, %v3401
        %v3493 = vadd.f32 %v3492, 1.0
        %v3494 = vmul.f32 %v3493, %v3401
        %v3495 = vand.u32 2147483647, %v3401
        %vm3496 = vcmp.lt.f32.partialorder %v3495, 0.0004427343
        %v3497 = vsel %vm3496, %v3494, %v3491
        %v3498 = vadd.f32 %v3402, 1.0
        %v3499 = vlog2.pop %v3498
        %v3500 = vmul.f32 %v3499, 0.6931472
        %v3501 = vmul.f32 -0.5, %v3402
        %v3502 = vadd.f32 %v3501, 1.0
        %v3503 = vmul.f32 %v3502, %v3402
        %v3504 = vand.u32 2147483647, %v3402
        %vm3505 = vcmp.lt.f32.partialorder %v3504, 0.0004427343
        %v3506 = vsel %vm3505, %v3503, %v3500
        %v3507 = vadd.f32 %v3403, 1.0
        %v3508 = vlog2.pop %v3507
        %v3509 = vmul.f32 %v3508, 0.6931472
        %v3510 = vmul.f32 -0.5, %v3403
        %v3511 = vadd.f32 %v3510, 1.0
        %v3512 = vmul.f32 %v3511, %v3403
        %v3513 = vand.u32 2147483647, %v3403
        %vm3514 = vcmp.lt.f32.partialorder %v3513, 0.0004427343
        %v3515 = vsel %vm3514, %v3512, %v3509
        %v3516 = vadd.f32 %v3404, 1.0
        %v3517 = vlog2.pop %v3516
        %v3518 = vmul.f32 %v3517, 0.6931472
        %v3519 = vmul.f32 -0.5, %v3404
        %v3520 = vadd.f32 %v3519, 1.0
        %v3521 = vmul.f32 %v3520, %v3404
        %v3522 = vand.u32 2147483647, %v3404
        %vm3523 = vcmp.lt.f32.partialorder %v3522, 0.0004427343
        %v3524 = vsel %vm3523, %v3521, %v3518
        %v3525 = vadd.f32 %v3405, 1.0
        %v3526 = vlog2.pop %v3525
        %v3527 = vmul.f32 %v3526, 0.6931472
        %v3528 = vmul.f32 -0.5, %v3405
        %v3529 = vadd.f32 %v3528, 1.0
        %v3530 = vmul.f32 %v3529, %v3405
        %v3531 = vand.u32 2147483647, %v3405
        %vm3532 = vcmp.lt.f32.partialorder %v3531, 0.0004427343
        %v3533 = vsel %vm3532, %v3530, %v3527
        %v3534 = vadd.f32 %v3406, 1.0
        %v3535 = vlog2.pop %v3534
        %v3536 = vmul.f32 %v3535, 0.6931472
        %v3537 = vmul.f32 -0.5, %v3406
        %v3538 = vadd.f32 %v3537, 1.0
        %v3539 = vmul.f32 %v3538, %v3406
        %v3540 = vand.u32 2147483647, %v3406
        %vm3541 = vcmp.lt.f32.partialorder %v3540, 0.0004427343
        %v3542 = vsel %vm3541, %v3539, %v3536
        %v3543 = vadd.f32 %v3407, 1.0
        %v3544 = vlog2.pop %v3543
        %v3545 = vmul.f32 %v3544, 0.6931472
        %v3546 = vmul.f32 -0.5, %v3407
        %v3547 = vadd.f32 %v3546, 1.0
        %v3548 = vmul.f32 %v3547, %v3407
        %v3549 = vand.u32 2147483647, %v3407
        %vm3550 = vcmp.lt.f32.partialorder %v3549, 0.0004427343
        %v3551 = vsel %vm3550, %v3548, %v3545
        %v3552 = vadd.f32 %v3408, 1.0
        %v3553 = vlog2.pop %v3552
        %v3554 = vmul.f32 %v3553, 0.6931472
        %v3555 = vmul.f32 -0.5, %v3408
        %v3556 = vadd.f32 %v3555, 1.0
        %v3557 = vmul.f32 %v3556, %v3408
        %v3558 = vand.u32 2147483647, %v3408
        %vm3559 = vcmp.lt.f32.partialorder %v3558, 0.0004427343
        %v3560 = vsel %vm3559, %v3557, %v3554
        %v3561 = vadd.f32 %v3409, 1.0
        %v3562 = vlog2.pop %v3561
        %v3563 = vmul.f32 %v3562, 0.6931472
        %v3564 = vmul.f32 -0.5, %v3409
        %v3565 = vadd.f32 %v3564, 1.0
        %v3566 = vmul.f32 %v3565, %v3409
        %v3567 = vand.u32 2147483647, %v3409
        %vm3568 = vcmp.lt.f32.partialorder %v3567, 0.0004427343
        %v3569 = vsel %vm3568, %v3566, %v3563
        %v3570 = vadd.f32 %v3410, 1.0
        %v3571 = vlog2.pop %v3570
        %v3572 = vmul.f32 %v3571, 0.6931472
        %v3573 = vmul.f32 -0.5, %v3410
        %v3574 = vadd.f32 %v3573, 1.0
        %v3575 = vmul.f32 %v3574, %v3410
        %v3576 = vand.u32 2147483647, %v3410
        %vm3577 = vcmp.lt.f32.partialorder %v3576, 0.0004427343
        %v3578 = vsel %vm3577, %v3575, %v3572
        %v3579 = vadd.f32 %v3411, 1.0
        %v3580 = vlog2.pop %v3579
        %v3581 = vmul.f32 %v3580, 0.6931472
        %v3582 = vmul.f32 -0.5, %v3411
        %v3583 = vadd.f32 %v3582, 1.0
        %v3584 = vmul.f32 %v3583, %v3411
        %v3585 = vand.u32 2147483647, %v3411
        %vm3586 = vcmp.lt.f32.partialorder %v3585, 0.0004427343
        %v3587 = vsel %vm3586, %v3584, %v3581
        %v3588 = vadd.f32 %v3412, 1.0
        %v3589 = vlog2.pop %v3588
        %v3590 = vmul.f32 %v3589, 0.6931472
        %v3591 = vmul.f32 -0.5, %v3412
        %v3592 = vadd.f32 %v3591, 1.0
        %v3593 = vmul.f32 %v3592, %v3412
        %v3594 = vand.u32 2147483647, %v3412
        %vm3595 = vcmp.lt.f32.partialorder %v3594, 0.0004427343
        %v3596 = vsel %vm3595, %v3593, %v3590
        %v3597 = vadd.f32 %v3413, 1.0
        %v3598 = vlog2.pop %v3597
        %v3599 = vmul.f32 %v3598, 0.6931472
        %v3600 = vmul.f32 -0.5, %v3413
        %v3601 = vadd.f32 %v3600, 1.0
        %v3602 = vmul.f32 %v3601, %v3413
        %v3603 = vand.u32 2147483647, %v3413
        %vm3604 = vcmp.lt.f32.partialorder %v3603, 0.0004427343
        %v3605 = vsel %vm3604, %v3602, %v3599
        %v3606 = vadd.f32 %v3414, 1.0
        %v3607 = vlog2.pop %v3606
        %v3608 = vmul.f32 %v3607, 0.6931472
        %v3609 = vmul.f32 -0.5, %v3414
        %v3610 = vadd.f32 %v3609, 1.0
        %v3611 = vmul.f32 %v3610, %v3414
        %v3612 = vand.u32 2147483647, %v3414
        %vm3613 = vcmp.lt.f32.partialorder %v3612, 0.0004427343
        %v3614 = vsel %vm3613, %v3611, %v3608
        %v3615 = vadd.f32 %v3415, 1.0
        %v3616 = vlog2.pop %v3615
        %v3617 = vmul.f32 %v3616, 0.6931472
        %v3618 = vmul.f32 -0.5, %v3415
        %v3619 = vadd.f32 %v3618, 1.0
        %v3620 = vmul.f32 %v3619, %v3415
        %v3621 = vand.u32 2147483647, %v3415
        %vm3622 = vcmp.lt.f32.partialorder %v3621, 0.0004427343
        %v3623 = vsel %vm3622, %v3620, %v3617
        %v3624 = vadd.f32 %v3416, 1.0
        %v3625 = vlog2.pop %v3624
        %v3626 = vmul.f32 %v3625, 0.6931472
        %v3627 = vmul.f32 -0.5, %v3416
        %v3628 = vadd.f32 %v3627, 1.0
        %v3629 = vmul.f32 %v3628, %v3416
        %v3630 = vand.u32 2147483647, %v3416
        %vm3631 = vcmp.lt.f32.partialorder %v3630, 0.0004427343
        %v3632 = vsel %vm3631, %v3629, %v3626
        %v3633 = vadd.f32 %v3417, 1.0
        %v3634 = vlog2.pop %v3633
        %v3635 = vmul.f32 %v3634, 0.6931472
        %v3636 = vmul.f32 -0.5, %v3417
        %v3637 = vadd.f32 %v3636, 1.0
        %v3638 = vmul.f32 %v3637, %v3417
        %v3639 = vand.u32 2147483647, %v3417
        %vm3640 = vcmp.lt.f32.partialorder %v3639, 0.0004427343
        %v3641 = vsel %vm3640, %v3638, %v3635
        %v3642 = vadd.f32 %v3418, 1.0
        %v3643 = vlog2.pop %v3642
        %v3644 = vmul.f32 %v3643, 0.6931472
        %v3645 = vmul.f32 -0.5, %v3418
        %v3646 = vadd.f32 %v3645, 1.0
        %v3647 = vmul.f32 %v3646, %v3418
        %v3648 = vand.u32 2147483647, %v3418
        %vm3649 = vcmp.lt.f32.partialorder %v3648, 0.0004427343
        %v3650 = vsel %vm3649, %v3647, %v3644
        %v3651 = vadd.f32 %v3419, 1.0
        %v3652 = vlog2.pop %v3651
        %v3653 = vmul.f32 %v3652, 0.6931472
        %v3654 = vmul.f32 -0.5, %v3419
        %v3655 = vadd.f32 %v3654, 1.0
        %v3656 = vmul.f32 %v3655, %v3419
        %v3657 = vand.u32 2147483647, %v3419
        %vm3658 = vcmp.lt.f32.partialorder %v3657, 0.0004427343
        %v3659 = vsel %vm3658, %v3656, %v3653
        %v3660 = vadd.f32 %v3420, 1.0
        %v3661 = vlog2.pop %v3660
        %v3662 = vmul.f32 %v3661, 0.6931472
        %v3663 = vmul.f32 -0.5, %v3420
        %v3664 = vadd.f32 %v3663, 1.0
        %v3665 = vmul.f32 %v3664, %v3420
        %v3666 = vand.u32 2147483647, %v3420
        %vm3667 = vcmp.lt.f32.partialorder %v3666, 0.0004427343
        %v3668 = vsel %vm3667, %v3665, %v3662
        %v3669 = vadd.f32 %v3421, 1.0
        %v3670 = vlog2.pop %v3669
        %v3671 = vmul.f32 %v3670, 0.6931472
        %v3672 = vmul.f32 -0.5, %v3421
        %v3673 = vadd.f32 %v3672, 1.0
        %v3674 = vmul.f32 %v3673, %v3421
        %v3675 = vand.u32 2147483647, %v3421
        %vm3676 = vcmp.lt.f32.partialorder %v3675, 0.0004427343
        %v3677 = vsel %vm3676, %v3674, %v3671
        %v3678 = vadd.f32 %v3422, 1.0
        %v3679 = vlog2.pop %v3678
        %v3680 = vmul.f32 %v3679, 0.6931472
        %v3681 = vmul.f32 -0.5, %v3422
        %v3682 = vadd.f32 %v3681, 1.0
        %v3683 = vmul.f32 %v3682, %v3422
        %v3684 = vand.u32 2147483647, %v3422
        %vm3685 = vcmp.lt.f32.partialorder %v3684, 0.0004427343
        %v3686 = vsel %vm3685, %v3683, %v3680
        %v3687 = vadd.f32 %v3423, 1.0
        %v3688 = vlog2.pop %v3687
        %v3689 = vmul.f32 %v3688, 0.6931472
        %v3690 = vmul.f32 -0.5, %v3423
        %v3691 = vadd.f32 %v3690, 1.0
        %v3692 = vmul.f32 %v3691, %v3423
        %v3693 = vand.u32 2147483647, %v3423
        %vm3694 = vcmp.lt.f32.partialorder %v3693, 0.0004427343
        %v3695 = vsel %vm3694, %v3692, %v3689
        %v3696 = vadd.f32 %v3424, 1.0
        %v3697 = vlog2.pop %v3696
        %v3698 = vmul.f32 %v3697, 0.6931472
        %v3699 = vmul.f32 -0.5, %v3424
        %v3700 = vadd.f32 %v3699, 1.0
        %v3701 = vmul.f32 %v3700, %v3424
        %v3702 = vand.u32 2147483647, %v3424
        %vm3703 = vcmp.lt.f32.partialorder %v3702, 0.0004427343
        %v3704 = vsel %vm3703, %v3701, %v3698
        %v3705 = vadd.f32 %v3425, 1.0
        %v3706 = vlog2.pop %v3705
        %v3707 = vmul.f32 %v3706, 0.6931472
        %v3708 = vmul.f32 -0.5, %v3425
        %v3709 = vadd.f32 %v3708, 1.0
        %v3710 = vmul.f32 %v3709, %v3425
        %v3711 = vand.u32 2147483647, %v3425
        %vm3712 = vcmp.lt.f32.partialorder %v3711, 0.0004427343
        %v3713 = vsel %vm3712, %v3710, %v3707
        %v3714 = vsub.f32 %v3114, %v3434
        %v3715 = vsub.f32 %v3123, %v3443
        %v3716 = vsub.f32 %v3132, %v3452
        %v3717 = vsub.f32 %v3141, %v3461
        %v3718 = vsub.f32 %v3150, %v3470
        %v3719 = vsub.f32 %v3159, %v3479
        %v3720 = vsub.f32 %v3168, %v3488
        %v3721 = vsub.f32 %v3177, %v3497
        %v3722 = vsub.f32 %v3186, %v3506
        %v3723 = vsub.f32 %v3195, %v3515
        %v3724 = vsub.f32 %v3204, %v3524
        %v3725 = vsub.f32 %v3213, %v3533
        %v3726 = vsub.f32 %v3222, %v3542
        %v3727 = vsub.f32 %v3231, %v3551
        %v3728 = vsub.f32 %v3240, %v3560
        %v3729 = vsub.f32 %v3249, %v3569
        %v3730 = vsub.f32 %v3258, %v3578
        %v3731 = vsub.f32 %v3267, %v3587
        %v3732 = vsub.f32 %v3276, %v3596
        %v3733 = vsub.f32 %v3285, %v3605
        %v3734 = vsub.f32 %v3294, %v3614
        %v3735 = vsub.f32 %v3303, %v3623
        %v3736 = vsub.f32 %v3312, %v3632
        %v3737 = vsub.f32 %v3321, %v3641
        %v3738 = vsub.f32 %v3330, %v3650
        %v3739 = vsub.f32 %v3339, %v3659
        %v3740 = vsub.f32 %v3348, %v3668
        %v3741 = vsub.f32 %v3357, %v3677
        %v3742 = vsub.f32 %v3366, %v3686
        %v3743 = vsub.f32 %v3375, %v3695
        %v3744 = vsub.f32 %v3384, %v3704
        %v3745 = vsub.f32 %v3393, %v3713
        %v3746 = vmul.f32 %v3714, 0.5
        %v3747 = vmul.f32 %v3715, 0.5
        %v3748 = vmul.f32 %v3716, 0.5
        %v3749 = vmul.f32 %v3717, 0.5
        %v3750 = vmul.f32 %v3718, 0.5
        %v3751 = vmul.f32 %v3719, 0.5
        %v3752 = vmul.f32 %v3720, 0.5
        %v3753 = vmul.f32 %v3721, 0.5
        %v3754 = vmul.f32 %v3722, 0.5
        %v3755 = vmul.f32 %v3723, 0.5
        %v3756 = vmul.f32 %v3724, 0.5
        %v3757 = vmul.f32 %v3725, 0.5
        %v3758 = vmul.f32 %v3726, 0.5
        %v3759 = vmul.f32 %v3727, 0.5
        %v3760 = vmul.f32 %v3728, 0.5
        %v3761 = vmul.f32 %v3729, 0.5
        %v3762 = vmul.f32 %v3730, 0.5
        %v3763 = vmul.f32 %v3731, 0.5
        %v3764 = vmul.f32 %v3732, 0.5
        %v3765 = vmul.f32 %v3733, 0.5
        %v3766 = vmul.f32 %v3734, 0.5
        %v3767 = vmul.f32 %v3735, 0.5
        %v3768 = vmul.f32 %v3736, 0.5
        %v3769 = vmul.f32 %v3737, 0.5
        %v3770 = vmul.f32 %v3738, 0.5
        %v3771 = vmul.f32 %v3739, 0.5
        %v3772 = vmul.f32 %v3740, 0.5
        %v3773 = vmul.f32 %v3741, 0.5
        %v3774 = vmul.f32 %v3742, 0.5
        %v3775 = vmul.f32 %v3743, 0.5
        %v3776 = vmul.f32 %v3744, 0.5
        %v3777 = vmul.f32 %v3745, 0.5
        %v3778 = vrcp.pop %v3010
        %v3779 = vmul.f32 %v3746, %v3778
        %v3780 = vrcp.pop %v3011
        %v3781 = vmul.f32 %v3747, %v3780
        %v3782 = vrcp.pop %v3012
        %v3783 = vmul.f32 %v3748, %v3782
        %v3784 = vrcp.pop %v3013
        %v3785 = vmul.f32 %v3749, %v3784
        %v3786 = vrcp.pop %v3014
        %v3787 = vmul.f32 %v3750, %v3786
        %v3788 = vrcp.pop %v3015
        %v3789 = vmul.f32 %v3751, %v3788
        %v3790 = vrcp.pop %v3016
        %v3791 = vmul.f32 %v3752, %v3790
        %v3792 = vrcp.pop %v3017
        %v3793 = vmul.f32 %v3753, %v3792
        %v3794 = vrcp.pop %v3018
        %v3795 = vmul.f32 %v3754, %v3794
        %v3796 = vrcp.pop %v3019
        %v3797 = vmul.f32 %v3755, %v3796
        %v3798 = vrcp.pop %v3020
        %v3799 = vmul.f32 %v3756, %v3798
        %v3800 = vrcp.pop %v3021
        %v3801 = vmul.f32 %v3757, %v3800
        %v3802 = vrcp.pop %v3022
        %v3803 = vmul.f32 %v3758, %v3802
        %v3804 = vrcp.pop %v3023
        %v3805 = vmul.f32 %v3759, %v3804
        %v3806 = vrcp.pop %v3024
        %v3807 = vmul.f32 %v3760, %v3806
        %v3808 = vrcp.pop %v3025
        %v3809 = vmul.f32 %v3761, %v3808
        %v3810 = vrcp.pop %v3026
        %v3811 = vmul.f32 %v3762, %v3810
        %v3812 = vrcp.pop %v3027
        %v3813 = vmul.f32 %v3763, %v3812
        %v3814 = vrcp.pop %v3028
        %v3815 = vmul.f32 %v3764, %v3814
        %v3816 = vrcp.pop %v3029
        %v3817 = vmul.f32 %v3765, %v3816
        %v3818 = vrcp.pop %v3030
        %v3819 = vmul.f32 %v3766, %v3818
        %v3820 = vrcp.pop %v3031
        %v3821 = vmul.f32 %v3767, %v3820
        %v3822 = vrcp.pop %v3032
        %v3823 = vmul.f32 %v3768, %v3822
        %v3824 = vrcp.pop %v3033
        %v3825 = vmul.f32 %v3769, %v3824
        %v3826 = vrcp.pop %v3034
        %v3827 = vmul.f32 %v3770, %v3826
        %v3828 = vrcp.pop %v3035
        %v3829 = vmul.f32 %v3771, %v3828
        %v3830 = vrcp.pop %v3036
        %v3831 = vmul.f32 %v3772, %v3830
        %v3832 = vrcp.pop %v3037
        %v3833 = vmul.f32 %v3773, %v3832
        %v3834 = vrcp.pop %v3038
        %v3835 = vmul.f32 %v3774, %v3834
        %v3836 = vrcp.pop %v3039
        %v3837 = vmul.f32 %v3775, %v3836
        %v3838 = vrcp.pop %v3040
        %v3839 = vmul.f32 %v3776, %v3838
        %v3840 = vrcp.pop %v3041
        %v3841 = vmul.f32 %v3777, %v3840
        %v3842 = vmul.f32 %v2946, %v3779
        %v3843 = vmul.f32 %v2947, %v3781
        %v3844 = vmul.f32 %v2948, %v3783
        %v3845 = vmul.f32 %v2949, %v3785
        %v3846 = vmul.f32 %v2950, %v3787
        %v3847 = vmul.f32 %v2951, %v3789
        %v3848 = vmul.f32 %v2952, %v3791
        %v3849 = vmul.f32 %v2953, %v3793
        %v3850 = vmul.f32 %v2954, %v3795
        %v3851 = vmul.f32 %v2955, %v3797
        %v3852 = vmul.f32 %v2956, %v3799
        %v3853 = vmul.f32 %v2957, %v3801
        %v3854 = vmul.f32 %v2958, %v3803
        %v3855 = vmul.f32 %v2959, %v3805
        %v3856 = vmul.f32 %v2960, %v3807
        %v3857 = vmul.f32 %v2961, %v3809
        %v3858 = vmul.f32 %v2962, %v3811
        %v3859 = vmul.f32 %v2963, %v3813
        %v3860 = vmul.f32 %v2964, %v3815
        %v3861 = vmul.f32 %v2965, %v3817
        %v3862 = vmul.f32 %v2966, %v3819
        %v3863 = vmul.f32 %v2967, %v3821
        %v3864 = vmul.f32 %v2968, %v3823
        %v3865 = vmul.f32 %v2969, %v3825
        %v3866 = vmul.f32 %v2970, %v3827
        %v3867 = vmul.f32 %v2971, %v3829
        %v3868 = vmul.f32 %v2972, %v3831
        %v3869 = vmul.f32 %v2973, %v3833
        %v3870 = vmul.f32 %v2974, %v3835
        %v3871 = vmul.f32 %v2975, %v3837
        %v3872 = vmul.f32 %v2976, %v3839
        %v3873 = vmul.f32 %v2977, %v3841
        %v3874 = vmax.f32 %v3842, 0.0
        %v3875 = vmax.f32 %v3843, 0.0
        %v3876 = vmax.f32 %v3844, 0.0
        %v3877 = vmax.f32 %v3845, 0.0
        %v3878 = vmax.f32 %v3846, 0.0
        %v3879 = vmax.f32 %v3847, 0.0
        %v3880 = vmax.f32 %v3848, 0.0
        %v3881 = vmax.f32 %v3849, 0.0
        %v3882 = vmax.f32 %v3850, 0.0
        %v3883 = vmax.f32 %v3851, 0.0
        %v3884 = vmax.f32 %v3852, 0.0
        %v3885 = vmax.f32 %v3853, 0.0
        %v3886 = vmax.f32 %v3854, 0.0
        %v3887 = vmax.f32 %v3855, 0.0
        %v3888 = vmax.f32 %v3856, 0.0
        %v3889 = vmax.f32 %v3857, 0.0
        %v3890 = vmax.f32 %v3858, 0.0
        %v3891 = vmax.f32 %v3859, 0.0
        %v3892 = vmax.f32 %v3860, 0.0
        %v3893 = vmax.f32 %v3861, 0.0
        %v3894 = vmax.f32 %v3862, 0.0
        %v3895 = vmax.f32 %v3863, 0.0
        %v3896 = vmax.f32 %v3864, 0.0
        %v3897 = vmax.f32 %v3865, 0.0
        %v3898 = vmax.f32 %v3866, 0.0
        %v3899 = vmax.f32 %v3867, 0.0
        %v3900 = vmax.f32 %v3868, 0.0
        %v3901 = vmax.f32 %v3869, 0.0
        %v3902 = vmax.f32 %v3870, 0.0
        %v3903 = vmax.f32 %v3871, 0.0
        %v3904 = vmax.f32 %v3872, 0.0
        %v3905 = vmax.f32 %v3873, 0.0
        %v3906 = vmul.f32 %v3874, %v3874
        %v3907 = vmul.f32 %v3875, %v3875
        %v3908 = vmul.f32 %v3876, %v3876
        %v3909 = vmul.f32 %v3877, %v3877
        %v3910 = vmul.f32 %v3878, %v3878
        %v3911 = vmul.f32 %v3879, %v3879
        %v3912 = vmul.f32 %v3880, %v3880
        %v3913 = vmul.f32 %v3881, %v3881
        %v3914 = vmul.f32 %v3882, %v3882
        %v3915 = vmul.f32 %v3883, %v3883
        %v3916 = vmul.f32 %v3884, %v3884
        %v3917 = vmul.f32 %v3885, %v3885
        %v3918 = vmul.f32 %v3886, %v3886
        %v3919 = vmul.f32 %v3887, %v3887
        %v3920 = vmul.f32 %v3888, %v3888
        %v3921 = vmul.f32 %v3889, %v3889
        %v3922 = vmul.f32 %v3890, %v3890
        %v3923 = vmul.f32 %v3891, %v3891
        %v3924 = vmul.f32 %v3892, %v3892
        %v3925 = vmul.f32 %v3893, %v3893
        %v3926 = vmul.f32 %v3894, %v3894
        %v3927 = vmul.f32 %v3895, %v3895
        %v3928 = vmul.f32 %v3896, %v3896
        %v3929 = vmul.f32 %v3897, %v3897
        %v3930 = vmul.f32 %v3898, %v3898
        %v3931 = vmul.f32 %v3899, %v3899
        %v3932 = vmul.f32 %v3900, %v3900
        %v3933 = vmul.f32 %v3901, %v3901
        %v3934 = vmul.f32 %v3902, %v3902
        %v3935 = vmul.f32 %v3903, %v3903
        %v3936 = vmul.f32 %v3904, %v3904
        %v3937 = vmul.f32 %v3905, %v3905
        %3938 = vadd.xlane.f32.xlu0 %v3906
        %v3939 = vpop.xlane.xlu0 %3938
        %3940 = vadd.xlane.f32.xlu0 %v3907
        %v3941 = vpop.xlane.xlu0 %3940
        %3942 = vadd.xlane.f32.xlu0 %v3908
        %v3943 = vpop.xlane.xlu0 %3942
        %3944 = vadd.xlane.f32.xlu0 %v3909
        %v3945 = vpop.xlane.xlu0 %3944
        %3946 = vadd.xlane.f32.xlu0 %v3910
        %v3947 = vpop.xlane.xlu0 %3946
        %3948 = vadd.xlane.f32.xlu0 %v3911
        %v3949 = vpop.xlane.xlu0 %3948
        %3950 = vadd.xlane.f32.xlu0 %v3912
        %v3951 = vpop.xlane.xlu0 %3950
        %3952 = vadd.xlane.f32.xlu0 %v3913
        %v3953 = vpop.xlane.xlu0 %3952
        %3954 = vadd.xlane.f32.xlu0 %v3914
        %v3955 = vpop.xlane.xlu0 %3954
        %3956 = vadd.xlane.f32.xlu0 %v3915
        %v3957 = vpop.xlane.xlu0 %3956
        %3958 = vadd.xlane.f32.xlu0 %v3916
        %v3959 = vpop.xlane.xlu0 %3958
        %3960 = vadd.xlane.f32.xlu0 %v3917
        %v3961 = vpop.xlane.xlu0 %3960
        %3962 = vadd.xlane.f32.xlu0 %v3918
        %v3963 = vpop.xlane.xlu0 %3962
        %3964 = vadd.xlane.f32.xlu0 %v3919
        %v3965 = vpop.xlane.xlu0 %3964
        %3966 = vadd.xlane.f32.xlu0 %v3920
        %v3967 = vpop.xlane.xlu0 %3966
        %3968 = vadd.xlane.f32.xlu0 %v3921
        %v3969 = vpop.xlane.xlu0 %3968
        %3970 = vadd.xlane.f32.xlu0 %v3922
        %v3971 = vpop.xlane.xlu0 %3970
        %3972 = vadd.xlane.f32.xlu0 %v3923
        %v3973 = vpop.xlane.xlu0 %3972
        %3974 = vadd.xlane.f32.xlu0 %v3924
        %v3975 = vpop.xlane.xlu0 %3974
        %3976 = vadd.xlane.f32.xlu0 %v3925
        %v3977 = vpop.xlane.xlu0 %3976
        %3978 = vadd.xlane.f32.xlu0 %v3926
        %v3979 = vpop.xlane.xlu0 %3978
        %3980 = vadd.xlane.f32.xlu0 %v3927
        %v3981 = vpop.xlane.xlu0 %3980
        %3982 = vadd.xlane.f32.xlu0 %v3928
        %v3983 = vpop.xlane.xlu0 %3982
        %3984 = vadd.xlane.f32.xlu0 %v3929
        %v3985 = vpop.xlane.xlu0 %3984
        %3986 = vadd.xlane.f32.xlu0 %v3930
        %v3987 = vpop.xlane.xlu0 %3986
        %3988 = vadd.xlane.f32.xlu0 %v3931
        %v3989 = vpop.xlane.xlu0 %3988
        %3990 = vadd.xlane.f32.xlu0 %v3932
        %v3991 = vpop.xlane.xlu0 %3990
        %3992 = vadd.xlane.f32.xlu0 %v3933
        %v3993 = vpop.xlane.xlu0 %3992
        %3994 = vadd.xlane.f32.xlu0 %v3934
        %v3995 = vpop.xlane.xlu0 %3994
        %3996 = vadd.xlane.f32.xlu0 %v3935
        %v3997 = vpop.xlane.xlu0 %3996
        %3998 = vadd.xlane.f32.xlu0 %v3936
        %v3999 = vpop.xlane.xlu0 %3998
        %4000 = vadd.xlane.f32.xlu0 %v3937
        %v4001 = vpop.xlane.xlu0 %4000
        %v4002 = vmax.f32 %v3939, 1e-30
        %v4003 = vmax.f32 %v3941, 1e-30
        %v4004 = vmax.f32 %v3943, 1e-30
        %v4005 = vmax.f32 %v3945, 1e-30
        %v4006 = vmax.f32 %v3947, 1e-30
        %v4007 = vmax.f32 %v3949, 1e-30
        %v4008 = vmax.f32 %v3951, 1e-30
        %v4009 = vmax.f32 %v3953, 1e-30
        %v4010 = vmax.f32 %v3955, 1e-30
        %v4011 = vmax.f32 %v3957, 1e-30
        %v4012 = vmax.f32 %v3959, 1e-30
        %v4013 = vmax.f32 %v3961, 1e-30
        %v4014 = vmax.f32 %v3963, 1e-30
        %v4015 = vmax.f32 %v3965, 1e-30
        %v4016 = vmax.f32 %v3967, 1e-30
        %v4017 = vmax.f32 %v3969, 1e-30
        %v4018 = vmax.f32 %v3971, 1e-30
        %v4019 = vmax.f32 %v3973, 1e-30
        %v4020 = vmax.f32 %v3975, 1e-30
        %v4021 = vmax.f32 %v3977, 1e-30
        %v4022 = vmax.f32 %v3979, 1e-30
        %v4023 = vmax.f32 %v3981, 1e-30
        %v4024 = vmax.f32 %v3983, 1e-30
        %v4025 = vmax.f32 %v3985, 1e-30
        %v4026 = vmax.f32 %v3987, 1e-30
        %v4027 = vmax.f32 %v3989, 1e-30
        %v4028 = vmax.f32 %v3991, 1e-30
        %v4029 = vmax.f32 %v3993, 1e-30
        %v4030 = vmax.f32 %v3995, 1e-30
        %v4031 = vmax.f32 %v3997, 1e-30
        %v4032 = vmax.f32 %v3999, 1e-30
        %v4033 = vmax.f32 %v4001, 1e-30
        %v4034 = vrsqrt.pop %v4002
        %v4035 = vrsqrt.pop %v4003
        %v4036 = vrsqrt.pop %v4004
        %v4037 = vrsqrt.pop %v4005
        %v4038 = vrsqrt.pop %v4006
        %v4039 = vrsqrt.pop %v4007
        %v4040 = vrsqrt.pop %v4008
        %v4041 = vrsqrt.pop %v4009
        %v4042 = vrsqrt.pop %v4010
        %v4043 = vrsqrt.pop %v4011
        %v4044 = vrsqrt.pop %v4012
        %v4045 = vrsqrt.pop %v4013
        %v4046 = vrsqrt.pop %v4014
        %v4047 = vrsqrt.pop %v4015
        %v4048 = vrsqrt.pop %v4016
        %v4049 = vrsqrt.pop %v4017
        %v4050 = vrsqrt.pop %v4018
        %v4051 = vrsqrt.pop %v4019
        %v4052 = vrsqrt.pop %v4020
        %v4053 = vrsqrt.pop %v4021
        %v4054 = vrsqrt.pop %v4022
        %v4055 = vrsqrt.pop %v4023
        %v4056 = vrsqrt.pop %v4024
        %v4057 = vrsqrt.pop %v4025
        %v4058 = vrsqrt.pop %v4026
        %v4059 = vrsqrt.pop %v4027
        %v4060 = vrsqrt.pop %v4028
        %v4061 = vrsqrt.pop %v4029
        %v4062 = vrsqrt.pop %v4030
        %v4063 = vrsqrt.pop %v4031
        %v4064 = vrsqrt.pop %v4032
        %v4065 = vrsqrt.pop %v4033
        %v4066 = vmul.f32 %v4002, %v4034
        %v4067 = vmul.f32 %v4003, %v4035
        %v4068 = vmul.f32 %v4004, %v4036
        %v4069 = vmul.f32 %v4005, %v4037
        %v4070 = vmul.f32 %v4006, %v4038
        %v4071 = vmul.f32 %v4007, %v4039
        %v4072 = vmul.f32 %v4008, %v4040
        %v4073 = vmul.f32 %v4009, %v4041
        %v4074 = vmul.f32 %v4010, %v4042
        %v4075 = vmul.f32 %v4011, %v4043
        %v4076 = vmul.f32 %v4012, %v4044
        %v4077 = vmul.f32 %v4013, %v4045
        %v4078 = vmul.f32 %v4014, %v4046
        %v4079 = vmul.f32 %v4015, %v4047
        %v4080 = vmul.f32 %v4016, %v4048
        %v4081 = vmul.f32 %v4017, %v4049
        %v4082 = vmul.f32 %v4018, %v4050
        %v4083 = vmul.f32 %v4019, %v4051
        %v4084 = vmul.f32 %v4020, %v4052
        %v4085 = vmul.f32 %v4021, %v4053
        %v4086 = vmul.f32 %v4022, %v4054
        %v4087 = vmul.f32 %v4023, %v4055
        %v4088 = vmul.f32 %v4024, %v4056
        %v4089 = vmul.f32 %v4025, %v4057
        %v4090 = vmul.f32 %v4026, %v4058
        %v4091 = vmul.f32 %v4027, %v4059
        %v4092 = vmul.f32 %v4028, %v4060
        %v4093 = vmul.f32 %v4029, %v4061
        %v4094 = vmul.f32 %v4030, %v4062
        %v4095 = vmul.f32 %v4031, %v4063
        %v4096 = vmul.f32 %v4032, %v4064
        %v4097 = vmul.f32 %v4033, %v4065
        %v4098 = vtanh.pop %v4066
        %v4099 = vtanh.pop %v4067
        %v4100 = vtanh.pop %v4068
        %v4101 = vtanh.pop %v4069
        %v4102 = vtanh.pop %v4070
        %v4103 = vtanh.pop %v4071
        %v4104 = vtanh.pop %v4072
        %v4105 = vtanh.pop %v4073
        %v4106 = vtanh.pop %v4074
        %v4107 = vtanh.pop %v4075
        %v4108 = vtanh.pop %v4076
        %v4109 = vtanh.pop %v4077
        %v4110 = vtanh.pop %v4078
        %v4111 = vtanh.pop %v4079
        %v4112 = vtanh.pop %v4080
        %v4113 = vtanh.pop %v4081
        %v4114 = vtanh.pop %v4082
        %v4115 = vtanh.pop %v4083
        %v4116 = vtanh.pop %v4084
        %v4117 = vtanh.pop %v4085
        %v4118 = vtanh.pop %v4086
        %v4119 = vtanh.pop %v4087
        %v4120 = vtanh.pop %v4088
        %v4121 = vtanh.pop %v4089
        %v4122 = vtanh.pop %v4090
        %v4123 = vtanh.pop %v4091
        %v4124 = vtanh.pop %v4092
        %v4125 = vtanh.pop %v4093
        %v4126 = vtanh.pop %v4094
        %v4127 = vtanh.pop %v4095
        %v4128 = vtanh.pop %v4096
        %v4129 = vtanh.pop %v4097
        %v4130 = vmax.f32 %v4098, 1e-15
        %v4131 = vmax.f32 %v4099, 1e-15
        %v4132 = vmax.f32 %v4100, 1e-15
        %v4133 = vmax.f32 %v4101, 1e-15
        %v4134 = vmax.f32 %v4102, 1e-15
        %v4135 = vmax.f32 %v4103, 1e-15
        %v4136 = vmax.f32 %v4104, 1e-15
        %v4137 = vmax.f32 %v4105, 1e-15
        %v4138 = vmax.f32 %v4106, 1e-15
        %v4139 = vmax.f32 %v4107, 1e-15
        %v4140 = vmax.f32 %v4108, 1e-15
        %v4141 = vmax.f32 %v4109, 1e-15
        %v4142 = vmax.f32 %v4110, 1e-15
        %v4143 = vmax.f32 %v4111, 1e-15
        %v4144 = vmax.f32 %v4112, 1e-15
        %v4145 = vmax.f32 %v4113, 1e-15
        %v4146 = vmax.f32 %v4114, 1e-15
        %v4147 = vmax.f32 %v4115, 1e-15
        %v4148 = vmax.f32 %v4116, 1e-15
        %v4149 = vmax.f32 %v4117, 1e-15
        %v4150 = vmax.f32 %v4118, 1e-15
        %v4151 = vmax.f32 %v4119, 1e-15
        %v4152 = vmax.f32 %v4120, 1e-15
        %v4153 = vmax.f32 %v4121, 1e-15
        %v4154 = vmax.f32 %v4122, 1e-15
        %v4155 = vmax.f32 %v4123, 1e-15
        %v4156 = vmax.f32 %v4124, 1e-15
        %v4157 = vmax.f32 %v4125, 1e-15
        %v4158 = vmax.f32 %v4126, 1e-15
        %v4159 = vmax.f32 %v4127, 1e-15
        %v4160 = vmax.f32 %v4128, 1e-15
        %v4161 = vmax.f32 %v4129, 1e-15
        %v4162 = vrcp.pop %v4130
        %v4163 = vrcp.pop %v4131
        %v4164 = vrcp.pop %v4132
        %v4165 = vrcp.pop %v4133
        %v4166 = vrcp.pop %v4134
        %v4167 = vrcp.pop %v4135
        %v4168 = vrcp.pop %v4136
        %v4169 = vrcp.pop %v4137
        %v4170 = vrcp.pop %v4138
        %v4171 = vrcp.pop %v4139
        %v4172 = vrcp.pop %v4140
        %v4173 = vrcp.pop %v4141
        %v4174 = vrcp.pop %v4142
        %v4175 = vrcp.pop %v4143
        %v4176 = vrcp.pop %v4144
        %v4177 = vrcp.pop %v4145
        %v4178 = vrcp.pop %v4146
        %v4179 = vrcp.pop %v4147
        %v4180 = vrcp.pop %v4148
        %v4181 = vrcp.pop %v4149
        %v4182 = vrcp.pop %v4150
        %v4183 = vrcp.pop %v4151
        %v4184 = vrcp.pop %v4152
        %v4185 = vrcp.pop %v4153
        %v4186 = vrcp.pop %v4154
        %v4187 = vrcp.pop %v4155
        %v4188 = vrcp.pop %v4156
        %v4189 = vrcp.pop %v4157
        %v4190 = vrcp.pop %v4158
        %v4191 = vrcp.pop %v4159
        %v4192 = vrcp.pop %v4160
        %v4193 = vrcp.pop %v4161
        %v4194 = vmul.f32 %v4162, 0.996
        %v4195 = vmul.f32 %v4163, 0.996
        %v4196 = vmul.f32 %v4164, 0.996
        %v4197 = vmul.f32 %v4165, 0.996
        %v4198 = vmul.f32 %v4166, 0.996
        %v4199 = vmul.f32 %v4167, 0.996
        %v4200 = vmul.f32 %v4168, 0.996
        %v4201 = vmul.f32 %v4169, 0.996
        %v4202 = vmul.f32 %v4170, 0.996
        %v4203 = vmul.f32 %v4171, 0.996
        %v4204 = vmul.f32 %v4172, 0.996
        %v4205 = vmul.f32 %v4173, 0.996
        %v4206 = vmul.f32 %v4174, 0.996
        %v4207 = vmul.f32 %v4175, 0.996
        %v4208 = vmul.f32 %v4176, 0.996
        %v4209 = vmul.f32 %v4177, 0.996
        %v4210 = vmul.f32 %v4178, 0.996
        %v4211 = vmul.f32 %v4179, 0.996
        %v4212 = vmul.f32 %v4180, 0.996
        %v4213 = vmul.f32 %v4181, 0.996
        %v4214 = vmul.f32 %v4182, 0.996
        %v4215 = vmul.f32 %v4183, 0.996
        %v4216 = vmul.f32 %v4184, 0.996
        %v4217 = vmul.f32 %v4185, 0.996
        %v4218 = vmul.f32 %v4186, 0.996
        %v4219 = vmul.f32 %v4187, 0.996
        %v4220 = vmul.f32 %v4188, 0.996
        %v4221 = vmul.f32 %v4189, 0.996
        %v4222 = vmul.f32 %v4190, 0.996
        %v4223 = vmul.f32 %v4191, 0.996
        %v4224 = vmul.f32 %v4192, 0.996
        %v4225 = vmul.f32 %v4193, 0.996
        %v4226 = vmin.f32 %v4194, 1.0
        %v4227 = vmin.f32 %v4195, 1.0
        %v4228 = vmin.f32 %v4196, 1.0
        %v4229 = vmin.f32 %v4197, 1.0
        %v4230 = vmin.f32 %v4198, 1.0
        %v4231 = vmin.f32 %v4199, 1.0
        %v4232 = vmin.f32 %v4200, 1.0
        %v4233 = vmin.f32 %v4201, 1.0
        %v4234 = vmin.f32 %v4202, 1.0
        %v4235 = vmin.f32 %v4203, 1.0
        %v4236 = vmin.f32 %v4204, 1.0
        %v4237 = vmin.f32 %v4205, 1.0
        %v4238 = vmin.f32 %v4206, 1.0
        %v4239 = vmin.f32 %v4207, 1.0
        %v4240 = vmin.f32 %v4208, 1.0
        %v4241 = vmin.f32 %v4209, 1.0
        %v4242 = vmin.f32 %v4210, 1.0
        %v4243 = vmin.f32 %v4211, 1.0
        %v4244 = vmin.f32 %v4212, 1.0
        %v4245 = vmin.f32 %v4213, 1.0
        %v4246 = vmin.f32 %v4214, 1.0
        %v4247 = vmin.f32 %v4215, 1.0
        %v4248 = vmin.f32 %v4216, 1.0
        %v4249 = vmin.f32 %v4217, 1.0
        %v4250 = vmin.f32 %v4218, 1.0
        %v4251 = vmin.f32 %v4219, 1.0
        %v4252 = vmin.f32 %v4220, 1.0
        %v4253 = vmin.f32 %v4221, 1.0
        %v4254 = vmin.f32 %v4222, 1.0
        %v4255 = vmin.f32 %v4223, 1.0
        %v4256 = vmin.f32 %v4224, 1.0
        %v4257 = vmin.f32 %v4225, 1.0
        %v4258 = vmul.f32 %v4098, %v4034
        %v4259 = vmul.f32 %v4099, %v4035
        %v4260 = vmul.f32 %v4100, %v4036
        %v4261 = vmul.f32 %v4101, %v4037
        %v4262 = vmul.f32 %v4102, %v4038
        %v4263 = vmul.f32 %v4103, %v4039
        %v4264 = vmul.f32 %v4104, %v4040
        %v4265 = vmul.f32 %v4105, %v4041
        %v4266 = vmul.f32 %v4106, %v4042
        %v4267 = vmul.f32 %v4107, %v4043
        %v4268 = vmul.f32 %v4108, %v4044
        %v4269 = vmul.f32 %v4109, %v4045
        %v4270 = vmul.f32 %v4110, %v4046
        %v4271 = vmul.f32 %v4111, %v4047
        %v4272 = vmul.f32 %v4112, %v4048
        %v4273 = vmul.f32 %v4113, %v4049
        %v4274 = vmul.f32 %v4114, %v4050
        %v4275 = vmul.f32 %v4115, %v4051
        %v4276 = vmul.f32 %v4116, %v4052
        %v4277 = vmul.f32 %v4117, %v4053
        %v4278 = vmul.f32 %v4118, %v4054
        %v4279 = vmul.f32 %v4119, %v4055
        %v4280 = vmul.f32 %v4120, %v4056
        %v4281 = vmul.f32 %v4121, %v4057
        %v4282 = vmul.f32 %v4122, %v4058
        %v4283 = vmul.f32 %v4123, %v4059
        %v4284 = vmul.f32 %v4124, %v4060
        %v4285 = vmul.f32 %v4125, %v4061
        %v4286 = vmul.f32 %v4126, %v4062
        %v4287 = vmul.f32 %v4127, %v4063
        %v4288 = vmul.f32 %v4128, %v4064
        %v4289 = vmul.f32 %v4129, %v4065
        %v4290 = vmul.f32 %v4258, %v4226
        %v4291 = vmul.f32 %v4259, %v4227
        %v4292 = vmul.f32 %v4260, %v4228
        %v4293 = vmul.f32 %v4261, %v4229
        %v4294 = vmul.f32 %v4262, %v4230
        %v4295 = vmul.f32 %v4263, %v4231
        %v4296 = vmul.f32 %v4264, %v4232
        %v4297 = vmul.f32 %v4265, %v4233
        %v4298 = vmul.f32 %v4266, %v4234
        %v4299 = vmul.f32 %v4267, %v4235
        %v4300 = vmul.f32 %v4268, %v4236
        %v4301 = vmul.f32 %v4269, %v4237
        %v4302 = vmul.f32 %v4270, %v4238
        %v4303 = vmul.f32 %v4271, %v4239
        %v4304 = vmul.f32 %v4272, %v4240
        %v4305 = vmul.f32 %v4273, %v4241
        %v4306 = vmul.f32 %v4274, %v4242
        %v4307 = vmul.f32 %v4275, %v4243
        %v4308 = vmul.f32 %v4276, %v4244
        %v4309 = vmul.f32 %v4277, %v4245
        %v4310 = vmul.f32 %v4278, %v4246
        %v4311 = vmul.f32 %v4279, %v4247
        %v4312 = vmul.f32 %v4280, %v4248
        %v4313 = vmul.f32 %v4281, %v4249
        %v4314 = vmul.f32 %v4282, %v4250
        %v4315 = vmul.f32 %v4283, %v4251
        %v4316 = vmul.f32 %v4284, %v4252
        %v4317 = vmul.f32 %v4285, %v4253
        %v4318 = vmul.f32 %v4286, %v4254
        %v4319 = vmul.f32 %v4287, %v4255
        %v4320 = vmul.f32 %v4288, %v4256
        %v4321 = vmul.f32 %v4289, %v4257
        %v4322 = vmul.f32 %v3874, %v4290
        %v4323 = vmul.f32 %v3875, %v4291
        %v4324 = vmul.f32 %v3876, %v4292
        %v4325 = vmul.f32 %v3877, %v4293
        %v4326 = vmul.f32 %v3878, %v4294
        %v4327 = vmul.f32 %v3879, %v4295
        %v4328 = vmul.f32 %v3880, %v4296
        %v4329 = vmul.f32 %v3881, %v4297
        %v4330 = vmul.f32 %v3882, %v4298
        %v4331 = vmul.f32 %v3883, %v4299
        %v4332 = vmul.f32 %v3884, %v4300
        %v4333 = vmul.f32 %v3885, %v4301
        %v4334 = vmul.f32 %v3886, %v4302
        %v4335 = vmul.f32 %v3887, %v4303
        %v4336 = vmul.f32 %v3888, %v4304
        %v4337 = vmul.f32 %v3889, %v4305
        %v4338 = vmul.f32 %v3890, %v4306
        %v4339 = vmul.f32 %v3891, %v4307
        %v4340 = vmul.f32 %v3892, %v4308
        %v4341 = vmul.f32 %v3893, %v4309
        %v4342 = vmul.f32 %v3894, %v4310
        %v4343 = vmul.f32 %v3895, %v4311
        %v4344 = vmul.f32 %v3896, %v4312
        %v4345 = vmul.f32 %v3897, %v4313
        %v4346 = vmul.f32 %v3898, %v4314
        %v4347 = vmul.f32 %v3899, %v4315
        %v4348 = vmul.f32 %v3900, %v4316
        %v4349 = vmul.f32 %v3901, %v4317
        %v4350 = vmul.f32 %v3902, %v4318
        %v4351 = vmul.f32 %v3903, %v4319
        %v4352 = vmul.f32 %v3904, %v4320
        %v4353 = vmul.f32 %v3905, %v4321
        %4354 = vst [vmem:[%s164] sm:$0xff] %v4322
        %4355 = vst [vmem:[%s164 + $0x8] sm:$0xff] %v4323
        %4356 = vst [vmem:[%s164 + $0x10] sm:$0xff] %v4324
        %4357 = vst [vmem:[%s164 + $0x18] sm:$0xff] %v4325
        %4358 = vst [vmem:[%s164 + $0x20] sm:$0xff] %v4326
        %4359 = vst [vmem:[%s164 + $0x28] sm:$0xff] %v4327
        %4360 = vst [vmem:[%s164 + $0x30] sm:$0xff] %v4328
        %4361 = vst [vmem:[%s164 + $0x38] sm:$0xff] %v4329
        %4362 = vst [vmem:[%s164 + $0x40] sm:$0xff] %v4330
        %4363 = vst [vmem:[%s164 + $0x48] sm:$0xff] %v4331
        %4364 = vst [vmem:[%s164 + $0x50] sm:$0xff] %v4332
        %4365 = vst [vmem:[%s164 + $0x58] sm:$0xff] %v4333
        %4366 = vst [vmem:[%s164 + $0x60] sm:$0xff] %v4334
        %4367 = vst [vmem:[%s164 + $0x68] sm:$0xff] %v4335
        %4368 = vst [vmem:[%s164 + $0x70] sm:$0xff] %v4336
        %4369 = vst [vmem:[%s164 + $0x78] sm:$0xff] %v4337
        %4370 = vst [vmem:[%s164 + $0x80] sm:$0xff] %v4338
        %4371 = vst [vmem:[%s164 + $0x88] sm:$0xff] %v4339
        %4372 = vst [vmem:[%s164 + $0x90] sm:$0xff] %v4340
        %4373 = vst [vmem:[%s164 + $0x98] sm:$0xff] %v4341
        %4374 = vst [vmem:[%s164 + $0xa0] sm:$0xff] %v4342
        %4375 = vst [vmem:[%s164 + $0xa8] sm:$0xff] %v4343
        %4376 = vst [vmem:[%s164 + $0xb0] sm:$0xff] %v4344
        %4377 = vst [vmem:[%s164 + $0xb8] sm:$0xff] %v4345
        %4378 = vst [vmem:[%s164 + $0xc0] sm:$0xff] %v4346
        %4379 = vst [vmem:[%s164 + $0xc8] sm:$0xff] %v4347
        %4380 = vst [vmem:[%s164 + $0xd0] sm:$0xff] %v4348
        %4381 = vst [vmem:[%s164 + $0xd8] sm:$0xff] %v4349
        %4382 = vst [vmem:[%s164 + $0xe0] sm:$0xff] %v4350
        %4383 = vst [vmem:[%s164 + $0xe8] sm:$0xff] %v4351
        %4384 = vst [vmem:[%s164 + $0xf0] sm:$0xff] %v4352
        %4385 = vst [vmem:[%s164 + $0xf8] sm:$0xff] %v4353
        %s4386 = sand.u32 %s93, 1
        %s4387 = scalar_lea.sflag [#allocation3], %s4386
        %s4388 = sand.u32 %s93, 1
        %s4389 = smul.addr %s4388, 256
        %s4390 = scalar_lea.vmem [#allocation2], %s4389
        // Predicated region
        $region33: #{tpu_custom_call.1} parent=31 // pred_check
          %p4391 = pneg %p103
        $region34: #{tpu_custom_call.1} parent=31 // pred_check_branch
          %4393 = sbr.rel (%p4391) target = $region36
        $region35: #{tpu_custom_call.1} parent=31 // pred_region
          %s4394 = smul.u32 32, %s17
          %s4396 = ssub.s32 4096, 4096
          %4397 = vsyncadd %s4387, %s4396
          %s4398 = smul.addr %s4394, 128
          %s4399 = scalar_lea.hbm %s3, %s4398
          %s4400 = sshll.u32 %s4390, 4
          %s4401 = int_to_ptr.vmem [resolvable:$true] %s4400
          %4406 = dma.vmem_to_hbm [thread:$0]  %s4401, 4096, %s4399, %s4387, 128, 128, 8
        $region36: #{tpu_custom_call.1} parent=31 // pred_fallthru
          _
      $region32: #{tpu_custom_call.1} parent=5 // pred_fallthru
        _
      %p4407 = scmp.le.s32.totalorder 2, %s12
      // Predicated region
      $region37: #{tpu_custom_call.1} parent=5 // pred_check
        %p4408 = pneg %p4407
      $region38: #{tpu_custom_call.1} parent=5 // pred_check_branch
        %4410 = sbr.rel (%p4408) target = $region40
      $region39: #{tpu_custom_call.1} parent=5 // pred_region
        %s4411 = ssub.s32 %s12, 2
        // Predicated region
        $region41: #{tpu_custom_call.1} parent=39 // pred_check
          %p4412 = pneg %p109
        $region42: #{tpu_custom_call.1} parent=39 // pred_check_branch
          %4414 = sbr.rel (%p4412) target = $region44
        $region43: #{tpu_custom_call.1} parent=39 // pred_region
          %s4415 = sand.u32 %s94, 1
          %s4416 = scalar_lea.sflag [#allocation3], %s4415
          %s4417 = sand.u32 %s94, 1
          %s4418 = smul.addr %s4417, 256
          %s4419 = scalar_lea.vmem [#allocation2], %s4418
          %4420 = dma.done %s4416, 4096
        $region44: #{tpu_custom_call.1} parent=39 // pred_fallthru
          _
      $region40: #{tpu_custom_call.1} parent=5 // pred_fallthru
        _
    $region6: #{tpu_custom_call.1} parent=1 // loop_footer
      %s16 = sadd.s32 1, %s12
    $region7: #{tpu_custom_call.1} parent=1 // loop_footer_branch
      %11 = sbr.rel target = $region3
    $region8: #{tpu_custom_call.1} parent=1 // loop_exit
      _
    %4421 = vsyncpa [#allocation3], 1
    %s4422 = scalar_lea.sflag [#allocation3], 1
    %4423 = vsyncpa %s4422, 1

</llo_original>
